<compile_context>
chip_gen: v6e
topology: v6e:2x2x1
jax: 0.10.0
libtpu: 0.0.40
codegen_flags: <defaults>
</compile_context>

<pallas_src>
import functools

import jax
import jax.numpy as jnp
import numpy as np
from jax.experimental import pallas as pl
from jax.experimental.pallas import tpu as pltpu

EPS = 1e-5
_VMEM_LIMIT = 32 * 1024 * 1024


def _compiler_params():
    return pltpu.CompilerParams(
        dimension_semantics=("parallel",),
        vmem_limit_bytes=_VMEM_LIMIT,
    )


# ----------------------------------------------------------------------------
# In-kernel helpers
# ----------------------------------------------------------------------------
def _pad_rows(x):
    """(h, L) f32 -> (h+2, L) f32 with one zero row on top and bottom."""
    zero = jnp.zeros((1, x.shape[-1]), jnp.float32)
    return jnp.concatenate([zero, x, zero], axis=0)


def _band_dots(xpad, w_ref, hout, stride):
    """Conv as a per-row-tap accumulation of banded matmuls.

    xpad : (hin+2, Win*Cin) f32 row-padded, lane-packed input.
    w_ref: (taps, Win*Cin, Wout*Cout) bf16; column taps / pad / stride are
           folded into each band.
    Output row y of tap dy reads padded row stride*y + dy.
    """
    hp = xpad.shape[0]
    acc = None
    for dy in range(w_ref.shape[0]):
        if stride == 1:
            rows = xpad[dy:dy + hout]
        else:
            # Strided row selection as a tiny 0/1 matmul (avoids strided VMEM
            # reads; the waste is ~hp/Lout of the main dot's MACs).
            ri = jax.lax.broadcasted_iota(jnp.int32, (hout, hp), 0)
            ci = jax.lax.broadcasted_iota(jnp.int32, (hout, hp), 1)
            sel = (ci == stride * ri + dy).astype(jnp.float32)
            rows = jnp.dot(sel, xpad, preferred_element_type=jnp.float32)
        part = jnp.dot(rows.astype(jnp.bfloat16), w_ref[dy],
                       preferred_element_type=jnp.float32)
        acc = part if acc is None else acc + part
    return acc


# ----------------------------------------------------------------------------
# Pallas kernels
# ----------------------------------------------------------------------------
def _conv_kernel(x_ref, w_ref, s_ref, out_ref, *, hout, stride, relu):
    """Fused conv(3x3, pad 1, stride s) + BN shift (+ReLU).  Lane-dense output."""
    xpad = _pad_rows(x_ref[0].astype(jnp.float32))
    out = _band_dots(xpad, w_ref, hout, stride) + s_ref[...]
    if relu:
        out = jnp.maximum(out, 0.0)
    out_ref[0] = out.astype(out_ref.dtype)


def _basic_block_kernel(x_ref, w1_ref, s1_ref, w2_ref, s2_ref, out_ref, *, h):
    """Whole BasicBlock in one kernel; the intermediate stays in VMEM."""
    x = x_ref[0].astype(jnp.float32)
    acc1 = _band_dots(_pad_rows(x), w1_ref, h, 1)
    mid = jnp.maximum(acc1 + s1_ref[...], 0.0)          # conv1 + bn1 + relu
    acc2 = _band_dots(_pad_rows(mid), w2_ref, h, 1)      # conv2 + bn2
    out = jnp.maximum(acc2 + s2_ref[...] + x, 0.0)       # +residual, relu
    out_ref[0] = out.astype(out_ref.dtype)


def _fuse_kernel(*refs, metas, hout):
    """Branch fuse: sum of {identity, 1x1-conv+nearest-upsample, stride-2 conv}
    terms followed by ReLU, all in one kernel."""
    n_in = sum({"id": 1, "up": 4, "down": 3}[m["kind"]] for m in metas)
    out_ref = refs[n_in]
    acc = None
    ri = 0
    for m in metas:
        if m["kind"] == "id":
            t = refs[ri][0].astype(jnp.float32)
            ri += 1
        elif m["kind"] == "up":
            y_ref, w_ref, r_ref, s_ref = refs[ri:ri + 4]
            ri += 4
            # 1x1 conv with column-upsample folded into the band, then nearest
            # row-upsample via a 0/1 row-repeat matmul, then BN shift.
            t1 = jnp.dot(y_ref[0], w_ref[0], preferred_element_type=jnp.float32)
            t = jnp.dot(r_ref[...], t1,
                        preferred_element_type=jnp.float32) + s_ref[...]
        else:  # "down": last stride-2 3x3 conv of the chain (no ReLU), fused.
            y_ref, w_ref, s_ref = refs[ri:ri + 3]
            ri += 3
            xpad = _pad_rows(y_ref[0].astype(jnp.float32))
            t = _band_dots(xpad, w_ref, hout, 2) + s_ref[...]
        acc = t if acc is None else acc + t
    out_ref[0] = jnp.maximum(acc, 0.0).astype(out_ref.dtype)


# ----------------------------------------------------------------------------
# Wrappers (pallas_call plumbing; activations NHWC bf16, reshapes are free)
# ----------------------------------------------------------------------------
def conv_bn_act(x, p):
    n, h, w, c = x.shape
    lin = w * c
    stride = p["stride"]
    hout, wout, cout = h // stride, w // stride, p["cout"]
    lout = wout * cout
    out = pl.pallas_call(
        functools.partial(_conv_kernel, hout=hout, stride=stride, relu=p["relu"]),
        out_shape=jax.ShapeDtypeStruct((n, hout, lout), jnp.bfloat16),
        grid=(n,),
        in_specs=[pl.BlockSpec((1, h, lin), lambda b: (b, 0, 0)),
                  pl.BlockSpec(p["band"].shape, lambda b: (0, 0, 0)),
                  pl.BlockSpec(p["shift"].shape, lambda b: (0, 0))],
        out_specs=pl.BlockSpec((1, hout, lout), lambda b: (b, 0, 0)),
        compiler_params=_compiler_params(),
    )(x.reshape(n, h, lin), p["band"], p["shift"])
    return out.reshape(n, hout, wout, cout)


def basic_block_forward(x, p):
    n, h, w, c = x.shape
    lin = w * c
    cb1, cb2 = p["cb1"], p["cb2"]
    out = pl.pallas_call(
        functools.partial(_basic_block_kernel, h=h),
        out_shape=jax.ShapeDtypeStruct((n, h, lin), jnp.bfloat16),
        grid=(n,),
        in_specs=[pl.BlockSpec((1, h, lin), lambda b: (b, 0, 0)),
                  pl.BlockSpec(cb1["band"].shape, lambda b: (0, 0, 0)),
                  pl.BlockSpec(cb1["shift"].shape, lambda b: (0, 0)),
                  pl.BlockSpec(cb2["band"].shape, lambda b: (0, 0, 0)),
                  pl.BlockSpec(cb2["shift"].shape, lambda b: (0, 0))],
        out_specs=pl.BlockSpec((1, h, lin), lambda b: (b, 0, 0)),
        compiler_params=_compiler_params(),
    )(x.reshape(n, h, lin), cb1["band"], cb1["shift"], cb2["band"], cb2["shift"])
    return out.reshape(n, h, w, c)


def fuse_sum(terms, out_shape):
    n, hout, wout, cout = out_shape
    lout = wout * cout
    inputs, in_specs, metas = [], [], []
    for t in terms:
        x = t["x"]
        _, h_, w_, c_ = x.shape
        lin = w_ * c_
        inputs.append(x.reshape(n, h_, lin))
        in_specs.append(pl.BlockSpec((1, h_, lin), lambda b: (b, 0, 0)))
        if t["kind"] == "id":
            metas.append({"kind": "id"})
        elif t["kind"] == "up":
            p = t["p"]
            inputs += [p["band"], p["rmat"], p["shift"]]
            in_specs += [pl.BlockSpec(p["band"].shape, lambda b: (0, 0, 0)),
                         pl.BlockSpec(p["rmat"].shape, lambda b: (0, 0)),
                         pl.BlockSpec(p["shift"].shape, lambda b: (0, 0))]
            metas.append({"kind": "up"})
        else:  # down
            p = t["p"]
            inputs += [p["band"], p["shift"]]
            in_specs += [pl.BlockSpec(p["band"].shape, lambda b: (0, 0, 0)),
                         pl.BlockSpec(p["shift"].shape, lambda b: (0, 0))]
            metas.append({"kind": "down"})
    out = pl.pallas_call(
        functools.partial(_fuse_kernel, metas=tuple(metas), hout=hout),
        out_shape=jax.ShapeDtypeStruct((n, hout, lout), jnp.bfloat16),
        grid=(n,),
        in_specs=in_specs,
        out_specs=pl.BlockSpec((1, hout, lout), lambda b: (b, 0, 0)),
        compiler_params=_compiler_params(),
    )(*inputs)
    return out.reshape(n, hout, wout, cout)


# ----------------------------------------------------------------------------
# Parameter init (deterministic synthetic weights; BN folded; banded weights,
# tiled shifts and row-repeat matrices all precomputed here -> no per-forward
# weight transforms).
# ----------------------------------------------------------------------------
def _fold_bn_weights(key, cin, cout, ksize):
    k1, k2, k3, k4, k5 = jax.random.split(key, 5)
    w = jax.random.normal(k1, (ksize, ksize, cin, cout), jnp.float32) * 0.1
    gamma = 1.0 + 0.1 * jax.random.normal(k2, (cout,), jnp.float32)
    beta = 0.1 * jax.random.normal(k3, (cout,), jnp.float32)
    mean = 0.1 * jax.random.normal(k4, (cout,), jnp.float32)
    var = jax.random.uniform(k5, (cout,), jnp.float32, minval=0.5, maxval=1.5)
    scale = gamma / jnp.sqrt(var + EPS)
    shift = beta - mean * scale
    return w * scale, shift


def _tile_shift(shift, wout):
    cout = shift.shape[0]
    return jnp.tile(shift.reshape(1, cout), (1, wout)).astype(jnp.float32)


def init_conv3(key, cin, cout, win, stride, relu):
    """3x3 conv (pad 1, stride s) + folded BN as per-dy banded matrices."""
    w, shift = _fold_bn_weights(key, cin, cout, 3)
    wout = win // stride
    ind = np.zeros((3, win, wout), np.float32)
    for dx in range(3):
        for xo in range(wout):
            xi = stride * xo - 1 + dx
            if 0 <= xi < win:
                ind[dx, xi, xo] = 1.0
    band = jnp.einsum("ydic,dxo->yxioc", w, jnp.asarray(ind))
    band = band.reshape(3, win * cin, wout * cout).astype(jnp.bfloat16)
    return {"band": band, "shift": _tile_shift(shift, wout),
            "stride": stride, "cout": cout, "relu": relu}


def init_conv1_up(key, cin, cout, win, hin, factor):
    """1x1 conv + folded BN + nearest upsample: column upsample folded into the
    band, row upsample as a precomputed 0/1 row-repeat matrix."""
    w, shift = _fold_bn_weights(key, cin, cout, 1)
    wout = win * factor
    ind = np.zeros((win, wout), np.float32)
    for xo in range(wout):
        ind[xo // factor, xo] = 1.0
    band = jnp.einsum("ic,xo->xioc", w.reshape(cin, cout), jnp.asarray(ind))
    band = band.reshape(1, win * cin, wout * cout).astype(jnp.bfloat16)
    hout = hin * factor
    rmat = np.zeros((hout, hin), np.float32)
    for yo in range(hout):
        rmat[yo, yo // factor] = 1.0
    return {"band": band, "shift": _tile_shift(shift, wout),
            "rmat": jnp.asarray(rmat), "f": factor}


def init_basic_block(key, planes, win):
    k1, k2 = jax.random.split(key)
    return {"cb1": init_conv3(k1, planes, planes, win, 1, relu=True),
            "cb2": init_conv3(k2, planes, planes, win, 1, relu=False)}


def init_hr_module(key, num_conv, c_out, H, W):
    keys = jax.random.split(key, 256)
    ki = 0
    params = {"branches": [], "fuse": {}}
    for i, (nconv, plane) in enumerate(zip(num_conv, c_out)):
        win = W >> i
        blocks = []
        for _ in range(nconv):
            blocks.append(init_basic_block(keys[ki], plane, win))
            ki += 1
        params["branches"].append(blocks)
    nb = len(c_out)
    for io in range(nb):
        for ii in range(nb):
            if ii == io:
                continue
            if ii > io:   # 1x1 conv + BN + nearest upsample (fused into sum)
                params["fuse"][(io, ii)] = init_conv1_up(
                    keys[ki], c_out[ii], c_out[io], W >> ii, H >> ii,
                    2 ** (ii - io))
                ki += 1
            else:         # chain of stride-2 3x3 conv+BN (+ReLU except last)
                n_convs = io - ii
                convs = []
                for j in range(n_convs):
                    is_last = (j == n_convs - 1)
                    cin = c_out[ii]
                    cout = c_out[io] if is_last else c_out[ii]
                    convs.append(init_conv3(keys[ki], cin, cout,
                                            W >> (ii + j), 2, relu=not is_last))
                    ki += 1
                params["fuse"][(io, ii)] = {"convs": convs}
    return params


def init_transition(key, c_in, c_out, H, W):
    nbi, nbo = len(c_in), len(c_out)
    keys = jax.random.split(key, 64)
    ki = 0
    trans = []
    for idx in range(nbo):
        if idx < nbi:
            if c_in[idx] != c_out[idx]:
                trans.append({"type": "conv",
                              "cb": init_conv3(keys[ki], c_in[idx], c_out[idx],
                                               W >> idx, 1, relu=True)})
                ki += 1
            else:
                trans.append(None)
        else:
            convs = []
            for j in range(idx + 1 - nbi):
                fin = c_in[-1]
                fout = c_out[idx] if j == idx - nbi else fin
                convs.append(init_conv3(keys[ki], fin, fout,
                                        W >> (nbi - 1 + j), 2, relu=True))
                ki += 1
            trans.append({"type": "down", "convs": convs})
    return trans


def init_stage_module(key, num_module, num_block, c_in, c_out, H, W):
    keys = jax.random.split(key, num_module + 1)
    return {"transition": init_transition(keys[0], c_in, c_out, H, W),
            "modules": [init_hr_module(keys[1 + m], num_block, c_out, H, W)
                        for m in range(num_module)]}


# ----------------------------------------------------------------------------
# Forward passes (mirror the PyTorch module structure)
# ----------------------------------------------------------------------------
def hr_module_forward(xs, params):
    ys = []
    for xi, blocks in zip(xs, params["branches"]):
        y = xi
        for bp in blocks:
            y = basic_block_forward(y, bp)
        ys.append(y)

    nb = len(ys)
    outs = []
    for io in range(nb):
        terms = []
        for ii in range(nb):
            if ii == io:
                terms.append({"kind": "id", "x": ys[ii]})
            elif ii > io:
                terms.append({"kind": "up", "x": ys[ii],
                              "p": params["fuse"][(io, ii)]})
            else:
                fp = params["fuse"][(io, ii)]
                t = ys[ii]
                for c in fp["convs"][:-1]:      # stride-2 conv + BN + ReLU
                    t = conv_bn_act(t, c)
                terms.append({"kind": "down", "x": t, "p": fp["convs"][-1]})
        outs.append(fuse_sum(terms, ys[io].shape))
    return outs


def transition_forward(xs, trans):
    xs = xs + [xs[-1] for _ in range(len(trans) - len(xs))]
    outs = []
    for t, x in zip(trans, xs):
        if t is None:
            outs.append(x)
        elif t["type"] == "conv":
            outs.append(conv_bn_act(x, t["cb"]))
        else:
            y = x
            for cb in t["convs"]:
                y = conv_bn_act(y, cb)
            outs.append(y)
    return outs


def stage_module_forward(xs, params):
    xs = [x.astype(jnp.bfloat16) for x in xs]
    xs = transition_forward(xs, params["transition"])
    for mp in params["modules"]:
        xs = hr_module_forward(xs, mp)
    return xs


# ----------------------------------------------------------------------------
if __name__ == "__main__":
    # Config: StageModule(num_module=1, num_block=[1, 1], c_in=[8], c_out=[8, 16])
    c_in = [8]
    c_out = [8, 16]
    num_block = [1, 1]
    num_module = 1
    N, H, W = 2, 16, 16

    key = jax.random.PRNGKey(0)
    k_in, k_params = jax.random.split(key)
    # NHWC input (PyTorch reference would be (N, 8, 16, 16) NCHW)
    x0 = jax.random.normal(k_in, (N, H, W, c_in[0]), jnp.float32)

    params = init_stage_module(k_params, num_module, num_block, c_in, c_out, H, W)

    fwd = jax.jit(lambda x: stage_module_forward([x], params))
    outs = fwd(x0)
    outs = [jax.block_until_ready(o) for o in outs]

    assert outs[0].shape == (N, H, W, c_out[0])
    assert outs[1].shape == (N, H // 2, W // 2, c_out[1])
    assert all(bool(jnp.all(jnp.isfinite(o.astype(jnp.float32)))) for o in outs)
    print("KERNEL_OK")
</pallas_src>

<mosaic_0001>
module attributes {stable_mosaic.version = 11 : i64} {
  func.func @_basic_block_kernel(%arg0: i32, %arg1: memref<1x16x128xbf16, #tpu.memory_space<vmem>>, %arg2: memref<3x128x128xbf16, #tpu.memory_space<vmem>>, %arg3: memref<1x128xf32, #tpu.memory_space<vmem>>, %arg4: memref<3x128x128xbf16, #tpu.memory_space<vmem>>, %arg5: memref<1x128xf32, #tpu.memory_space<vmem>>, %arg6: memref<1x16x128xbf16, #tpu.memory_space<vmem>>) attributes {dimension_semantics = [#tpu.dimension_semantics<parallel>], iteration_bounds = array<i64: 2>, scalar_prefetch = 0 : i64, scratch_operands = 0 : i64, tpu.core_type = #tpu.core_type<tc>, window_params = [{transform_indices = @transform_0, window_bounds = array<i64: 1, 16, 128>}, {pipeline_mode = #tpu.pipeline_mode<synchronous>, transform_indices = @transform_1, window_bounds = array<i64: 3, 128, 128>}, {pipeline_mode = #tpu.pipeline_mode<synchronous>, transform_indices = @transform_2, window_bounds = array<i64: 1, 128>}, {pipeline_mode = #tpu.pipeline_mode<synchronous>, transform_indices = @transform_3, window_bounds = array<i64: 3, 128, 128>}, {pipeline_mode = #tpu.pipeline_mode<synchronous>, transform_indices = @transform_4, window_bounds = array<i64: 1, 128>}, {transform_indices = @transform_5, window_bounds = array<i64: 1, 16, 128>}]} {
    %c0 = arith.constant 0 : index
    %c0_0 = arith.constant 0 : index
    %c0_1 = arith.constant 0 : index
    %0 = vector.load %arg1[%c0, %c0_0, %c0_1] : memref<1x16x128xbf16, #tpu.memory_space<vmem>>, vector<1x16x128xbf16>
    %1 = vector.shape_cast %0 : vector<1x16x128xbf16> to vector<16x128xbf16>
    %2 = arith.extf %1 : vector<16x128xbf16> to vector<16x128xf32>
    %cst = arith.constant 0.000000e+00 : f32
    %3 = vector.broadcast %cst : f32 to vector<1x128xf32>
    %4 = tpu.concatenate %3, %2, %3 in 0 : vector<1x128xf32>, vector<16x128xf32>, vector<1x128xf32> -> vector<18x128xf32>
    %5 = vector.extract_strided_slice %4 {offsets = [0, 0], sizes = [16, 128], strides = [1, 1]} : vector<18x128xf32> to vector<16x128xf32>
    %6 = arith.truncf %5 : vector<16x128xf32> to vector<16x128xbf16>
    %c0_2 = arith.constant 0 : index
    %c0_3 = arith.constant 0 : index
    %c0_4 = arith.constant 0 : index
    %7 = vector.load %arg2[%c0_2, %c0_3, %c0_4] : memref<3x128x128xbf16, #tpu.memory_space<vmem>>, vector<1x128x128xbf16>
    %8 = vector.shape_cast %7 : vector<1x128x128xbf16> to vector<128x128xbf16>
    %cst_5 = arith.constant dense<0.000000e+00> : vector<16x128xf32>
    %9 = tpu.matmul %6, %8, %cst_5 {dimension_numbers = #tpu.dot_dimension_numbers<[1], [0], [0], [1], [0, 0, 1, 1], [], []>} : vector<16x128xbf16>, vector<128x128xbf16>, vector<16x128xf32> -> vector<16x128xf32>
    %10 = vector.extract_strided_slice %4 {offsets = [1, 0], sizes = [16, 128], strides = [1, 1]} : vector<18x128xf32> to vector<16x128xf32>
    %11 = arith.truncf %10 : vector<16x128xf32> to vector<16x128xbf16>
    %c1 = arith.constant 1 : index
    %c0_6 = arith.constant 0 : index
    %c0_7 = arith.constant 0 : index
    %12 = vector.load %arg2[%c1, %c0_6, %c0_7] : memref<3x128x128xbf16, #tpu.memory_space<vmem>>, vector<1x128x128xbf16>
    %13 = vector.shape_cast %12 : vector<1x128x128xbf16> to vector<128x128xbf16>
    %cst_8 = arith.constant dense<0.000000e+00> : vector<16x128xf32>
    %14 = tpu.matmul %11, %13, %cst_8 {dimension_numbers = #tpu.dot_dimension_numbers<[1], [0], [0], [1], [0, 0, 1, 1], [], []>} : vector<16x128xbf16>, vector<128x128xbf16>, vector<16x128xf32> -> vector<16x128xf32>
    %15 = arith.addf %9, %14 : vector<16x128xf32>
    %16 = vector.extract_strided_slice %4 {offsets = [2, 0], sizes = [16, 128], strides = [1, 1]} : vector<18x128xf32> to vector<16x128xf32>
    %17 = arith.truncf %16 : vector<16x128xf32> to vector<16x128xbf16>
    %c2 = arith.constant 2 : index
    %c0_9 = arith.constant 0 : index
    %c0_10 = arith.constant 0 : index
    %18 = vector.load %arg2[%c2, %c0_9, %c0_10] : memref<3x128x128xbf16, #tpu.memory_space<vmem>>, vector<1x128x128xbf16>
    %19 = vector.shape_cast %18 : vector<1x128x128xbf16> to vector<128x128xbf16>
    %cst_11 = arith.constant dense<0.000000e+00> : vector<16x128xf32>
    %20 = tpu.matmul %17, %19, %cst_11 {dimension_numbers = #tpu.dot_dimension_numbers<[1], [0], [0], [1], [0, 0, 1, 1], [], []>} : vector<16x128xbf16>, vector<128x128xbf16>, vector<16x128xf32> -> vector<16x128xf32>
    %21 = arith.addf %15, %20 : vector<16x128xf32>
    %c0_12 = arith.constant 0 : index
    %c0_13 = arith.constant 0 : index
    %22 = vector.load %arg3[%c0_12, %c0_13] : memref<1x128xf32, #tpu.memory_space<vmem>>, vector<1x128xf32>
    %23 = vector.broadcast %22 : vector<1x128xf32> to vector<16x128xf32>
    %24 = arith.addf %21, %23 : vector<16x128xf32>
    %cst_14 = arith.constant 0.000000e+00 : f32
    %25 = vector.broadcast %cst_14 : f32 to vector<16x128xf32>
    %26 = arith.maximumf %24, %25 : vector<16x128xf32>
    %cst_15 = arith.constant 0.000000e+00 : f32
    %27 = vector.broadcast %cst_15 : f32 to vector<1x128xf32>
    %28 = tpu.concatenate %27, %26, %27 in 0 : vector<1x128xf32>, vector<16x128xf32>, vector<1x128xf32> -> vector<18x128xf32>
    %29 = vector.extract_strided_slice %28 {offsets = [0, 0], sizes = [16, 128], strides = [1, 1]} : vector<18x128xf32> to vector<16x128xf32>
    %30 = arith.truncf %29 : vector<16x128xf32> to vector<16x128xbf16>
    %c0_16 = arith.constant 0 : index
    %c0_17 = arith.constant 0 : index
    %c0_18 = arith.constant 0 : index
    %31 = vector.load %arg4[%c0_16, %c0_17, %c0_18] : memref<3x128x128xbf16, #tpu.memory_space<vmem>>, vector<1x128x128xbf16>
    %32 = vector.shape_cast %31 : vector<1x128x128xbf16> to vector<128x128xbf16>
    %cst_19 = arith.constant dense<0.000000e+00> : vector<16x128xf32>
    %33 = tpu.matmul %30, %32, %cst_19 {dimension_numbers = #tpu.dot_dimension_numbers<[1], [0], [0], [1], [0, 0, 1, 1], [], []>} : vector<16x128xbf16>, vector<128x128xbf16>, vector<16x128xf32> -> vector<16x128xf32>
    %34 = vector.extract_strided_slice %28 {offsets = [1, 0], sizes = [16, 128], strides = [1, 1]} : vector<18x128xf32> to vector<16x128xf32>
    %35 = arith.truncf %34 : vector<16x128xf32> to vector<16x128xbf16>
    %c1_20 = arith.constant 1 : index
    %c0_21 = arith.constant 0 : index
    %c0_22 = arith.constant 0 : index
    %36 = vector.load %arg4[%c1_20, %c0_21, %c0_22] : memref<3x128x128xbf16, #tpu.memory_space<vmem>>, vector<1x128x128xbf16>
    %37 = vector.shape_cast %36 : vector<1x128x128xbf16> to vector<128x128xbf16>
    %cst_23 = arith.constant dense<0.000000e+00> : vector<16x128xf32>
    %38 = tpu.matmul %35, %37, %cst_23 {dimension_numbers = #tpu.dot_dimension_numbers<[1], [0], [0], [1], [0, 0, 1, 1], [], []>} : vector<16x128xbf16>, vector<128x128xbf16>, vector<16x128xf32> -> vector<16x128xf32>
    %39 = arith.addf %33, %38 : vector<16x128xf32>
    %40 = vector.extract_strided_slice %28 {offsets = [2, 0], sizes = [16, 128], strides = [1, 1]} : vector<18x128xf32> to vector<16x128xf32>
    %41 = arith.truncf %40 : vector<16x128xf32> to vector<16x128xbf16>
    %c2_24 = arith.constant 2 : index
    %c0_25 = arith.constant 0 : index
    %c0_26 = arith.constant 0 : index
    %42 = vector.load %arg4[%c2_24, %c0_25, %c0_26] : memref<3x128x128xbf16, #tpu.memory_space<vmem>>, vector<1x128x128xbf16>
    %43 = vector.shape_cast %42 : vector<1x128x128xbf16> to vector<128x128xbf16>
    %cst_27 = arith.constant dense<0.000000e+00> : vector<16x128xf32>
    %44 = tpu.matmul %41, %43, %cst_27 {dimension_numbers = #tpu.dot_dimension_numbers<[1], [0], [0], [1], [0, 0, 1, 1], [], []>} : vector<16x128xbf16>, vector<128x128xbf16>, vector<16x128xf32> -> vector<16x128xf32>
    %45 = arith.addf %39, %44 : vector<16x128xf32>
    %c0_28 = arith.constant 0 : index
    %c0_29 = arith.constant 0 : index
    %46 = vector.load %arg5[%c0_28, %c0_29] : memref<1x128xf32, #tpu.memory_space<vmem>>, vector<1x128xf32>
    %47 = vector.broadcast %46 : vector<1x128xf32> to vector<16x128xf32>
    %48 = arith.addf %45, %47 : vector<16x128xf32>
    %49 = arith.addf %48, %2 : vector<16x128xf32>
    %cst_30 = arith.constant 0.000000e+00 : f32
    %50 = vector.broadcast %cst_30 : f32 to vector<16x128xf32>
    %51 = arith.maximumf %49, %50 : vector<16x128xf32>
    %52 = arith.truncf %51 : vector<16x128xf32> to vector<16x128xbf16>
    %c0_31 = arith.constant 0 : index
    %c0_32 = arith.constant 0 : index
    %c0_33 = arith.constant 0 : index
    %53 = vector.load %arg6[%c0_31, %c0_32, %c0_33] : memref<1x16x128xbf16, #tpu.memory_space<vmem>>, vector<1x16x128xbf16>
    %54 = vector.shape_cast %53 : vector<1x16x128xbf16> to vector<16x128xbf16>
    %55 = vector.shape_cast %52 : vector<16x128xbf16> to vector<1x16x128xbf16>
    tpu.vector_store %arg6[%c0_31, %c0_32, %c0_33], %55 {strides = array<i32>} : memref<1x16x128xbf16, #tpu.memory_space<vmem>>, vector<1x16x128xbf16>,
    return
  }
  func.func @transform_0(%arg0: i32) -> (i32, i32, i32) {
    %c0_i32 = arith.constant 0 : i32
    %c0_i32_0 = arith.constant 0 : i32
    %c0_i32_1 = arith.constant 0 : i32
    return %arg0, %c0_i32, %c0_i32_0 : i32, i32, i32
  }
  func.func @transform_1(%arg0: i32) -> (i32, i32, i32) {
    %c0_i32 = arith.constant 0 : i32
    %c0_i32_0 = arith.constant 0 : i32
    %c0_i32_1 = arith.constant 0 : i32
    %c0_i32_2 = arith.constant 0 : i32
    return %c0_i32, %c0_i32_0, %c0_i32_1 : i32, i32, i32
  }
  func.func @transform_2(%arg0: i32) -> (i32, i32) {
    %c0_i32 = arith.constant 0 : i32
    %c0_i32_0 = arith.constant 0 : i32
    %c0_i32_1 = arith.constant 0 : i32
    return %c0_i32, %c0_i32_0 : i32, i32
  }
  func.func @transform_3(%arg0: i32) -> (i32, i32, i32) {
    %c0_i32 = arith.constant 0 : i32
    %c0_i32_0 = arith.constant 0 : i32
    %c0_i32_1 = arith.constant 0 : i32
    %c0_i32_2 = arith.constant 0 : i32
    return %c0_i32, %c0_i32_0, %c0_i32_1 : i32, i32, i32
  }
  func.func @transform_4(%arg0: i32) -> (i32, i32) {
    %c0_i32 = arith.constant 0 : i32
    %c0_i32_0 = arith.constant 0 : i32
    %c0_i32_1 = arith.constant 0 : i32
    return %c0_i32, %c0_i32_0 : i32, i32
  }
  func.func @transform_5(%arg0: i32) -> (i32, i32, i32) {
    %c0_i32 = arith.constant 0 : i32
    %c0_i32_0 = arith.constant 0 : i32
    %c0_i32_1 = arith.constant 0 : i32
    return %arg0, %c0_i32, %c0_i32_0 : i32, i32, i32
  }
}

module attributes {stable_mosaic.version = 11 : i64} {
  func.func @_conv_kernel(%arg0: i32, %arg1: memref<1x16x128xbf16, #tpu.memory_space<vmem>>, %arg2: memref<3x128x128xbf16, #tpu.memory_space<vmem>>, %arg3: memref<1x128xf32, #tpu.memory_space<vmem>>, %arg4: memref<1x8x128xbf16, #tpu.memory_space<vmem>>) attributes {dimension_semantics = [#tpu.dimension_semantics<parallel>], iteration_bounds = array<i64: 2>, scalar_prefetch = 0 : i64, scratch_operands = 0 : i64, tpu.core_type = #tpu.core_type<tc>, window_params = [{transform_indices = @transform_0, window_bounds = array<i64: 1, 16, 128>}, {pipeline_mode = #tpu.pipeline_mode<synchronous>, transform_indices = @transform_1, window_bounds = array<i64: 3, 128, 128>}, {pipeline_mode = #tpu.pipeline_mode<synchronous>, transform_indices = @transform_2, window_bounds = array<i64: 1, 128>}, {transform_indices = @transform_3, window_bounds = array<i64: 1, 8, 128>}]} {
    %c0 = arith.constant 0 : index
    %c0_0 = arith.constant 0 : index
    %c0_1 = arith.constant 0 : index
    %0 = vector.load %arg1[%c0, %c0_0, %c0_1] : memref<1x16x128xbf16, #tpu.memory_space<vmem>>, vector<1x16x128xbf16>
    %1 = vector.shape_cast %0 : vector<1x16x128xbf16> to vector<16x128xbf16>
    %2 = arith.extf %1 : vector<16x128xbf16> to vector<16x128xf32>
    %cst = arith.constant 0.000000e+00 : f32
    %3 = vector.broadcast %cst : f32 to vector<1x128xf32>
    %4 = tpu.concatenate %3, %2, %3 in 0 : vector<1x128xf32>, vector<16x128xf32>, vector<1x128xf32> -> vector<18x128xf32>
    %5 = tpu.iota {dimensions = array<i32: 0>} : vector<8x18xi32>
    %6 = tpu.iota {dimensions = array<i32: 1>} : vector<8x18xi32>
    %c2_i32 = arith.constant 2 : i32
    %7 = vector.broadcast %c2_i32 : i32 to vector<8x18xi32>
    %8 = arith.muli %7, %5 : vector<8x18xi32>
    %c0_i32 = arith.constant 0 : i32
    %9 = vector.broadcast %c0_i32 : i32 to vector<8x18xi32>
    %10 = arith.addi %8, %9 : vector<8x18xi32>
    %11 = arith.cmpi eq, %6, %10 : vector<8x18xi32>
    %12 = arith.extui %11 : vector<8x18xi1> to vector<8x18xi32>
    %13 = arith.sitofp %12 : vector<8x18xi32> to vector<8x18xf32>
    %cst_2 = arith.constant dense<0.000000e+00> : vector<8x128xf32>
    %14 = tpu.matmul %13, %4, %cst_2 {dimension_numbers = #tpu.dot_dimension_numbers<[1], [0], [0], [1], [0, 0, 1, 1], [], []>} : vector<8x18xf32>, vector<18x128xf32>, vector<8x128xf32> -> vector<8x128xf32>
    %15 = arith.truncf %14 : vector<8x128xf32> to vector<8x128xbf16>
    %c0_3 = arith.constant 0 : index
    %c0_4 = arith.constant 0 : index
    %c0_5 = arith.constant 0 : index
    %16 = vector.load %arg2[%c0_3, %c0_4, %c0_5] : memref<3x128x128xbf16, #tpu.memory_space<vmem>>, vector<1x128x128xbf16>
    %17 = vector.shape_cast %16 : vector<1x128x128xbf16> to vector<128x128xbf16>
    %cst_6 = arith.constant dense<0.000000e+00> : vector<8x128xf32>
    %18 = tpu.matmul %15, %17, %cst_6 {dimension_numbers = #tpu.dot_dimension_numbers<[1], [0], [0], [1], [0, 0, 1, 1], [], []>} : vector<8x128xbf16>, vector<128x128xbf16>, vector<8x128xf32> -> vector<8x128xf32>
    %19 = tpu.iota {dimensions = array<i32: 0>} : vector<8x18xi32>
    %20 = tpu.iota {dimensions = array<i32: 1>} : vector<8x18xi32>
    %c2_i32_7 = arith.constant 2 : i32
    %21 = vector.broadcast %c2_i32_7 : i32 to vector<8x18xi32>
    %22 = arith.muli %21, %19 : vector<8x18xi32>
    %c1_i32 = arith.constant 1 : i32
    %23 = vector.broadcast %c1_i32 : i32 to vector<8x18xi32>
    %24 = arith.addi %22, %23 : vector<8x18xi32>
    %25 = arith.cmpi eq, %20, %24 : vector<8x18xi32>
    %26 = arith.extui %25 : vector<8x18xi1> to vector<8x18xi32>
    %27 = arith.sitofp %26 : vector<8x18xi32> to vector<8x18xf32>
    %cst_8 = arith.constant dense<0.000000e+00> : vector<8x128xf32>
    %28 = tpu.matmul %27, %4, %cst_8 {dimension_numbers = #tpu.dot_dimension_numbers<[1], [0], [0], [1], [0, 0, 1, 1], [], []>} : vector<8x18xf32>, vector<18x128xf32>, vector<8x128xf32> -> vector<8x128xf32>
    %29 = arith.truncf %28 : vector<8x128xf32> to vector<8x128xbf16>
    %c1 = arith.constant 1 : index
    %c0_9 = arith.constant 0 : index
    %c0_10 = arith.constant 0 : index
    %30 = vector.load %arg2[%c1, %c0_9, %c0_10] : memref<3x128x128xbf16, #tpu.memory_space<vmem>>, vector<1x128x128xbf16>
    %31 = vector.shape_cast %30 : vector<1x128x128xbf16> to vector<128x128xbf16>
    %cst_11 = arith.constant dense<0.000000e+00> : vector<8x128xf32>
    %32 = tpu.matmul %29, %31, %cst_11 {dimension_numbers = #tpu.dot_dimension_numbers<[1], [0], [0], [1], [0, 0, 1, 1], [], []>} : vector<8x128xbf16>, vector<128x128xbf16>, vector<8x128xf32> -> vector<8x128xf32>
    %33 = arith.addf %18, %32 : vector<8x128xf32>
    %34 = tpu.iota {dimensions = array<i32: 0>} : vector<8x18xi32>
    %35 = tpu.iota {dimensions = array<i32: 1>} : vector<8x18xi32>
    %c2_i32_12 = arith.constant 2 : i32
    %36 = vector.broadcast %c2_i32_12 : i32 to vector<8x18xi32>
    %37 = arith.muli %36, %34 : vector<8x18xi32>
    %c2_i32_13 = arith.constant 2 : i32
    %38 = vector.broadcast %c2_i32_13 : i32 to vector<8x18xi32>
    %39 = arith.addi %37, %38 : vector<8x18xi32>
    %40 = arith.cmpi eq, %35, %39 : vector<8x18xi32>
    %41 = arith.extui %40 : vector<8x18xi1> to vector<8x18xi32>
    %42 = arith.sitofp %41 : vector<8x18xi32> to vector<8x18xf32>
    %cst_14 = arith.constant dense<0.000000e+00> : vector<8x128xf32>
    %43 = tpu.matmul %42, %4, %cst_14 {dimension_numbers = #tpu.dot_dimension_numbers<[1], [0], [0], [1], [0, 0, 1, 1], [], []>} : vector<8x18xf32>, vector<18x128xf32>, vector<8x128xf32> -> vector<8x128xf32>
    %44 = arith.truncf %43 : vector<8x128xf32> to vector<8x128xbf16>
    %c2 = arith.constant 2 : index
    %c0_15 = arith.constant 0 : index
    %c0_16 = arith.constant 0 : index
    %45 = vector.load %arg2[%c2, %c0_15, %c0_16] : memref<3x128x128xbf16, #tpu.memory_space<vmem>>, vector<1x128x128xbf16>
    %46 = vector.shape_cast %45 : vector<1x128x128xbf16> to vector<128x128xbf16>
    %cst_17 = arith.constant dense<0.000000e+00> : vector<8x128xf32>
    %47 = tpu.matmul %44, %46, %cst_17 {dimension_numbers = #tpu.dot_dimension_numbers<[1], [0], [0], [1], [0, 0, 1, 1], [], []>} : vector<8x128xbf16>, vector<128x128xbf16>, vector<8x128xf32> -> vector<8x128xf32>
    %48 = arith.addf %33, %47 : vector<8x128xf32>
    %c0_18 = arith.constant 0 : index
    %c0_19 = arith.constant 0 : index
    %49 = vector.load %arg3[%c0_18, %c0_19] : memref<1x128xf32, #tpu.memory_space<vmem>>, vector<1x128xf32>
    %50 = vector.broadcast %49 : vector<1x128xf32> to vector<8x128xf32>
    %51 = arith.addf %48, %50 : vector<8x128xf32>
    %cst_20 = arith.constant 0.000000e+00 : f32
    %52 = vector.broadcast %cst_20 : f32 to vector<8x128xf32>
    %53 = arith.maximumf %51, %52 : vector<8x128xf32>
    %54 = arith.truncf %53 : vector<8x128xf32> to vector<8x128xbf16>
    %c0_21 = arith.constant 0 : index
    %c0_22 = arith.constant 0 : index
    %c0_23 = arith.constant 0 : index
    %55 = vector.load %arg4[%c0_21, %c0_22, %c0_23] : memref<1x8x128xbf16, #tpu.memory_space<vmem>>, vector<1x8x128xbf16>
    %56 = vector.shape_cast %55 : vector<1x8x128xbf16> to vector<8x128xbf16>
    %57 = vector.shape_cast %54 : vector<8x128xbf16> to vector<1x8x128xbf16>
    tpu.vector_store %arg4[%c0_21, %c0_22, %c0_23], %57 {strides = array<i32>} : memref<1x8x128xbf16, #tpu.memory_space<vmem>>, vector<1x8x128xbf16>,
    return
  }
  func.func @transform_0(%arg0: i32) -> (i32, i32, i32) {
    %c0_i32 = arith.constant 0 : i32
    %c0_i32_0 = arith.constant 0 : i32
    %c0_i32_1 = arith.constant 0 : i32
    return %arg0, %c0_i32, %c0_i32_0 : i32, i32, i32
  }
  func.func @transform_1(%arg0: i32) -> (i32, i32, i32) {
    %c0_i32 = arith.constant 0 : i32
    %c0_i32_0 = arith.constant 0 : i32
    %c0_i32_1 = arith.constant 0 : i32
    %c0_i32_2 = arith.constant 0 : i32
    return %c0_i32, %c0_i32_0, %c0_i32_1 : i32, i32, i32
  }
  func.func @transform_2(%arg0: i32) -> (i32, i32) {
    %c0_i32 = arith.constant 0 : i32
    %c0_i32_0 = arith.constant 0 : i32
    %c0_i32_1 = arith.constant 0 : i32
    return %c0_i32, %c0_i32_0 : i32, i32
  }
  func.func @transform_3(%arg0: i32) -> (i32, i32, i32) {
    %c0_i32 = arith.constant 0 : i32
    %c0_i32_0 = arith.constant 0 : i32
    %c0_i32_1 = arith.constant 0 : i32
    return %arg0, %c0_i32, %c0_i32_0 : i32, i32, i32
  }
}

module attributes {stable_mosaic.version = 11 : i64} {
  func.func @_basic_block_kernel(%arg0: i32, %arg1: memref<1x8x128xbf16, #tpu.memory_space<vmem>>, %arg2: memref<3x128x128xbf16, #tpu.memory_space<vmem>>, %arg3: memref<1x128xf32, #tpu.memory_space<vmem>>, %arg4: memref<3x128x128xbf16, #tpu.memory_space<vmem>>, %arg5: memref<1x128xf32, #tpu.memory_space<vmem>>, %arg6: memref<1x8x128xbf16, #tpu.memory_space<vmem>>) attributes {dimension_semantics = [#tpu.dimension_semantics<parallel>], iteration_bounds = array<i64: 2>, scalar_prefetch = 0 : i64, scratch_operands = 0 : i64, tpu.core_type = #tpu.core_type<tc>, window_params = [{transform_indices = @transform_0, window_bounds = array<i64: 1, 8, 128>}, {pipeline_mode = #tpu.pipeline_mode<synchronous>, transform_indices = @transform_1, window_bounds = array<i64: 3, 128, 128>}, {pipeline_mode = #tpu.pipeline_mode<synchronous>, transform_indices = @transform_2, window_bounds = array<i64: 1, 128>}, {pipeline_mode = #tpu.pipeline_mode<synchronous>, transform_indices = @transform_3, window_bounds = array<i64: 3, 128, 128>}, {pipeline_mode = #tpu.pipeline_mode<synchronous>, transform_indices = @transform_4, window_bounds = array<i64: 1, 128>}, {transform_indices = @transform_5, window_bounds = array<i64: 1, 8, 128>}]} {
    %c0 = arith.constant 0 : index
    %c0_0 = arith.constant 0 : index
    %c0_1 = arith.constant 0 : index
    %0 = vector.load %arg1[%c0, %c0_0, %c0_1] : memref<1x8x128xbf16, #tpu.memory_space<vmem>>, vector<1x8x128xbf16>
    %1 = vector.shape_cast %0 : vector<1x8x128xbf16> to vector<8x128xbf16>
    %2 = arith.extf %1 : vector<8x128xbf16> to vector<8x128xf32>
    %cst = arith.constant 0.000000e+00 : f32
    %3 = vector.broadcast %cst : f32 to vector<1x128xf32>
    %4 = tpu.concatenate %3, %2, %3 in 0 : vector<1x128xf32>, vector<8x128xf32>, vector<1x128xf32> -> vector<10x128xf32>
    %5 = vector.extract_strided_slice %4 {offsets = [0, 0], sizes = [8, 128], strides = [1, 1]} : vector<10x128xf32> to vector<8x128xf32>
    %6 = arith.truncf %5 : vector<8x128xf32> to vector<8x128xbf16>
    %c0_2 = arith.constant 0 : index
    %c0_3 = arith.constant 0 : index
    %c0_4 = arith.constant 0 : index
    %7 = vector.load %arg2[%c0_2, %c0_3, %c0_4] : memref<3x128x128xbf16, #tpu.memory_space<vmem>>, vector<1x128x128xbf16>
    %8 = vector.shape_cast %7 : vector<1x128x128xbf16> to vector<128x128xbf16>
    %cst_5 = arith.constant dense<0.000000e+00> : vector<8x128xf32>
    %9 = tpu.matmul %6, %8, %cst_5 {dimension_numbers = #tpu.dot_dimension_numbers<[1], [0], [0], [1], [0, 0, 1, 1], [], []>} : vector<8x128xbf16>, vector<128x128xbf16>, vector<8x128xf32> -> vector<8x128xf32>
    %10 = vector.extract_strided_slice %4 {offsets = [1, 0], sizes = [8, 128], strides = [1, 1]} : vector<10x128xf32> to vector<8x128xf32>
    %11 = arith.truncf %10 : vector<8x128xf32> to vector<8x128xbf16>
    %c1 = arith.constant 1 : index
    %c0_6 = arith.constant 0 : index
    %c0_7 = arith.constant 0 : index
    %12 = vector.load %arg2[%c1, %c0_6, %c0_7] : memref<3x128x128xbf16, #tpu.memory_space<vmem>>, vector<1x128x128xbf16>
    %13 = vector.shape_cast %12 : vector<1x128x128xbf16> to vector<128x128xbf16>
    %cst_8 = arith.constant dense<0.000000e+00> : vector<8x128xf32>
    %14 = tpu.matmul %11, %13, %cst_8 {dimension_numbers = #tpu.dot_dimension_numbers<[1], [0], [0], [1], [0, 0, 1, 1], [], []>} : vector<8x128xbf16>, vector<128x128xbf16>, vector<8x128xf32> -> vector<8x128xf32>
    %15 = arith.addf %9, %14 : vector<8x128xf32>
    %16 = vector.extract_strided_slice %4 {offsets = [2, 0], sizes = [8, 128], strides = [1, 1]} : vector<10x128xf32> to vector<8x128xf32>
    %17 = arith.truncf %16 : vector<8x128xf32> to vector<8x128xbf16>
    %c2 = arith.constant 2 : index
    %c0_9 = arith.constant 0 : index
    %c0_10 = arith.constant 0 : index
    %18 = vector.load %arg2[%c2, %c0_9, %c0_10] : memref<3x128x128xbf16, #tpu.memory_space<vmem>>, vector<1x128x128xbf16>
    %19 = vector.shape_cast %18 : vector<1x128x128xbf16> to vector<128x128xbf16>
    %cst_11 = arith.constant dense<0.000000e+00> : vector<8x128xf32>
    %20 = tpu.matmul %17, %19, %cst_11 {dimension_numbers = #tpu.dot_dimension_numbers<[1], [0], [0], [1], [0, 0, 1, 1], [], []>} : vector<8x128xbf16>, vector<128x128xbf16>, vector<8x128xf32> -> vector<8x128xf32>
    %21 = arith.addf %15, %20 : vector<8x128xf32>
    %c0_12 = arith.constant 0 : index
    %c0_13 = arith.constant 0 : index
    %22 = vector.load %arg3[%c0_12, %c0_13] : memref<1x128xf32, #tpu.memory_space<vmem>>, vector<1x128xf32>
    %23 = vector.broadcast %22 : vector<1x128xf32> to vector<8x128xf32>
    %24 = arith.addf %21, %23 : vector<8x128xf32>
    %cst_14 = arith.constant 0.000000e+00 : f32
    %25 = vector.broadcast %cst_14 : f32 to vector<8x128xf32>
    %26 = arith.maximumf %24, %25 : vector<8x128xf32>
    %cst_15 = arith.constant 0.000000e+00 : f32
    %27 = vector.broadcast %cst_15 : f32 to vector<1x128xf32>
    %28 = tpu.concatenate %27, %26, %27 in 0 : vector<1x128xf32>, vector<8x128xf32>, vector<1x128xf32> -> vector<10x128xf32>
    %29 = vector.extract_strided_slice %28 {offsets = [0, 0], sizes = [8, 128], strides = [1, 1]} : vector<10x128xf32> to vector<8x128xf32>
    %30 = arith.truncf %29 : vector<8x128xf32> to vector<8x128xbf16>
    %c0_16 = arith.constant 0 : index
    %c0_17 = arith.constant 0 : index
    %c0_18 = arith.constant 0 : index
    %31 = vector.load %arg4[%c0_16, %c0_17, %c0_18] : memref<3x128x128xbf16, #tpu.memory_space<vmem>>, vector<1x128x128xbf16>
    %32 = vector.shape_cast %31 : vector<1x128x128xbf16> to vector<128x128xbf16>
    %cst_19 = arith.constant dense<0.000000e+00> : vector<8x128xf32>
    %33 = tpu.matmul %30, %32, %cst_19 {dimension_numbers = #tpu.dot_dimension_numbers<[1], [0], [0], [1], [0, 0, 1, 1], [], []>} : vector<8x128xbf16>, vector<128x128xbf16>, vector<8x128xf32> -> vector<8x128xf32>
    %34 = vector.extract_strided_slice %28 {offsets = [1, 0], sizes = [8, 128], strides = [1, 1]} : vector<10x128xf32> to vector<8x128xf32>
    %35 = arith.truncf %34 : vector<8x128xf32> to vector<8x128xbf16>
    %c1_20 = arith.constant 1 : index
    %c0_21 = arith.constant 0 : index
    %c0_22 = arith.constant 0 : index
    %36 = vector.load %arg4[%c1_20, %c0_21, %c0_22] : memref<3x128x128xbf16, #tpu.memory_space<vmem>>, vector<1x128x128xbf16>
    %37 = vector.shape_cast %36 : vector<1x128x128xbf16> to vector<128x128xbf16>
    %cst_23 = arith.constant dense<0.000000e+00> : vector<8x128xf32>
    %38 = tpu.matmul %35, %37, %cst_23 {dimension_numbers = #tpu.dot_dimension_numbers<[1], [0], [0], [1], [0, 0, 1, 1], [], []>} : vector<8x128xbf16>, vector<128x128xbf16>, vector<8x128xf32> -> vector<8x128xf32>
    %39 = arith.addf %33, %38 : vector<8x128xf32>
    %40 = vector.extract_strided_slice %28 {offsets = [2, 0], sizes = [8, 128], strides = [1, 1]} : vector<10x128xf32> to vector<8x128xf32>
    %41 = arith.truncf %40 : vector<8x128xf32> to vector<8x128xbf16>
    %c2_24 = arith.constant 2 : index
    %c0_25 = arith.constant 0 : index
    %c0_26 = arith.constant 0 : index
    %42 = vector.load %arg4[%c2_24, %c0_25, %c0_26] : memref<3x128x128xbf16, #tpu.memory_space<vmem>>, vector<1x128x128xbf16>
    %43 = vector.shape_cast %42 : vector<1x128x128xbf16> to vector<128x128xbf16>
    %cst_27 = arith.constant dense<0.000000e+00> : vector<8x128xf32>
    %44 = tpu.matmul %41, %43, %cst_27 {dimension_numbers = #tpu.dot_dimension_numbers<[1], [0], [0], [1], [0, 0, 1, 1], [], []>} : vector<8x128xbf16>, vector<128x128xbf16>, vector<8x128xf32> -> vector<8x128xf32>
    %45 = arith.addf %39, %44 : vector<8x128xf32>
    %c0_28 = arith.constant 0 : index
    %c0_29 = arith.constant 0 : index
    %46 = vector.load %arg5[%c0_28, %c0_29] : memref<1x128xf32, #tpu.memory_space<vmem>>, vector<1x128xf32>
    %47 = vector.broadcast %46 : vector<1x128xf32> to vector<8x128xf32>
    %48 = arith.addf %45, %47 : vector<8x128xf32>
    %49 = arith.addf %48, %2 : vector<8x128xf32>
    %cst_30 = arith.constant 0.000000e+00 : f32
    %50 = vector.broadcast %cst_30 : f32 to vector<8x128xf32>
    %51 = arith.maximumf %49, %50 : vector<8x128xf32>
    %52 = arith.truncf %51 : vector<8x128xf32> to vector<8x128xbf16>
    %c0_31 = arith.constant 0 : index
    %c0_32 = arith.constant 0 : index
    %c0_33 = arith.constant 0 : index
    %53 = vector.load %arg6[%c0_31, %c0_32, %c0_33] : memref<1x8x128xbf16, #tpu.memory_space<vmem>>, vector<1x8x128xbf16>
    %54 = vector.shape_cast %53 : vector<1x8x128xbf16> to vector<8x128xbf16>
    %55 = vector.shape_cast %52 : vector<8x128xbf16> to vector<1x8x128xbf16>
    tpu.vector_store %arg6[%c0_31, %c0_32, %c0_33], %55 {strides = array<i32>} : memref<1x8x128xbf16, #tpu.memory_space<vmem>>, vector<1x8x128xbf16>,
    return
  }
  func.func @transform_0(%arg0: i32) -> (i32, i32, i32) {
    %c0_i32 = arith.constant 0 : i32
    %c0_i32_0 = arith.constant 0 : i32
    %c0_i32_1 = arith.constant 0 : i32
    return %arg0, %c0_i32, %c0_i32_0 : i32, i32, i32
  }
  func.func @transform_1(%arg0: i32) -> (i32, i32, i32) {
    %c0_i32 = arith.constant 0 : i32
    %c0_i32_0 = arith.constant 0 : i32
    %c0_i32_1 = arith.constant 0 : i32
    %c0_i32_2 = arith.constant 0 : i32
    return %c0_i32, %c0_i32_0, %c0_i32_1 : i32, i32, i32
  }
  func.func @transform_2(%arg0: i32) -> (i32, i32) {
    %c0_i32 = arith.constant 0 : i32
    %c0_i32_0 = arith.constant 0 : i32
    %c0_i32_1 = arith.constant 0 : i32
    return %c0_i32, %c0_i32_0 : i32, i32
  }
  func.func @transform_3(%arg0: i32) -> (i32, i32, i32) {
    %c0_i32 = arith.constant 0 : i32
    %c0_i32_0 = arith.constant 0 : i32
    %c0_i32_1 = arith.constant 0 : i32
    %c0_i32_2 = arith.constant 0 : i32
    return %c0_i32, %c0_i32_0, %c0_i32_1 : i32, i32, i32
  }
  func.func @transform_4(%arg0: i32) -> (i32, i32) {
    %c0_i32 = arith.constant 0 : i32
    %c0_i32_0 = arith.constant 0 : i32
    %c0_i32_1 = arith.constant 0 : i32
    return %c0_i32, %c0_i32_0 : i32, i32
  }
  func.func @transform_5(%arg0: i32) -> (i32, i32, i32) {
    %c0_i32 = arith.constant 0 : i32
    %c0_i32_0 = arith.constant 0 : i32
    %c0_i32_1 = arith.constant 0 : i32
    return %arg0, %c0_i32, %c0_i32_0 : i32, i32, i32
  }
}

module attributes {stable_mosaic.version = 11 : i64} {
  func.func @_fuse_kernel(%arg0: i32, %arg1: memref<1x16x128xbf16, #tpu.memory_space<vmem>>, %arg2: memref<1x8x128xbf16, #tpu.memory_space<vmem>>, %arg3: memref<1x128x128xbf16, #tpu.memory_space<vmem>>, %arg4: memref<16x8xf32, #tpu.memory_space<vmem>>, %arg5: memref<1x128xf32, #tpu.memory_space<vmem>>, %arg6: memref<1x16x128xbf16, #tpu.memory_space<vmem>>) attributes {dimension_semantics = [#tpu.dimension_semantics<parallel>], iteration_bounds = array<i64: 2>, scalar_prefetch = 0 : i64, scratch_operands = 0 : i64, tpu.core_type = #tpu.core_type<tc>, window_params = [{transform_indices = @transform_0, window_bounds = array<i64: 1, 16, 128>}, {transform_indices = @transform_1, window_bounds = array<i64: 1, 8, 128>}, {pipeline_mode = #tpu.pipeline_mode<synchronous>, transform_indices = @transform_2, window_bounds = array<i64: 1, 128, 128>}, {pipeline_mode = #tpu.pipeline_mode<synchronous>, transform_indices = @transform_3, window_bounds = array<i64: 16, 8>}, {pipeline_mode = #tpu.pipeline_mode<synchronous>, transform_indices = @transform_4, window_bounds = array<i64: 1, 128>}, {transform_indices = @transform_5, window_bounds = array<i64: 1, 16, 128>}]} {
    %c0 = arith.constant 0 : index
    %c0_0 = arith.constant 0 : index
    %c0_1 = arith.constant 0 : index
    %0 = vector.load %arg1[%c0, %c0_0, %c0_1] : memref<1x16x128xbf16, #tpu.memory_space<vmem>>, vector<1x16x128xbf16>
    %1 = vector.shape_cast %0 : vector<1x16x128xbf16> to vector<16x128xbf16>
    %2 = arith.extf %1 : vector<16x128xbf16> to vector<16x128xf32>
    %c0_2 = arith.constant 0 : index
    %c0_3 = arith.constant 0 : index
    %c0_4 = arith.constant 0 : index
    %3 = vector.load %arg2[%c0_2, %c0_3, %c0_4] : memref<1x8x128xbf16, #tpu.memory_space<vmem>>, vector<1x8x128xbf16>
    %4 = vector.shape_cast %3 : vector<1x8x128xbf16> to vector<8x128xbf16>
    %c0_5 = arith.constant 0 : index
    %c0_6 = arith.constant 0 : index
    %c0_7 = arith.constant 0 : index
    %5 = vector.load %arg3[%c0_5, %c0_6, %c0_7] : memref<1x128x128xbf16, #tpu.memory_space<vmem>>, vector<1x128x128xbf16>
    %6 = vector.shape_cast %5 : vector<1x128x128xbf16> to vector<128x128xbf16>
    %cst = arith.constant dense<0.000000e+00> : vector<8x128xf32>
    %7 = tpu.matmul %4, %6, %cst {dimension_numbers = #tpu.dot_dimension_numbers<[1], [0], [0], [1], [0, 0, 1, 1], [], []>} : vector<8x128xbf16>, vector<128x128xbf16>, vector<8x128xf32> -> vector<8x128xf32>
    %c0_8 = arith.constant 0 : index
    %c0_9 = arith.constant 0 : index
    %8 = vector.load %arg4[%c0_8, %c0_9] : memref<16x8xf32, #tpu.memory_space<vmem>>, vector<16x8xf32>
    %cst_10 = arith.constant dense<0.000000e+00> : vector<16x128xf32>
    %9 = tpu.matmul %8, %7, %cst_10 {dimension_numbers = #tpu.dot_dimension_numbers<[1], [0], [0], [1], [0, 0, 1, 1], [], []>} : vector<16x8xf32>, vector<8x128xf32>, vector<16x128xf32> -> vector<16x128xf32>
    %c0_11 = arith.constant 0 : index
    %c0_12 = arith.constant 0 : index
    %10 = vector.load %arg5[%c0_11, %c0_12] : memref<1x128xf32, #tpu.memory_space<vmem>>, vector<1x128xf32>
    %11 = vector.broadcast %10 : vector<1x128xf32> to vector<16x128xf32>
    %12 = arith.addf %9, %11 : vector<16x128xf32>
    %13 = arith.addf %2, %12 : vector<16x128xf32>
    %cst_13 = arith.constant 0.000000e+00 : f32
    %14 = vector.broadcast %cst_13 : f32 to vector<16x128xf32>
    %15 = arith.maximumf %13, %14 : vector<16x128xf32>
    %16 = arith.truncf %15 : vector<16x128xf32> to vector<16x128xbf16>
    %c0_14 = arith.constant 0 : index
    %c0_15 = arith.constant 0 : index
    %c0_16 = arith.constant 0 : index
    %17 = vector.load %arg6[%c0_14, %c0_15, %c0_16] : memref<1x16x128xbf16, #tpu.memory_space<vmem>>, vector<1x16x128xbf16>
    %18 = vector.shape_cast %17 : vector<1x16x128xbf16> to vector<16x128xbf16>
    %19 = vector.shape_cast %16 : vector<16x128xbf16> to vector<1x16x128xbf16>
    tpu.vector_store %arg6[%c0_14, %c0_15, %c0_16], %19 {strides = array<i32>} : memref<1x16x128xbf16, #tpu.memory_space<vmem>>, vector<1x16x128xbf16>,
    return
  }
  func.func @transform_0(%arg0: i32) -> (i32, i32, i32) {
    %c0_i32 = arith.constant 0 : i32
    %c0_i32_0 = arith.constant 0 : i32
    %c0_i32_1 = arith.constant 0 : i32
    return %arg0, %c0_i32, %c0_i32_0 : i32, i32, i32
  }
  func.func @transform_1(%arg0: i32) -> (i32, i32, i32) {
    %c0_i32 = arith.constant 0 : i32
    %c0_i32_0 = arith.constant 0 : i32
    %c0_i32_1 = arith.constant 0 : i32
    return %arg0, %c0_i32, %c0_i32_0 : i32, i32, i32
  }
  func.func @transform_2(%arg0: i32) -> (i32, i32, i32) {
    %c0_i32 = arith.constant 0 : i32
    %c0_i32_0 = arith.constant 0 : i32
    %c0_i32_1 = arith.constant 0 : i32
    %c0_i32_2 = arith.constant 0 : i32
    return %c0_i32, %c0_i32_0, %c0_i32_1 : i32, i32, i32
  }
  func.func @transform_3(%arg0: i32) -> (i32, i32) {
    %c0_i32 = arith.constant 0 : i32
    %c0_i32_0 = arith.constant 0 : i32
    %c0_i32_1 = arith.constant 0 : i32
    return %c0_i32, %c0_i32_0 : i32, i32
  }
  func.func @transform_4(%arg0: i32) -> (i32, i32) {
    %c0_i32 = arith.constant 0 : i32
    %c0_i32_0 = arith.constant 0 : i32
    %c0_i32_1 = arith.constant 0 : i32
    return %c0_i32, %c0_i32_0 : i32, i32
  }
  func.func @transform_5(%arg0: i32) -> (i32, i32, i32) {
    %c0_i32 = arith.constant 0 : i32
    %c0_i32_0 = arith.constant 0 : i32
    %c0_i32_1 = arith.constant 0 : i32
    return %arg0, %c0_i32, %c0_i32_0 : i32, i32, i32
  }
}

module attributes {stable_mosaic.version = 11 : i64} {
  func.func @_fuse_kernel(%arg0: i32, %arg1: memref<1x16x128xbf16, #tpu.memory_space<vmem>>, %arg2: memref<3x128x128xbf16, #tpu.memory_space<vmem>>, %arg3: memref<1x128xf32, #tpu.memory_space<vmem>>, %arg4: memref<1x8x128xbf16, #tpu.memory_space<vmem>>, %arg5: memref<1x8x128xbf16, #tpu.memory_space<vmem>>) attributes {dimension_semantics = [#tpu.dimension_semantics<parallel>], iteration_bounds = array<i64: 2>, scalar_prefetch = 0 : i64, scratch_operands = 0 : i64, tpu.core_type = #tpu.core_type<tc>, window_params = [{transform_indices = @transform_0, window_bounds = array<i64: 1, 16, 128>}, {pipeline_mode = #tpu.pipeline_mode<synchronous>, transform_indices = @transform_1, window_bounds = array<i64: 3, 128, 128>}, {pipeline_mode = #tpu.pipeline_mode<synchronous>, transform_indices = @transform_2, window_bounds = array<i64: 1, 128>}, {transform_indices = @transform_3, window_bounds = array<i64: 1, 8, 128>}, {transform_indices = @transform_4, window_bounds = array<i64: 1, 8, 128>}]} {
    %c0 = arith.constant 0 : index
    %c0_0 = arith.constant 0 : index
    %c0_1 = arith.constant 0 : index
    %0 = vector.load %arg1[%c0, %c0_0, %c0_1] : memref<1x16x128xbf16, #tpu.memory_space<vmem>>, vector<1x16x128xbf16>
    %1 = vector.shape_cast %0 : vector<1x16x128xbf16> to vector<16x128xbf16>
    %2 = arith.extf %1 : vector<16x128xbf16> to vector<16x128xf32>
    %cst = arith.constant 0.000000e+00 : f32
    %3 = vector.broadcast %cst : f32 to vector<1x128xf32>
    %4 = tpu.concatenate %3, %2, %3 in 0 : vector<1x128xf32>, vector<16x128xf32>, vector<1x128xf32> -> vector<18x128xf32>
    %5 = tpu.iota {dimensions = array<i32: 0>} : vector<8x18xi32>
    %6 = tpu.iota {dimensions = array<i32: 1>} : vector<8x18xi32>
    %c2_i32 = arith.constant 2 : i32
    %7 = vector.broadcast %c2_i32 : i32 to vector<8x18xi32>
    %8 = arith.muli %7, %5 : vector<8x18xi32>
    %c0_i32 = arith.constant 0 : i32
    %9 = vector.broadcast %c0_i32 : i32 to vector<8x18xi32>
    %10 = arith.addi %8, %9 : vector<8x18xi32>
    %11 = arith.cmpi eq, %6, %10 : vector<8x18xi32>
    %12 = arith.extui %11 : vector<8x18xi1> to vector<8x18xi32>
    %13 = arith.sitofp %12 : vector<8x18xi32> to vector<8x18xf32>
    %cst_2 = arith.constant dense<0.000000e+00> : vector<8x128xf32>
    %14 = tpu.matmul %13, %4, %cst_2 {dimension_numbers = #tpu.dot_dimension_numbers<[1], [0], [0], [1], [0, 0, 1, 1], [], []>} : vector<8x18xf32>, vector<18x128xf32>, vector<8x128xf32> -> vector<8x128xf32>
    %15 = arith.truncf %14 : vector<8x128xf32> to vector<8x128xbf16>
    %c0_3 = arith.constant 0 : index
    %c0_4 = arith.constant 0 : index
    %c0_5 = arith.constant 0 : index
    %16 = vector.load %arg2[%c0_3, %c0_4, %c0_5] : memref<3x128x128xbf16, #tpu.memory_space<vmem>>, vector<1x128x128xbf16>
    %17 = vector.shape_cast %16 : vector<1x128x128xbf16> to vector<128x128xbf16>
    %cst_6 = arith.constant dense<0.000000e+00> : vector<8x128xf32>
    %18 = tpu.matmul %15, %17, %cst_6 {dimension_numbers = #tpu.dot_dimension_numbers<[1], [0], [0], [1], [0, 0, 1, 1], [], []>} : vector<8x128xbf16>, vector<128x128xbf16>, vector<8x128xf32> -> vector<8x128xf32>
    %19 = tpu.iota {dimensions = array<i32: 0>} : vector<8x18xi32>
    %20 = tpu.iota {dimensions = array<i32: 1>} : vector<8x18xi32>
    %c2_i32_7 = arith.constant 2 : i32
    %21 = vector.broadcast %c2_i32_7 : i32 to vector<8x18xi32>
    %22 = arith.muli %21, %19 : vector<8x18xi32>
    %c1_i32 = arith.constant 1 : i32
    %23 = vector.broadcast %c1_i32 : i32 to vector<8x18xi32>
    %24 = arith.addi %22, %23 : vector<8x18xi32>
    %25 = arith.cmpi eq, %20, %24 : vector<8x18xi32>
    %26 = arith.extui %25 : vector<8x18xi1> to vector<8x18xi32>
    %27 = arith.sitofp %26 : vector<8x18xi32> to vector<8x18xf32>
    %cst_8 = arith.constant dense<0.000000e+00> : vector<8x128xf32>
    %28 = tpu.matmul %27, %4, %cst_8 {dimension_numbers = #tpu.dot_dimension_numbers<[1], [0], [0], [1], [0, 0, 1, 1], [], []>} : vector<8x18xf32>, vector<18x128xf32>, vector<8x128xf32> -> vector<8x128xf32>
    %29 = arith.truncf %28 : vector<8x128xf32> to vector<8x128xbf16>
    %c1 = arith.constant 1 : index
    %c0_9 = arith.constant 0 : index
    %c0_10 = arith.constant 0 : index
    %30 = vector.load %arg2[%c1, %c0_9, %c0_10] : memref<3x128x128xbf16, #tpu.memory_space<vmem>>, vector<1x128x128xbf16>
    %31 = vector.shape_cast %30 : vector<1x128x128xbf16> to vector<128x128xbf16>
    %cst_11 = arith.constant dense<0.000000e+00> : vector<8x128xf32>
    %32 = tpu.matmul %29, %31, %cst_11 {dimension_numbers = #tpu.dot_dimension_numbers<[1], [0], [0], [1], [0, 0, 1, 1], [], []>} : vector<8x128xbf16>, vector<128x128xbf16>, vector<8x128xf32> -> vector<8x128xf32>
    %33 = arith.addf %18, %32 : vector<8x128xf32>
    %34 = tpu.iota {dimensions = array<i32: 0>} : vector<8x18xi32>
    %35 = tpu.iota {dimensions = array<i32: 1>} : vector<8x18xi32>
    %c2_i32_12 = arith.constant 2 : i32
    %36 = vector.broadcast %c2_i32_12 : i32 to vector<8x18xi32>
    %37 = arith.muli %36, %34 : vector<8x18xi32>
    %c2_i32_13 = arith.constant 2 : i32
    %38 = vector.broadcast %c2_i32_13 : i32 to vector<8x18xi32>
    %39 = arith.addi %37, %38 : vector<8x18xi32>
    %40 = arith.cmpi eq, %35, %39 : vector<8x18xi32>
    %41 = arith.extui %40 : vector<8x18xi1> to vector<8x18xi32>
    %42 = arith.sitofp %41 : vector<8x18xi32> to vector<8x18xf32>
    %cst_14 = arith.constant dense<0.000000e+00> : vector<8x128xf32>
    %43 = tpu.matmul %42, %4, %cst_14 {dimension_numbers = #tpu.dot_dimension_numbers<[1], [0], [0], [1], [0, 0, 1, 1], [], []>} : vector<8x18xf32>, vector<18x128xf32>, vector<8x128xf32> -> vector<8x128xf32>
    %44 = arith.truncf %43 : vector<8x128xf32> to vector<8x128xbf16>
    %c2 = arith.constant 2 : index
    %c0_15 = arith.constant 0 : index
    %c0_16 = arith.constant 0 : index
    %45 = vector.load %arg2[%c2, %c0_15, %c0_16] : memref<3x128x128xbf16, #tpu.memory_space<vmem>>, vector<1x128x128xbf16>
    %46 = vector.shape_cast %45 : vector<1x128x128xbf16> to vector<128x128xbf16>
    %cst_17 = arith.constant dense<0.000000e+00> : vector<8x128xf32>
    %47 = tpu.matmul %44, %46, %cst_17 {dimension_numbers = #tpu.dot_dimension_numbers<[1], [0], [0], [1], [0, 0, 1, 1], [], []>} : vector<8x128xbf16>, vector<128x128xbf16>, vector<8x128xf32> -> vector<8x128xf32>
    %48 = arith.addf %33, %47 : vector<8x128xf32>
    %c0_18 = arith.constant 0 : index
    %c0_19 = arith.constant 0 : index
    %49 = vector.load %arg3[%c0_18, %c0_19] : memref<1x128xf32, #tpu.memory_space<vmem>>, vector<1x128xf32>
    %50 = vector.broadcast %49 : vector<1x128xf32> to vector<8x128xf32>
    %51 = arith.addf %48, %50 : vector<8x128xf32>
    %c0_20 = arith.constant 0 : index
    %c0_21 = arith.constant 0 : index
    %c0_22 = arith.constant 0 : index
    %52 = vector.load %arg4[%c0_20, %c0_21, %c0_22] : memref<1x8x128xbf16, #tpu.memory_space<vmem>>, vector<1x8x128xbf16>
    %53 = vector.shape_cast %52 : vector<1x8x128xbf16> to vector<8x128xbf16>
    %54 = arith.extf %53 : vector<8x128xbf16> to vector<8x128xf32>
    %55 = arith.addf %51, %54 : vector<8x128xf32>
    %cst_23 = arith.constant 0.000000e+00 : f32
    %56 = vector.broadcast %cst_23 : f32 to vector<8x128xf32>
    %57 = arith.maximumf %55, %56 : vector<8x128xf32>
    %58 = arith.truncf %57 : vector<8x128xf32> to vector<8x128xbf16>
    %c0_24 = arith.constant 0 : index
    %c0_25 = arith.constant 0 : index
    %c0_26 = arith.constant 0 : index
    %59 = vector.load %arg5[%c0_24, %c0_25, %c0_26] : memref<1x8x128xbf16, #tpu.memory_space<vmem>>, vector<1x8x128xbf16>
    %60 = vector.shape_cast %59 : vector<1x8x128xbf16> to vector<8x128xbf16>
    %61 = vector.shape_cast %58 : vector<8x128xbf16> to vector<1x8x128xbf16>
    tpu.vector_store %arg5[%c0_24, %c0_25, %c0_26], %61 {strides = array<i32>} : memref<1x8x128xbf16, #tpu.memory_space<vmem>>, vector<1x8x128xbf16>,
    return
  }
  func.func @transform_0(%arg0: i32) -> (i32, i32, i32) {
    %c0_i32 = arith.constant 0 : i32
    %c0_i32_0 = arith.constant 0 : i32
    %c0_i32_1 = arith.constant 0 : i32
    return %arg0, %c0_i32, %c0_i32_0 : i32, i32, i32
  }
  func.func @transform_1(%arg0: i32) -> (i32, i32, i32) {
    %c0_i32 = arith.constant 0 : i32
    %c0_i32_0 = arith.constant 0 : i32
    %c0_i32_1 = arith.constant 0 : i32
    %c0_i32_2 = arith.constant 0 : i32
    return %c0_i32, %c0_i32_0, %c0_i32_1 : i32, i32, i32
  }
  func.func @transform_2(%arg0: i32) -> (i32, i32) {
    %c0_i32 = arith.constant 0 : i32
    %c0_i32_0 = arith.constant 0 : i32
    %c0_i32_1 = arith.constant 0 : i32
    return %c0_i32, %c0_i32_0 : i32, i32
  }
  func.func @transform_3(%arg0: i32) -> (i32, i32, i32) {
    %c0_i32 = arith.constant 0 : i32
    %c0_i32_0 = arith.constant 0 : i32
    %c0_i32_1 = arith.constant 0 : i32
    return %arg0, %c0_i32, %c0_i32_0 : i32, i32, i32
  }
  func.func @transform_4(%arg0: i32) -> (i32, i32, i32) {
    %c0_i32 = arith.constant 0 : i32
    %c0_i32_0 = arith.constant 0 : i32
    %c0_i32_1 = arith.constant 0 : i32
    return %arg0, %c0_i32, %c0_i32_0 : i32, i32, i32
  }
}

</mosaic_0001>

<llo_original>
// kernel: _lambda_.5
$region0: #{_lambda_.5}
  #allocation0 [shape = 'u32[]', space=smem, size = 0x4, offset = 0x4, fixed_abs, tag = 'smem constant byte address 0x4 - core index']
  #allocation1 [shape = 'u32[144,128]{1,0:T(1,128)}', space=vmem, size = 0x12000, scoped, tag = 'internal scratch']
  %s0 = inlined_call_operand.vmem [shape: bf16[2,16,128], index: 0, kind: input, shape index: {}]
  %s1 = inlined_call_operand.vmem [shape: bf16[3,128,128], index: 1, kind: input, shape index: {}]
  %s2 = inlined_call_operand.vmem [shape: f32[1,128], index: 2, kind: input, shape index: {}]
  %s3 = inlined_call_operand.vmem [shape: bf16[2,8,128], index: 3, kind: output, shape index: {}]
  %s4 = sld [smem:[#allocation0]]
  $region45: #{_lambda_.5} parent=0
    _
  %s6 = ssub.s32 1, %s4
  %s7 = scalar_select 0, %s6, %s4
  loop: start=0, step=1, limit=4
  $region2: #{_lambda_.5} parent=0 // loop_pre_header
    _
  $region3: #{_lambda_.5} parent=0 // loop_header
    %s9 = sphi 0, %s13
    %p10 = scmp.ge.s32.totalorder %s9, 4
    %s19 = sphi 0, %s21
    %s22 = sphi 0, %s19
    %s23 = sphi 0, %s22
    %s39 = sphi 0, %s23
    %s43 = sphi 0, %s43
    %s45 = sphi 0, %s43
    %s46 = sphi 0, %s45
    %s60 = sphi 0, %s46
    %s64 = sphi 0, %s64
    %s66 = sphi 0, %s64
    %s67 = sphi 0, %s66
    %s81 = sphi 0, %s67
    %s87 = sphi 0, %s89
    %s90 = sphi 0, %s87
    %s91 = sphi 0, %s90
    %s107 = sphi 0, %s91
  $region4: #{_lambda_.5} parent=0 // loop_header_branch
    %12 = sbr.rel (%p10) target = $region8
  $region5: #{_lambda_.5} parent=0 // loop_body
    %s14 = ssub.s32 %s9, 1
    %s15 = ssub.s32 %s9, 2
    %s16 = sadd.s32 %s9, 1
    %s17 = ssub.s32 %s9, %s16
    %p18 = scmp.eq.s32.totalorder %s17, 0
    %s20 = sadd.s32 %s19, 1
    %s21 = scalar_select %p18, %s19, %s20
    %p24 = pneg %p18
    %p25 = scmp.eq.s32.totalorder %s9, 1
    %p26 = por %p24, %p25
    %p27 = scmp.ne.s32.totalorder %s19, %s22
    %p28 = scmp.eq.s32.totalorder %s9, 0
    %p29 = por %p27, %p28
    %p30 = scmp.ne.s32.totalorder %s19, %s22
    %p31 = scmp.eq.s32.totalorder %s14, 1
    %p32 = por %p30, %p31
    %p33 = scmp.ne.s32.totalorder %s22, %s23
    %p34 = scmp.eq.s32.totalorder %s14, 0
    %p35 = por %p33, %p34
    %p36 = scmp.ne.s32.totalorder %s22, %s23
    %p37 = scmp.eq.s32.totalorder %s15, 1
    %p38 = por %p36, %p37
    %p40 = scmp.ne.s32.totalorder %s23, %s39
    %p41 = scmp.eq.s32.totalorder %s15, 0
    %p42 = por %p40, %p41
    %s44 = sadd.s32 %s43, 1
    %p47 = scmp.eq.s32.totalorder %s9, 1
    %p48 = scmp.ne.s32.totalorder %s43, %s45
    %p49 = scmp.eq.s32.totalorder %s9, 0
    %p50 = por %p48, %p49
    %p51 = scmp.ne.s32.totalorder %s43, %s45
    %p52 = scmp.eq.s32.totalorder %s14, 1
    %p53 = por %p51, %p52
    %p54 = scmp.ne.s32.totalorder %s45, %s46
    %p55 = scmp.eq.s32.totalorder %s14, 0
    %p56 = por %p54, %p55
    %p57 = scmp.ne.s32.totalorder %s45, %s46
    %p58 = scmp.eq.s32.totalorder %s15, 1
    %p59 = por %p57, %p58
    %p61 = scmp.ne.s32.totalorder %s46, %s60
    %p62 = scmp.eq.s32.totalorder %s15, 0
    %p63 = por %p61, %p62
    %s65 = sadd.s32 %s64, 1
    %p68 = scmp.eq.s32.totalorder %s9, 1
    %p69 = scmp.ne.s32.totalorder %s64, %s66
    %p70 = scmp.eq.s32.totalorder %s9, 0
    %p71 = por %p69, %p70
    %p72 = scmp.ne.s32.totalorder %s64, %s66
    %p73 = scmp.eq.s32.totalorder %s14, 1
    %p74 = por %p72, %p73
    %p75 = scmp.ne.s32.totalorder %s66, %s67
    %p76 = scmp.eq.s32.totalorder %s14, 0
    %p77 = por %p75, %p76
    %p78 = scmp.ne.s32.totalorder %s66, %s67
    %p79 = scmp.eq.s32.totalorder %s15, 1
    %p80 = por %p78, %p79
    %p82 = scmp.ne.s32.totalorder %s67, %s81
    %p83 = scmp.eq.s32.totalorder %s15, 0
    %p84 = por %p82, %p83
    %s85 = ssub.s32 %s9, %s16
    %p86 = scmp.eq.s32.totalorder %s85, 0
    %s88 = sadd.s32 %s87, 1
    %s89 = scalar_select %p86, %s87, %s88
    %p92 = pneg %p86
    %p93 = scmp.eq.s32.totalorder %s9, 1
    %p94 = por %p92, %p93
    %p95 = scmp.ne.s32.totalorder %s87, %s90
    %p96 = scmp.eq.s32.totalorder %s9, 0
    %p97 = por %p95, %p96
    %p98 = scmp.ne.s32.totalorder %s87, %s90
    %p99 = scmp.eq.s32.totalorder %s14, 1
    %p100 = por %p98, %p99
    %p101 = scmp.ne.s32.totalorder %s90, %s91
    %p102 = scmp.eq.s32.totalorder %s14, 0
    %p103 = por %p101, %p102
    %p104 = scmp.ne.s32.totalorder %s90, %s91
    %p105 = scmp.eq.s32.totalorder %s15, 1
    %p106 = por %p104, %p105
    %p108 = scmp.ne.s32.totalorder %s91, %s107
    %p109 = scmp.eq.s32.totalorder %s15, 0
    %p110 = por %p108, %p109
    %p111 = scmp.le.s32.totalorder 1, %s9
    %p112 = scmp.lt.s32.totalorder %s9, 3
    %p113 = pnand %p111, %p112
    %p114 = pneg %p113
    // Predicated region
    $region9: #{_lambda_.5} parent=5 // pred_check
      _
    $region10: #{_lambda_.5} parent=5 // pred_check_branch
      %116 = sbr.rel (%p113) target = $region12
    $region11: #{_lambda_.5} parent=5 // pred_region
      %s117 = ssub.s32 %s9, 1
      // Predicated region
      $region13: #{_lambda_.5} parent=11 // pred_check
        %p118 = pneg %p56
      $region14: #{_lambda_.5} parent=11 // pred_check_branch
        %120 = sbr.rel (%p118) target = $region16
      $region15: #{_lambda_.5} parent=11 // pred_region
        _
      $region16: #{_lambda_.5} parent=11 // pred_fallthru
        _
      // Predicated region
      $region17: #{_lambda_.5} parent=11 // pred_check
        %p121 = pneg %p77
      $region18: #{_lambda_.5} parent=11 // pred_check_branch
        %123 = sbr.rel (%p121) target = $region20
      $region19: #{_lambda_.5} parent=11 // pred_region
        _
      $region20: #{_lambda_.5} parent=11 // pred_fallthru
        _
    $region12: #{_lambda_.5} parent=5 // pred_fallthru
      _
    %p124 = scmp.lt.s32.totalorder %s9, 2
    // Predicated region
    $region21: #{_lambda_.5} parent=5 // pred_check
      %p125 = pneg %p124
    $region22: #{_lambda_.5} parent=5 // pred_check_branch
      %127 = sbr.rel (%p125) target = $region24
    $region23: #{_lambda_.5} parent=5 // pred_region
      // Predicated region
      $region25: #{_lambda_.5} parent=23 // pred_check
        %p128 = pneg %p29
      $region26: #{_lambda_.5} parent=23 // pred_check_branch
        %130 = sbr.rel (%p128) target = $region28
      $region27: #{_lambda_.5} parent=23 // pred_region
        %p131 = scmp.lt.s32.totalorder %s9, 1
        %s132 = scalar_select %p131, %s9, 1
        %s133 = smul.addr %s132, 2
        %s134 = smul.addr %s133, 4
        %s135 = scalar_lea.vmem %s0, %s134
      $region28: #{_lambda_.5} parent=23 // pred_fallthru
        _
    $region24: #{_lambda_.5} parent=5 // pred_fallthru
      _
    %p136 = scmp.le.s32.totalorder 1, %s9
    %p137 = scmp.lt.s32.totalorder %s9, 3
    %p138 = pnand %p136, %p137
    %p139 = pneg %p138
    // Predicated region
    $region29: #{_lambda_.5} parent=5 // pred_check
      _
    $region30: #{_lambda_.5} parent=5 // pred_check_branch
      %141 = sbr.rel (%p138) target = $region32
    $region31: #{_lambda_.5} parent=5 // pred_region
      %s142 = ssub.s32 %s9, 1
      %p143 = scmp.lt.s32.totalorder %s14, 1
      %s144 = scalar_select %p143, %s14, 1
      %s145 = smul.addr %s144, 2
      %s146 = smul.addr %s145, 4
      %s147 = scalar_lea.vmem %s0, %s146
      %p148 = pneg %p35
      %p149 = pneg %p32
      %p150 = pneg %p56
      %p151 = pneg %p53
      %p152 = pneg %p77
      %p153 = pneg %p74
      %p154 = pneg %p103
      %p155 = pneg %p100
      %p156 = scmp.lt.s32.totalorder %s14, 1
      %s157 = scalar_select %p156, %s14, 1
      %s158 = smul.addr %s157, 4
      %s159 = scalar_lea.vmem %s3, %s158
      %p160 = scmp.lt.s32.totalorder %s14, 1
      %s161 = scalar_select %p160, %s14, 1
      %s162 = smul.addr %s161, 2
      %s163 = smul.addr %s162, 4
      %s164 = scalar_lea.vmem %s0, %s163
      %p165 = scmp.lt.s32.totalorder %s14, 1
      %s166 = scalar_select %p165, %s14, 1
      %s167 = smul.addr %s166, 4
      %s168 = scalar_lea.vmem %s3, %s167
      %v170 = vld [vmem:[%s164] sm:$0xf]
      %v171 = vld [vmem:[%s164 + $0x4] sm:$0xf]
      %v172 = vunpack.c.l.bf16 %v170
      %v173 = vunpack.c.l.bf16 %v171
      %vm176 = vcmask 1040384
      %v177 = vrot.slane %v172, 7
      %v178 = vrot.slane %v173, 7
      %v179 = vsel %vm176, %v177, %v178
      %v183 = vsel %vm176, 0.0, %v177
      %v184 = vsel %vm176, %v178, 0.0
      %v185 = vlaneseq
      %v186 = vshrl.u32 %v185, 7
      %v187 = vlaneseq
      %v188 = vand.u32 %v187, 127
      %v189 = vmul.u32 %v186, 2
      %vm190 = vcmp.eq.s32.totalorder %v188, %v189
      %v191 = vsel %vm190, 1, 0
      %v192 = vcvt.s32.f32 %v191
      %vm193 = vcmask 146432
      %v195 = vsel %vm193, %v192, 0
      %vm197 = vcmask 1041408
      %v199 = vsel %vm197, %v184, 0
      %201 = vmatprep.subr.mxu0 0.0
      %202 = vmatpush1.msra.mxu0 0.0
      %203 = vmatprep.subr.mxu0 0.0
      %204 = vmatpush1.msra.mxu0 0.0
      %205 = vmatprep.subr.mxu0 0.0
      %206 = vmatpush1.msra.mxu0 0.0
      %207 = vmatprep.subr.mxu0 0.0
      %208 = vmatpush1.msra.mxu0 0.0
      %209 = vmatprep.subr.mxu0 0.0
      %210 = vmatpush1.msra.mxu0 0.0
      %211 = vmatprep.subr.mxu0 0.0
      %212 = vmatpush1.msra.mxu0 0.0
      %213 = vmatprep.subr.mxu0 0.0
      %214 = vmatpush1.msra.mxu0 0.0
      %215 = vmatprep.subr.mxu0 0.0
      %216 = vmatpush1.msra.mxu0 0.0
      %217 = vmatprep.subr.mxu0 0.0
      %218 = vmatpush1.msra.mxu0 0.0
      %219 = vmatprep.subr.mxu0 0.0
      %220 = vmatpush1.msra.mxu0 0.0
      %221 = vmatprep.subr.mxu0 0.0
      %222 = vmatpush1.msra.mxu0 0.0
      %223 = vmatprep.subr.mxu0 0.0
      %224 = vmatpush1.msra.mxu0 0.0
      %225 = vmatprep.subr.mxu0 0.0
      %226 = vmatpush1.msra.mxu0 0.0
      %227 = vmatprep.subr.mxu0 0.0
      %228 = vmatpush1.msra.mxu0 %v199
      %229 = vmatprep.subr.mxu0 0.0
      %230 = vmatpush1.msra.mxu0 %v179
      %231 = vmatprep.subr.mxu0 0.0
      %232 = vmatpush1.msra.mxu0 %v183
      %233 = vmatprep.subr.mxu0 0.0
      %234 = vmatpush2.msra.mxu0 0.0
      %235 = vmatprep.subr.mxu0 0.0
      %236 = vmatpush2.msra.mxu0 0.0
      %237 = vmatprep.subr.mxu0 0.0
      %238 = vmatpush2.msra.mxu0 0.0
      %239 = vmatprep.subr.mxu0 0.0
      %240 = vmatpush2.msra.mxu0 0.0
      %241 = vmatprep.subr.mxu0 0.0
      %242 = vmatpush2.msra.mxu0 0.0
      %243 = vmatprep.subr.mxu0 0.0
      %244 = vmatpush2.msra.mxu0 0.0
      %245 = vmatprep.subr.mxu0 0.0
      %246 = vmatpush2.msra.mxu0 0.0
      %247 = vmatprep.subr.mxu0 0.0
      %248 = vmatpush2.msra.mxu0 0.0
      %249 = vmatprep.subr.mxu0 0.0
      %250 = vmatpush2.msra.mxu0 0.0
      %251 = vmatprep.subr.mxu0 0.0
      %252 = vmatpush2.msra.mxu0 0.0
      %253 = vmatprep.subr.mxu0 0.0
      %254 = vmatpush2.msra.mxu0 0.0
      %255 = vmatprep.subr.mxu0 0.0
      %256 = vmatpush2.msra.mxu0 0.0
      %257 = vmatprep.subr.mxu0 0.0
      %258 = vmatpush2.msra.mxu0 0.0
      %259 = vmatprep.subr.mxu0 0.0
      %260 = vmatpush2.msra.mxu0 0.0
      %261 = vmatprep.subr.mxu0 0.0
      %262 = vmatpush2.msra.mxu0 0.0
      %263 = vmatprep.subr.mxu0 0.0
      %264 = vmatpush2.msra.mxu0 0.0
      %265 = vmatprep.mubr.f32.mxu0 0.0
      %266 = vmatmul.mubr.f32.gmra.mxu0 %v195
      %v267 = vpop.f32.mrf.mxu0
      %v268 = vadd.f32 0.0, %v267
      %v269 = vpop.f32.mrf.mxu0
      %270 = vdwg.mxu0
      %v271 = vpack.c.bf16 %v268, %v268
      %v272 = vld [vmem:[%s1] sm:$0xf]
      %v273 = vld [vmem:[%s1 + $0x4] sm:$0xf]
      %v274 = vld [vmem:[%s1 + $0x8] sm:$0xf]
      %v275 = vld [vmem:[%s1 + $0xc] sm:$0xf]
      %v276 = vld [vmem:[%s1 + $0x10] sm:$0xf]
      %v277 = vld [vmem:[%s1 + $0x14] sm:$0xf]
      %v278 = vld [vmem:[%s1 + $0x18] sm:$0xf]
      %v279 = vld [vmem:[%s1 + $0x1c] sm:$0xf]
      %v280 = vld [vmem:[%s1 + $0x20] sm:$0xf]
      %v281 = vld [vmem:[%s1 + $0x24] sm:$0xf]
      %v282 = vld [vmem:[%s1 + $0x28] sm:$0xf]
      %v283 = vld [vmem:[%s1 + $0x2c] sm:$0xf]
      %v284 = vld [vmem:[%s1 + $0x30] sm:$0xf]
      %v285 = vld [vmem:[%s1 + $0x34] sm:$0xf]
      %v286 = vld [vmem:[%s1 + $0x38] sm:$0xf]
      %v287 = vld [vmem:[%s1 + $0x3c] sm:$0xf]
      %v288 = vadd.s32 %v189, 1
      %vm289 = vcmp.eq.s32.totalorder %v188, %v288
      %v290 = vsel %vm289, 1, 0
      %v291 = vcvt.s32.f32 %v290
      %v293 = vsel %vm193, %v291, 0
      %295 = vmatprep.subr.mxu0 0.0
      %296 = vmatpush1.msra.mxu0 0.0
      %297 = vmatprep.subr.mxu0 0.0
      %298 = vmatpush1.msra.mxu0 0.0
      %299 = vmatprep.subr.mxu0 0.0
      %300 = vmatpush1.msra.mxu0 0.0
      %301 = vmatprep.subr.mxu0 0.0
      %302 = vmatpush1.msra.mxu0 0.0
      %303 = vmatprep.subr.mxu0 0.0
      %304 = vmatpush1.msra.mxu0 0.0
      %305 = vmatprep.subr.mxu0 0.0
      %306 = vmatpush1.msra.mxu0 0.0
      %307 = vmatprep.subr.mxu0 0.0
      %308 = vmatpush1.msra.mxu0 0.0
      %309 = vmatprep.subr.mxu0 0.0
      %310 = vmatpush1.msra.mxu0 0.0
      %311 = vmatprep.subr.mxu0 0.0
      %312 = vmatpush1.msra.mxu0 0.0
      %313 = vmatprep.subr.mxu0 0.0
      %314 = vmatpush1.msra.mxu0 0.0
      %315 = vmatprep.subr.mxu0 0.0
      %316 = vmatpush1.msra.mxu0 0.0
      %317 = vmatprep.subr.mxu0 0.0
      %318 = vmatpush1.msra.mxu0 0.0
      %319 = vmatprep.subr.mxu0 0.0
      %320 = vmatpush1.msra.mxu0 0.0
      %321 = vmatprep.subr.mxu0 0.0
      %322 = vmatpush1.msra.mxu0 %v199
      %323 = vmatprep.subr.mxu0 0.0
      %324 = vmatpush1.msra.mxu0 %v179
      %325 = vmatprep.subr.mxu0 0.0
      %326 = vmatpush1.msra.mxu0 %v183
      %327 = vmatprep.subr.mxu0 0.0
      %328 = vmatpush2.msra.mxu0 0.0
      %329 = vmatprep.subr.mxu0 0.0
      %330 = vmatpush2.msra.mxu0 0.0
      %331 = vmatprep.subr.mxu0 0.0
      %332 = vmatpush2.msra.mxu0 0.0
      %333 = vmatprep.subr.mxu0 0.0
      %334 = vmatpush2.msra.mxu0 0.0
      %335 = vmatprep.subr.mxu0 0.0
      %336 = vmatpush2.msra.mxu0 0.0
      %337 = vmatprep.subr.mxu0 0.0
      %338 = vmatpush2.msra.mxu0 0.0
      %339 = vmatprep.subr.mxu0 0.0
      %340 = vmatpush2.msra.mxu0 0.0
      %341 = vmatprep.subr.mxu0 0.0
      %342 = vmatpush2.msra.mxu0 0.0
      %343 = vmatprep.subr.mxu0 0.0
      %344 = vmatpush2.msra.mxu0 0.0
      %345 = vmatprep.subr.mxu0 0.0
      %346 = vmatpush2.msra.mxu0 0.0
      %347 = vmatprep.subr.mxu0 0.0
      %348 = vmatpush2.msra.mxu0 0.0
      %349 = vmatprep.subr.mxu0 0.0
      %350 = vmatpush2.msra.mxu0 0.0
      %351 = vmatprep.subr.mxu0 0.0
      %352 = vmatpush2.msra.mxu0 0.0
      %353 = vmatprep.subr.mxu0 0.0
      %354 = vmatpush2.msra.mxu0 0.0
      %355 = vmatprep.subr.mxu0 0.0
      %356 = vmatpush2.msra.mxu0 0.0
      %357 = vmatprep.subr.mxu0 0.0
      %358 = vmatpush2.msra.mxu0 0.0
      %359 = vmatprep.mubr.f32.mxu0 0.0
      %360 = vmatmul.mubr.f32.gmra.mxu0 %v293
      %v361 = vpop.f32.mrf.mxu0
      %v362 = vadd.f32 0.0, %v361
      %v363 = vpop.f32.mrf.mxu0
      %364 = vdwg.mxu0
      %v365 = vpack.c.bf16 %v362, %v362
      %s366 = scalar_lea.vmem %s1, 64
      %v367 = vld [vmem:[%s366] sm:$0xf]
      %v368 = vld [vmem:[%s366 + $0x4] sm:$0xf]
      %v369 = vld [vmem:[%s366 + $0x8] sm:$0xf]
      %v370 = vld [vmem:[%s366 + $0xc] sm:$0xf]
      %v371 = vld [vmem:[%s366 + $0x10] sm:$0xf]
      %v372 = vld [vmem:[%s366 + $0x14] sm:$0xf]
      %v373 = vld [vmem:[%s366 + $0x18] sm:$0xf]
      %v374 = vld [vmem:[%s366 + $0x1c] sm:$0xf]
      %v375 = vld [vmem:[%s366 + $0x20] sm:$0xf]
      %v376 = vld [vmem:[%s366 + $0x24] sm:$0xf]
      %v377 = vld [vmem:[%s366 + $0x28] sm:$0xf]
      %v378 = vld [vmem:[%s366 + $0x2c] sm:$0xf]
      %v379 = vld [vmem:[%s366 + $0x30] sm:$0xf]
      %v380 = vld [vmem:[%s366 + $0x34] sm:$0xf]
      %v381 = vld [vmem:[%s366 + $0x38] sm:$0xf]
      %v382 = vld [vmem:[%s366 + $0x3c] sm:$0xf]
      %v399 = vunpack.c.l.b16 %v367
      %v400 = vunpack.c.l.b16 %v368
      %v401 = vunpack.c.l.b16 %v369
      %v402 = vunpack.c.l.b16 %v370
      %v403 = vunpack.c.l.b16 %v371
      %v404 = vunpack.c.l.b16 %v372
      %v405 = vunpack.c.l.b16 %v373
      %v406 = vunpack.c.l.b16 %v374
      %v407 = vunpack.c.l.b16 %v375
      %v408 = vunpack.c.l.b16 %v376
      %v409 = vunpack.c.l.b16 %v377
      %v410 = vunpack.c.l.b16 %v378
      %v411 = vunpack.c.l.b16 %v379
      %v412 = vunpack.c.l.b16 %v380
      %v413 = vunpack.c.l.b16 %v381
      %v414 = vunpack.c.l.b16 %v382
      %v415 = vpack.c.b16 %v400, %v399
      %v416 = vpack.c.b16 %v402, %v401
      %v417 = vpack.c.b16 %v404, %v403
      %v418 = vpack.c.b16 %v406, %v405
      %v419 = vpack.c.b16 %v408, %v407
      %v420 = vpack.c.b16 %v410, %v409
      %v421 = vpack.c.b16 %v412, %v411
      %v422 = vpack.c.b16 %v414, %v413
      %431 = vmatprep.subr.bf16.mxu0 0
      %432 = vmatpush1.bf16.msra.mxu0 %v422
      %433 = vmatprep.subr.bf16.mxu0 0
      %434 = vmatpush1.bf16.msra.mxu0 %v421
      %435 = vmatprep.subr.bf16.mxu0 0
      %436 = vmatpush1.bf16.msra.mxu0 %v420
      %437 = vmatprep.subr.bf16.mxu0 0
      %438 = vmatpush1.bf16.msra.mxu0 %v419
      %439 = vmatprep.subr.bf16.mxu0 0
      %440 = vmatpush1.bf16.msra.mxu0 %v418
      %441 = vmatprep.subr.bf16.mxu0 0
      %442 = vmatpush1.bf16.msra.mxu0 %v417
      %443 = vmatprep.subr.bf16.mxu0 0
      %444 = vmatpush1.bf16.msra.mxu0 %v416
      %445 = vmatprep.subr.bf16.mxu0 0
      %446 = vmatpush1.bf16.msra.mxu0 %v415
      %447 = vmatprep.subr.bf16.mxu0 0
      %448 = vmatpush2.bf16.msra.mxu0 0
      %449 = vmatprep.subr.bf16.mxu0 0
      %450 = vmatpush2.bf16.msra.mxu0 0
      %451 = vmatprep.subr.bf16.mxu0 0
      %452 = vmatpush2.bf16.msra.mxu0 0
      %453 = vmatprep.subr.bf16.mxu0 0
      %454 = vmatpush2.bf16.msra.mxu0 0
      %455 = vmatprep.subr.bf16.mxu0 0
      %456 = vmatpush2.bf16.msra.mxu0 0
      %457 = vmatprep.subr.bf16.mxu0 0
      %458 = vmatpush2.bf16.msra.mxu0 0
      %459 = vmatprep.subr.bf16.mxu0 0
      %460 = vmatpush2.bf16.msra.mxu0 0
      %461 = vmatprep.subr.bf16.mxu0 0
      %462 = vmatpush2.bf16.msra.mxu0 0
      %463 = vmatprep.mubr.bf16.mxu0 0
      %464 = vmatmul.mubr.bf16.gmra.mxu0 %v365
      %v465 = vpop.f32.mrf.mxu0
      %v466 = vadd.f32 0.0, %v465
      %v467 = vpop.f32.mrf.mxu0
      %v468 = vpop.f32.mrf.mxu0
      %v469 = vpop.f32.mrf.mxu0
      %470 = vdwg.mxu0
      %v487 = vunpack.c.l.b16 %v272
      %v488 = vunpack.c.l.b16 %v273
      %v489 = vunpack.c.l.b16 %v274
      %v490 = vunpack.c.l.b16 %v275
      %v491 = vunpack.c.l.b16 %v276
      %v492 = vunpack.c.l.b16 %v277
      %v493 = vunpack.c.l.b16 %v278
      %v494 = vunpack.c.l.b16 %v279
      %v495 = vunpack.c.l.b16 %v280
      %v496 = vunpack.c.l.b16 %v281
      %v497 = vunpack.c.l.b16 %v282
      %v498 = vunpack.c.l.b16 %v283
      %v499 = vunpack.c.l.b16 %v284
      %v500 = vunpack.c.l.b16 %v285
      %v501 = vunpack.c.l.b16 %v286
      %v502 = vunpack.c.l.b16 %v287
      %v503 = vpack.c.b16 %v488, %v487
      %v504 = vpack.c.b16 %v490, %v489
      %v505 = vpack.c.b16 %v492, %v491
      %v506 = vpack.c.b16 %v494, %v493
      %v507 = vpack.c.b16 %v496, %v495
      %v508 = vpack.c.b16 %v498, %v497
      %v509 = vpack.c.b16 %v500, %v499
      %v510 = vpack.c.b16 %v502, %v501
      %519 = vmatprep.subr.bf16.mxu0 0
      %520 = vmatpush1.bf16.msra.mxu0 %v510
      %521 = vmatprep.subr.bf16.mxu0 0
      %522 = vmatpush1.bf16.msra.mxu0 %v509
      %523 = vmatprep.subr.bf16.mxu0 0
      %524 = vmatpush1.bf16.msra.mxu0 %v508
      %525 = vmatprep.subr.bf16.mxu0 0
      %526 = vmatpush1.bf16.msra.mxu0 %v507
      %527 = vmatprep.subr.bf16.mxu0 0
      %528 = vmatpush1.bf16.msra.mxu0 %v506
      %529 = vmatprep.subr.bf16.mxu0 0
      %530 = vmatpush1.bf16.msra.mxu0 %v505
      %531 = vmatprep.subr.bf16.mxu0 0
      %532 = vmatpush1.bf16.msra.mxu0 %v504
      %533 = vmatprep.subr.bf16.mxu0 0
      %534 = vmatpush1.bf16.msra.mxu0 %v503
      %535 = vmatprep.subr.bf16.mxu0 0
      %536 = vmatpush2.bf16.msra.mxu0 0
      %537 = vmatprep.subr.bf16.mxu0 0
      %538 = vmatpush2.bf16.msra.mxu0 0
      %539 = vmatprep.subr.bf16.mxu0 0
      %540 = vmatpush2.bf16.msra.mxu0 0
      %541 = vmatprep.subr.bf16.mxu0 0
      %542 = vmatpush2.bf16.msra.mxu0 0
      %543 = vmatprep.subr.bf16.mxu0 0
      %544 = vmatpush2.bf16.msra.mxu0 0
      %545 = vmatprep.subr.bf16.mxu0 0
      %546 = vmatpush2.bf16.msra.mxu0 0
      %547 = vmatprep.subr.bf16.mxu0 0
      %548 = vmatpush2.bf16.msra.mxu0 0
      %549 = vmatprep.subr.bf16.mxu0 0
      %550 = vmatpush2.bf16.msra.mxu0 0
      %551 = vmatprep.mubr.bf16.mxu0 0
      %552 = vmatmul.mubr.bf16.gmra.mxu0 %v271
      %v553 = vpop.f32.mrf.mxu0
      %v554 = vadd.f32 %v466, %v553
      %v555 = vpop.f32.mrf.mxu0
      %v556 = vpop.f32.mrf.mxu0
      %v557 = vpop.f32.mrf.mxu0
      %558 = vdwg.mxu0
      %v559 = vadd.s32 %v189, 2
      %vm560 = vcmp.eq.s32.totalorder %v188, %v559
      %v561 = vsel %vm560, 1, 0
      %v562 = vcvt.s32.f32 %v561
      %v564 = vsel %vm193, %v562, 0
      %566 = vmatprep.subr.mxu0 0.0
      %567 = vmatpush1.msra.mxu0 0.0
      %568 = vmatprep.subr.mxu0 0.0
      %569 = vmatpush1.msra.mxu0 0.0
      %570 = vmatprep.subr.mxu0 0.0
      %571 = vmatpush1.msra.mxu0 0.0
      %572 = vmatprep.subr.mxu0 0.0
      %573 = vmatpush1.msra.mxu0 0.0
      %574 = vmatprep.subr.mxu0 0.0
      %575 = vmatpush1.msra.mxu0 0.0
      %576 = vmatprep.subr.mxu0 0.0
      %577 = vmatpush1.msra.mxu0 0.0
      %578 = vmatprep.subr.mxu0 0.0
      %579 = vmatpush1.msra.mxu0 0.0
      %580 = vmatprep.subr.mxu0 0.0
      %581 = vmatpush1.msra.mxu0 0.0
      %582 = vmatprep.subr.mxu0 0.0
      %583 = vmatpush1.msra.mxu0 0.0
      %584 = vmatprep.subr.mxu0 0.0
      %585 = vmatpush1.msra.mxu0 0.0
      %586 = vmatprep.subr.mxu0 0.0
      %587 = vmatpush1.msra.mxu0 0.0
      %588 = vmatprep.subr.mxu0 0.0
      %589 = vmatpush1.msra.mxu0 0.0
      %590 = vmatprep.subr.mxu0 0.0
      %591 = vmatpush1.msra.mxu0 0.0
      %592 = vmatprep.subr.mxu0 0.0
      %593 = vmatpush1.msra.mxu0 %v199
      %594 = vmatprep.subr.mxu0 0.0
      %595 = vmatpush1.msra.mxu0 %v179
      %596 = vmatprep.subr.mxu0 0.0
      %597 = vmatpush1.msra.mxu0 %v183
      %598 = vmatprep.subr.mxu0 0.0
      %599 = vmatpush2.msra.mxu0 0.0
      %600 = vmatprep.subr.mxu0 0.0
      %601 = vmatpush2.msra.mxu0 0.0
      %602 = vmatprep.subr.mxu0 0.0
      %603 = vmatpush2.msra.mxu0 0.0
      %604 = vmatprep.subr.mxu0 0.0
      %605 = vmatpush2.msra.mxu0 0.0
      %606 = vmatprep.subr.mxu0 0.0
      %607 = vmatpush2.msra.mxu0 0.0
      %608 = vmatprep.subr.mxu0 0.0
      %609 = vmatpush2.msra.mxu0 0.0
      %610 = vmatprep.subr.mxu0 0.0
      %611 = vmatpush2.msra.mxu0 0.0
      %612 = vmatprep.subr.mxu0 0.0
      %613 = vmatpush2.msra.mxu0 0.0
      %614 = vmatprep.subr.mxu0 0.0
      %615 = vmatpush2.msra.mxu0 0.0
      %616 = vmatprep.subr.mxu0 0.0
      %617 = vmatpush2.msra.mxu0 0.0
      %618 = vmatprep.subr.mxu0 0.0
      %619 = vmatpush2.msra.mxu0 0.0
      %620 = vmatprep.subr.mxu0 0.0
      %621 = vmatpush2.msra.mxu0 0.0
      %622 = vmatprep.subr.mxu0 0.0
      %623 = vmatpush2.msra.mxu0 0.0
      %624 = vmatprep.subr.mxu0 0.0
      %625 = vmatpush2.msra.mxu0 0.0
      %626 = vmatprep.subr.mxu0 0.0
      %627 = vmatpush2.msra.mxu0 0.0
      %628 = vmatprep.subr.mxu0 0.0
      %629 = vmatpush2.msra.mxu0 0.0
      %630 = vmatprep.mubr.f32.mxu0 0.0
      %631 = vmatmul.mubr.f32.gmra.mxu0 %v564
      %v632 = vpop.f32.mrf.mxu0
      %v633 = vadd.f32 0.0, %v632
      %v634 = vpop.f32.mrf.mxu0
      %635 = vdwg.mxu0
      %v636 = vpack.c.bf16 %v633, %v633
      %s637 = scalar_lea.vmem %s1, 128
      %v638 = vld [vmem:[%s637] sm:$0xf]
      %v639 = vld [vmem:[%s637 + $0x4] sm:$0xf]
      %v640 = vld [vmem:[%s637 + $0x8] sm:$0xf]
      %v641 = vld [vmem:[%s637 + $0xc] sm:$0xf]
      %v642 = vld [vmem:[%s637 + $0x10] sm:$0xf]
      %v643 = vld [vmem:[%s637 + $0x14] sm:$0xf]
      %v644 = vld [vmem:[%s637 + $0x18] sm:$0xf]
      %v645 = vld [vmem:[%s637 + $0x1c] sm:$0xf]
      %v646 = vld [vmem:[%s637 + $0x20] sm:$0xf]
      %v647 = vld [vmem:[%s637 + $0x24] sm:$0xf]
      %v648 = vld [vmem:[%s637 + $0x28] sm:$0xf]
      %v649 = vld [vmem:[%s637 + $0x2c] sm:$0xf]
      %v650 = vld [vmem:[%s637 + $0x30] sm:$0xf]
      %v651 = vld [vmem:[%s637 + $0x34] sm:$0xf]
      %v652 = vld [vmem:[%s637 + $0x38] sm:$0xf]
      %v653 = vld [vmem:[%s637 + $0x3c] sm:$0xf]
      %v670 = vunpack.c.l.b16 %v638
      %v671 = vunpack.c.l.b16 %v639
      %v672 = vunpack.c.l.b16 %v640
      %v673 = vunpack.c.l.b16 %v641
      %v674 = vunpack.c.l.b16 %v642
      %v675 = vunpack.c.l.b16 %v643
      %v676 = vunpack.c.l.b16 %v644
      %v677 = vunpack.c.l.b16 %v645
      %v678 = vunpack.c.l.b16 %v646
      %v679 = vunpack.c.l.b16 %v647
      %v680 = vunpack.c.l.b16 %v648
      %v681 = vunpack.c.l.b16 %v649
      %v682 = vunpack.c.l.b16 %v650
      %v683 = vunpack.c.l.b16 %v651
      %v684 = vunpack.c.l.b16 %v652
      %v685 = vunpack.c.l.b16 %v653
      %v686 = vpack.c.b16 %v671, %v670
      %v687 = vpack.c.b16 %v673, %v672
      %v688 = vpack.c.b16 %v675, %v674
      %v689 = vpack.c.b16 %v677, %v676
      %v690 = vpack.c.b16 %v679, %v678
      %v691 = vpack.c.b16 %v681, %v680
      %v692 = vpack.c.b16 %v683, %v682
      %v693 = vpack.c.b16 %v685, %v684
      %702 = vmatprep.subr.bf16.mxu0 0
      %703 = vmatpush1.bf16.msra.mxu0 %v693
      %704 = vmatprep.subr.bf16.mxu0 0
      %705 = vmatpush1.bf16.msra.mxu0 %v692
      %706 = vmatprep.subr.bf16.mxu0 0
      %707 = vmatpush1.bf16.msra.mxu0 %v691
      %708 = vmatprep.subr.bf16.mxu0 0
      %709 = vmatpush1.bf16.msra.mxu0 %v690
      %710 = vmatprep.subr.bf16.mxu0 0
      %711 = vmatpush1.bf16.msra.mxu0 %v689
      %712 = vmatprep.subr.bf16.mxu0 0
      %713 = vmatpush1.bf16.msra.mxu0 %v688
      %714 = vmatprep.subr.bf16.mxu0 0
      %715 = vmatpush1.bf16.msra.mxu0 %v687
      %716 = vmatprep.subr.bf16.mxu0 0
      %717 = vmatpush1.bf16.msra.mxu0 %v686
      %718 = vmatprep.subr.bf16.mxu0 0
      %719 = vmatpush2.bf16.msra.mxu0 0
      %720 = vmatprep.subr.bf16.mxu0 0
      %721 = vmatpush2.bf16.msra.mxu0 0
      %722 = vmatprep.subr.bf16.mxu0 0
      %723 = vmatpush2.bf16.msra.mxu0 0
      %724 = vmatprep.subr.bf16.mxu0 0
      %725 = vmatpush2.bf16.msra.mxu0 0
      %726 = vmatprep.subr.bf16.mxu0 0
      %727 = vmatpush2.bf16.msra.mxu0 0
      %728 = vmatprep.subr.bf16.mxu0 0
      %729 = vmatpush2.bf16.msra.mxu0 0
      %730 = vmatprep.subr.bf16.mxu0 0
      %731 = vmatpush2.bf16.msra.mxu0 0
      %732 = vmatprep.subr.bf16.mxu0 0
      %733 = vmatpush2.bf16.msra.mxu0 0
      %734 = vmatprep.mubr.bf16.mxu0 0
      %735 = vmatmul.mubr.bf16.gmra.mxu0 %v636
      %v736 = vpop.f32.mrf.mxu0
      %v737 = vadd.f32 0.0, %v736
      %v738 = vpop.f32.mrf.mxu0
      %v739 = vpop.f32.mrf.mxu0
      %v740 = vpop.f32.mrf.mxu0
      %741 = vdwg.mxu0
      %v742 = vadd.f32 %v554, %v737
      %v743 = vld [vmem:[%s2] sm:$0x1]
      %v745 = vlaneseq
      %v746 = vshrl.u32 %v745, 7
      %v747 = vsub.s32 0, %v746
      %v748 = vrot.slane %v743, %v747
      %v750 = vadd.f32 %v742, %v748
      %v751 = vmax.f32 %v750, 0.0
      %v752 = vpack.c.bf16 %v751, %v751
      %753 = vst [vmem:[%s168] sm:$0xf] %v752
      %p754 = scmp.lt.s32.totalorder %s14, 1
      %s755 = scalar_select %p754, %s14, 1
      %s756 = smul.addr %s755, 4
      %s757 = scalar_lea.vmem %s3, %s756
      // Predicated region
      $region33: #{_lambda_.5} parent=31 // pred_check
        %p758 = pneg %p100
      $region34: #{_lambda_.5} parent=31 // pred_check_branch
        %760 = sbr.rel (%p758) target = $region36
      $region35: #{_lambda_.5} parent=31 // pred_region
        _
      $region36: #{_lambda_.5} parent=31 // pred_fallthru
        _
    $region32: #{_lambda_.5} parent=5 // pred_fallthru
      _
    %p761 = scmp.le.s32.totalorder 2, %s9
    // Predicated region
    $region37: #{_lambda_.5} parent=5 // pred_check
      %p762 = pneg %p761
    $region38: #{_lambda_.5} parent=5 // pred_check_branch
      %764 = sbr.rel (%p762) target = $region40
    $region39: #{_lambda_.5} parent=5 // pred_region
      %s765 = ssub.s32 %s9, 2
      // Predicated region
      $region41: #{_lambda_.5} parent=39 // pred_check
        %p766 = pneg %p106
      $region42: #{_lambda_.5} parent=39 // pred_check_branch
        %768 = sbr.rel (%p766) target = $region44
      $region43: #{_lambda_.5} parent=39 // pred_region
        %p769 = scmp.lt.s32.totalorder %s15, 1
        %s770 = scalar_select %p769, %s15, 1
        %s771 = smul.addr %s770, 4
        %s772 = scalar_lea.vmem %s3, %s771
      $region44: #{_lambda_.5} parent=39 // pred_fallthru
        _
    $region40: #{_lambda_.5} parent=5 // pred_fallthru
      _
  $region6: #{_lambda_.5} parent=0 // loop_footer
    %s13 = sadd.s32 1, %s9
  $region7: #{_lambda_.5} parent=0 // loop_footer_branch
    %8 = sbr.rel target = $region3
  $region8: #{_lambda_.5} parent=0 // loop_exit
    _

// kernel: _lambda_.6
$region0: #{_lambda_.6}
  #allocation0 [shape = 'u32[]', space=smem, size = 0x4, offset = 0x4, fixed_abs, tag = 'smem constant byte address 0x4 - core index']
  #allocation1 [shape = 'u32[144,128]{1,0:T(1,128)}', space=vmem, size = 0x12000, scoped, tag = 'internal scratch']
  %s0 = inlined_call_operand.vmem [shape: bf16[2,16,128], index: 0, kind: input, shape index: {}]
  %s1 = inlined_call_operand.vmem [shape: bf16[3,128,128], index: 1, kind: input, shape index: {}]
  %s2 = inlined_call_operand.vmem [shape: f32[1,128], index: 2, kind: input, shape index: {}]
  %s3 = inlined_call_operand.vmem [shape: bf16[3,128,128], index: 3, kind: input, shape index: {}]
  %s4 = inlined_call_operand.vmem [shape: f32[1,128], index: 4, kind: input, shape index: {}]
  %s5 = inlined_call_operand.vmem [shape: bf16[2,16,128], index: 5, kind: output, shape index: {}]
  %s6 = sld [smem:[#allocation0]]
  $region53: #{_lambda_.6} parent=0
    _
  %s8 = ssub.s32 1, %s6
  %s9 = scalar_select 0, %s8, %s6
  loop: start=0, step=1, limit=4
  $region2: #{_lambda_.6} parent=0 // loop_pre_header
    _
  $region3: #{_lambda_.6} parent=0 // loop_header
    %s11 = sphi 0, %s15
    %p12 = scmp.ge.s32.totalorder %s11, 4
    %s21 = sphi 0, %s23
    %s24 = sphi 0, %s21
    %s25 = sphi 0, %s24
    %s41 = sphi 0, %s25
    %s45 = sphi 0, %s45
    %s47 = sphi 0, %s45
    %s48 = sphi 0, %s47
    %s62 = sphi 0, %s48
    %s66 = sphi 0, %s66
    %s68 = sphi 0, %s66
    %s69 = sphi 0, %s68
    %s83 = sphi 0, %s69
    %s87 = sphi 0, %s87
    %s89 = sphi 0, %s87
    %s90 = sphi 0, %s89
    %s104 = sphi 0, %s90
    %s108 = sphi 0, %s108
    %s110 = sphi 0, %s108
    %s111 = sphi 0, %s110
    %s125 = sphi 0, %s111
    %s131 = sphi 0, %s133
    %s134 = sphi 0, %s131
    %s135 = sphi 0, %s134
    %s151 = sphi 0, %s135
  $region4: #{_lambda_.6} parent=0 // loop_header_branch
    %14 = sbr.rel (%p12) target = $region8
  $region5: #{_lambda_.6} parent=0 // loop_body
    %s16 = ssub.s32 %s11, 1
    %s17 = ssub.s32 %s11, 2
    %s18 = sadd.s32 %s11, 1
    %s19 = ssub.s32 %s11, %s18
    %p20 = scmp.eq.s32.totalorder %s19, 0
    %s22 = sadd.s32 %s21, 1
    %s23 = scalar_select %p20, %s21, %s22
    %p26 = pneg %p20
    %p27 = scmp.eq.s32.totalorder %s11, 1
    %p28 = por %p26, %p27
    %p29 = scmp.ne.s32.totalorder %s21, %s24
    %p30 = scmp.eq.s32.totalorder %s11, 0
    %p31 = por %p29, %p30
    %p32 = scmp.ne.s32.totalorder %s21, %s24
    %p33 = scmp.eq.s32.totalorder %s16, 1
    %p34 = por %p32, %p33
    %p35 = scmp.ne.s32.totalorder %s24, %s25
    %p36 = scmp.eq.s32.totalorder %s16, 0
    %p37 = por %p35, %p36
    %p38 = scmp.ne.s32.totalorder %s24, %s25
    %p39 = scmp.eq.s32.totalorder %s17, 1
    %p40 = por %p38, %p39
    %p42 = scmp.ne.s32.totalorder %s25, %s41
    %p43 = scmp.eq.s32.totalorder %s17, 0
    %p44 = por %p42, %p43
    %s46 = sadd.s32 %s45, 1
    %p49 = scmp.eq.s32.totalorder %s11, 1
    %p50 = scmp.ne.s32.totalorder %s45, %s47
    %p51 = scmp.eq.s32.totalorder %s11, 0
    %p52 = por %p50, %p51
    %p53 = scmp.ne.s32.totalorder %s45, %s47
    %p54 = scmp.eq.s32.totalorder %s16, 1
    %p55 = por %p53, %p54
    %p56 = scmp.ne.s32.totalorder %s47, %s48
    %p57 = scmp.eq.s32.totalorder %s16, 0
    %p58 = por %p56, %p57
    %p59 = scmp.ne.s32.totalorder %s47, %s48
    %p60 = scmp.eq.s32.totalorder %s17, 1
    %p61 = por %p59, %p60
    %p63 = scmp.ne.s32.totalorder %s48, %s62
    %p64 = scmp.eq.s32.totalorder %s17, 0
    %p65 = por %p63, %p64
    %s67 = sadd.s32 %s66, 1
    %p70 = scmp.eq.s32.totalorder %s11, 1
    %p71 = scmp.ne.s32.totalorder %s66, %s68
    %p72 = scmp.eq.s32.totalorder %s11, 0
    %p73 = por %p71, %p72
    %p74 = scmp.ne.s32.totalorder %s66, %s68
    %p75 = scmp.eq.s32.totalorder %s16, 1
    %p76 = por %p74, %p75
    %p77 = scmp.ne.s32.totalorder %s68, %s69
    %p78 = scmp.eq.s32.totalorder %s16, 0
    %p79 = por %p77, %p78
    %p80 = scmp.ne.s32.totalorder %s68, %s69
    %p81 = scmp.eq.s32.totalorder %s17, 1
    %p82 = por %p80, %p81
    %p84 = scmp.ne.s32.totalorder %s69, %s83
    %p85 = scmp.eq.s32.totalorder %s17, 0
    %p86 = por %p84, %p85
    %s88 = sadd.s32 %s87, 1
    %p91 = scmp.eq.s32.totalorder %s11, 1
    %p92 = scmp.ne.s32.totalorder %s87, %s89
    %p93 = scmp.eq.s32.totalorder %s11, 0
    %p94 = por %p92, %p93
    %p95 = scmp.ne.s32.totalorder %s87, %s89
    %p96 = scmp.eq.s32.totalorder %s16, 1
    %p97 = por %p95, %p96
    %p98 = scmp.ne.s32.totalorder %s89, %s90
    %p99 = scmp.eq.s32.totalorder %s16, 0
    %p100 = por %p98, %p99
    %p101 = scmp.ne.s32.totalorder %s89, %s90
    %p102 = scmp.eq.s32.totalorder %s17, 1
    %p103 = por %p101, %p102
    %p105 = scmp.ne.s32.totalorder %s90, %s104
    %p106 = scmp.eq.s32.totalorder %s17, 0
    %p107 = por %p105, %p106
    %s109 = sadd.s32 %s108, 1
    %p112 = scmp.eq.s32.totalorder %s11, 1
    %p113 = scmp.ne.s32.totalorder %s108, %s110
    %p114 = scmp.eq.s32.totalorder %s11, 0
    %p115 = por %p113, %p114
    %p116 = scmp.ne.s32.totalorder %s108, %s110
    %p117 = scmp.eq.s32.totalorder %s16, 1
    %p118 = por %p116, %p117
    %p119 = scmp.ne.s32.totalorder %s110, %s111
    %p120 = scmp.eq.s32.totalorder %s16, 0
    %p121 = por %p119, %p120
    %p122 = scmp.ne.s32.totalorder %s110, %s111
    %p123 = scmp.eq.s32.totalorder %s17, 1
    %p124 = por %p122, %p123
    %p126 = scmp.ne.s32.totalorder %s111, %s125
    %p127 = scmp.eq.s32.totalorder %s17, 0
    %p128 = por %p126, %p127
    %s129 = ssub.s32 %s11, %s18
    %p130 = scmp.eq.s32.totalorder %s129, 0
    %s132 = sadd.s32 %s131, 1
    %s133 = scalar_select %p130, %s131, %s132
    %p136 = pneg %p130
    %p137 = scmp.eq.s32.totalorder %s11, 1
    %p138 = por %p136, %p137
    %p139 = scmp.ne.s32.totalorder %s131, %s134
    %p140 = scmp.eq.s32.totalorder %s11, 0
    %p141 = por %p139, %p140
    %p142 = scmp.ne.s32.totalorder %s131, %s134
    %p143 = scmp.eq.s32.totalorder %s16, 1
    %p144 = por %p142, %p143
    %p145 = scmp.ne.s32.totalorder %s134, %s135
    %p146 = scmp.eq.s32.totalorder %s16, 0
    %p147 = por %p145, %p146
    %p148 = scmp.ne.s32.totalorder %s134, %s135
    %p149 = scmp.eq.s32.totalorder %s17, 1
    %p150 = por %p148, %p149
    %p152 = scmp.ne.s32.totalorder %s135, %s151
    %p153 = scmp.eq.s32.totalorder %s17, 0
    %p154 = por %p152, %p153
    %p155 = scmp.le.s32.totalorder 1, %s11
    %p156 = scmp.lt.s32.totalorder %s11, 3
    %p157 = pnand %p155, %p156
    %p158 = pneg %p157
    // Predicated region
    $region9: #{_lambda_.6} parent=5 // pred_check
      _
    $region10: #{_lambda_.6} parent=5 // pred_check_branch
      %160 = sbr.rel (%p157) target = $region12
    $region11: #{_lambda_.6} parent=5 // pred_region
      %s161 = ssub.s32 %s11, 1
      // Predicated region
      $region13: #{_lambda_.6} parent=11 // pred_check
        %p162 = pneg %p58
      $region14: #{_lambda_.6} parent=11 // pred_check_branch
        %164 = sbr.rel (%p162) target = $region16
      $region15: #{_lambda_.6} parent=11 // pred_region
        _
      $region16: #{_lambda_.6} parent=11 // pred_fallthru
        _
      // Predicated region
      $region17: #{_lambda_.6} parent=11 // pred_check
        %p165 = pneg %p79
      $region18: #{_lambda_.6} parent=11 // pred_check_branch
        %167 = sbr.rel (%p165) target = $region20
      $region19: #{_lambda_.6} parent=11 // pred_region
        _
      $region20: #{_lambda_.6} parent=11 // pred_fallthru
        _
      // Predicated region
      $region21: #{_lambda_.6} parent=11 // pred_check
        %p168 = pneg %p100
      $region22: #{_lambda_.6} parent=11 // pred_check_branch
        %170 = sbr.rel (%p168) target = $region24
      $region23: #{_lambda_.6} parent=11 // pred_region
        _
      $region24: #{_lambda_.6} parent=11 // pred_fallthru
        _
      // Predicated region
      $region25: #{_lambda_.6} parent=11 // pred_check
        %p171 = pneg %p121
      $region26: #{_lambda_.6} parent=11 // pred_check_branch
        %173 = sbr.rel (%p171) target = $region28
      $region27: #{_lambda_.6} parent=11 // pred_region
        _
      $region28: #{_lambda_.6} parent=11 // pred_fallthru
        _
    $region12: #{_lambda_.6} parent=5 // pred_fallthru
      _
    %p174 = scmp.lt.s32.totalorder %s11, 2
    // Predicated region
    $region29: #{_lambda_.6} parent=5 // pred_check
      %p175 = pneg %p174
    $region30: #{_lambda_.6} parent=5 // pred_check_branch
      %177 = sbr.rel (%p175) target = $region32
    $region31: #{_lambda_.6} parent=5 // pred_region
      // Predicated region
      $region33: #{_lambda_.6} parent=31 // pred_check
        %p178 = pneg %p31
      $region34: #{_lambda_.6} parent=31 // pred_check_branch
        %180 = sbr.rel (%p178) target = $region36
      $region35: #{_lambda_.6} parent=31 // pred_region
        %p181 = scmp.lt.s32.totalorder %s11, 1
        %s182 = scalar_select %p181, %s11, 1
        %s183 = smul.addr %s182, 2
        %s184 = smul.addr %s183, 4
        %s185 = scalar_lea.vmem %s0, %s184
      $region36: #{_lambda_.6} parent=31 // pred_fallthru
        _
    $region32: #{_lambda_.6} parent=5 // pred_fallthru
      _
    %p186 = scmp.le.s32.totalorder 1, %s11
    %p187 = scmp.lt.s32.totalorder %s11, 3
    %p188 = pnand %p186, %p187
    %p189 = pneg %p188
    // Predicated region
    $region37: #{_lambda_.6} parent=5 // pred_check
      _
    $region38: #{_lambda_.6} parent=5 // pred_check_branch
      %191 = sbr.rel (%p188) target = $region40
    $region39: #{_lambda_.6} parent=5 // pred_region
      %s192 = ssub.s32 %s11, 1
      %p193 = scmp.lt.s32.totalorder %s16, 1
      %s194 = scalar_select %p193, %s16, 1
      %s195 = smul.addr %s194, 2
      %s196 = smul.addr %s195, 4
      %s197 = scalar_lea.vmem %s0, %s196
      %p198 = pneg %p37
      %p199 = pneg %p34
      %p200 = pneg %p58
      %p201 = pneg %p55
      %p202 = pneg %p79
      %p203 = pneg %p76
      %p204 = pneg %p100
      %p205 = pneg %p97
      %p206 = pneg %p121
      %p207 = pneg %p118
      %p208 = pneg %p147
      %p209 = pneg %p144
      %p210 = scmp.lt.s32.totalorder %s16, 1
      %s211 = scalar_select %p210, %s16, 1
      %s212 = smul.addr %s211, 2
      %s213 = smul.addr %s212, 4
      %s214 = scalar_lea.vmem %s5, %s213
      %p215 = scmp.lt.s32.totalorder %s16, 1
      %s216 = scalar_select %p215, %s16, 1
      %s217 = smul.addr %s216, 2
      %s218 = smul.addr %s217, 4
      %s219 = scalar_lea.vmem %s0, %s218
      %p220 = scmp.lt.s32.totalorder %s16, 1
      %s221 = scalar_select %p220, %s16, 1
      %s222 = smul.addr %s221, 2
      %s223 = smul.addr %s222, 4
      %s224 = scalar_lea.vmem %s5, %s223
      %v226 = vld [vmem:[%s219] sm:$0xf]
      %v227 = vld [vmem:[%s219 + $0x4] sm:$0xf]
      %v228 = vunpack.c.l.bf16 %v226
      %v229 = vunpack.c.l.bf16 %v227
      %vm232 = vcmask 1040384
      %v233 = vrot.slane %v228, 7
      %v234 = vrot.slane %v229, 7
      %v235 = vsel %vm232, %v233, %v234
      %v239 = vsel %vm232, 0.0, %v233
      %v240 = vsel %vm232, %v234, 0.0
      %v241 = vpack.c.bf16 %v235, %v239
      %v242 = vld [vmem:[%s1] sm:$0xf]
      %v243 = vld [vmem:[%s1 + $0x4] sm:$0xf]
      %v244 = vld [vmem:[%s1 + $0x8] sm:$0xf]
      %v245 = vld [vmem:[%s1 + $0xc] sm:$0xf]
      %v246 = vld [vmem:[%s1 + $0x10] sm:$0xf]
      %v247 = vld [vmem:[%s1 + $0x14] sm:$0xf]
      %v248 = vld [vmem:[%s1 + $0x18] sm:$0xf]
      %v249 = vld [vmem:[%s1 + $0x1c] sm:$0xf]
      %v250 = vld [vmem:[%s1 + $0x20] sm:$0xf]
      %v251 = vld [vmem:[%s1 + $0x24] sm:$0xf]
      %v252 = vld [vmem:[%s1 + $0x28] sm:$0xf]
      %v253 = vld [vmem:[%s1 + $0x2c] sm:$0xf]
      %v254 = vld [vmem:[%s1 + $0x30] sm:$0xf]
      %v255 = vld [vmem:[%s1 + $0x34] sm:$0xf]
      %v256 = vld [vmem:[%s1 + $0x38] sm:$0xf]
      %v257 = vld [vmem:[%s1 + $0x3c] sm:$0xf]
      %v258 = vpack.c.bf16 %v240, %v240
      %s259 = scalar_lea.vmem %s1, 64
      %v260 = vld [vmem:[%s259] sm:$0xf]
      %v261 = vld [vmem:[%s259 + $0x4] sm:$0xf]
      %v262 = vld [vmem:[%s259 + $0x8] sm:$0xf]
      %v263 = vld [vmem:[%s259 + $0xc] sm:$0xf]
      %v264 = vld [vmem:[%s259 + $0x10] sm:$0xf]
      %v265 = vld [vmem:[%s259 + $0x14] sm:$0xf]
      %v266 = vld [vmem:[%s259 + $0x18] sm:$0xf]
      %v267 = vld [vmem:[%s259 + $0x1c] sm:$0xf]
      %v268 = vld [vmem:[%s259 + $0x20] sm:$0xf]
      %v269 = vld [vmem:[%s259 + $0x24] sm:$0xf]
      %v270 = vld [vmem:[%s259 + $0x28] sm:$0xf]
      %v271 = vld [vmem:[%s259 + $0x2c] sm:$0xf]
      %v272 = vld [vmem:[%s259 + $0x30] sm:$0xf]
      %v273 = vld [vmem:[%s259 + $0x34] sm:$0xf]
      %v274 = vld [vmem:[%s259 + $0x38] sm:$0xf]
      %v275 = vld [vmem:[%s259 + $0x3c] sm:$0xf]
      %vm276 = vsmask.f32 7424
      %v278 = vshrl.u32 %v241, 16
      %v280 = vshll.u32 %v241, 16
      %v282 = vrot.slane %v280, 1
      %v283 = vor.u32 %v278, %v282
      %v285 = vshll.u32 %v258, 16
      %v287 = vrot.slane %v285, 1
      %v288 = vsel %vm276, %v283, %v287
      %v306 = vunpack.c.l.b16 %v260
      %v307 = vunpack.c.l.b16 %v261
      %v308 = vunpack.c.l.b16 %v262
      %v309 = vunpack.c.l.b16 %v263
      %v310 = vunpack.c.l.b16 %v264
      %v311 = vunpack.c.l.b16 %v265
      %v312 = vunpack.c.l.b16 %v266
      %v313 = vunpack.c.l.b16 %v267
      %v314 = vunpack.c.l.b16 %v268
      %v315 = vunpack.c.l.b16 %v269
      %v316 = vunpack.c.l.b16 %v270
      %v317 = vunpack.c.l.b16 %v271
      %v318 = vunpack.c.l.b16 %v272
      %v319 = vunpack.c.l.b16 %v273
      %v320 = vunpack.c.l.b16 %v274
      %v321 = vunpack.c.l.b16 %v275
      %v322 = vpack.c.b16 %v307, %v306
      %v323 = vpack.c.b16 %v309, %v308
      %v324 = vpack.c.b16 %v311, %v310
      %v325 = vpack.c.b16 %v313, %v312
      %v326 = vpack.c.b16 %v315, %v314
      %v327 = vpack.c.b16 %v317, %v316
      %v328 = vpack.c.b16 %v319, %v318
      %v329 = vpack.c.b16 %v321, %v320
      %338 = vmatprep.subr.bf16.mxu0 0
      %339 = vmatpush1.bf16.msra.mxu0 %v329
      %340 = vmatprep.subr.bf16.mxu0 0
      %341 = vmatpush1.bf16.msra.mxu0 %v328
      %342 = vmatprep.subr.bf16.mxu0 0
      %343 = vmatpush1.bf16.msra.mxu0 %v327
      %344 = vmatprep.subr.bf16.mxu0 0
      %345 = vmatpush1.bf16.msra.mxu0 %v326
      %346 = vmatprep.subr.bf16.mxu0 0
      %347 = vmatpush1.bf16.msra.mxu0 %v325
      %348 = vmatprep.subr.bf16.mxu0 0
      %349 = vmatpush1.bf16.msra.mxu0 %v324
      %350 = vmatprep.subr.bf16.mxu0 0
      %351 = vmatpush1.bf16.msra.mxu0 %v323
      %352 = vmatprep.subr.bf16.mxu0 0
      %353 = vmatpush1.bf16.msra.mxu0 %v322
      %354 = vmatprep.subr.bf16.mxu0 0
      %355 = vmatpush2.bf16.msra.mxu0 0
      %356 = vmatprep.subr.bf16.mxu0 0
      %357 = vmatpush2.bf16.msra.mxu0 0
      %358 = vmatprep.subr.bf16.mxu0 0
      %359 = vmatpush2.bf16.msra.mxu0 0
      %360 = vmatprep.subr.bf16.mxu0 0
      %361 = vmatpush2.bf16.msra.mxu0 0
      %362 = vmatprep.subr.bf16.mxu0 0
      %363 = vmatpush2.bf16.msra.mxu0 0
      %364 = vmatprep.subr.bf16.mxu0 0
      %365 = vmatpush2.bf16.msra.mxu0 0
      %366 = vmatprep.subr.bf16.mxu0 0
      %367 = vmatpush2.bf16.msra.mxu0 0
      %368 = vmatprep.subr.bf16.mxu0 0
      %369 = vmatpush2.bf16.msra.mxu0 0
      %370 = vmatprep.mubr.bf16.mxu0 0
      %371 = vmatmul.mubr.bf16.gmra.mxu0 %v288
      %v372 = vpop.f32.mrf.mxu0
      %v373 = vadd.f32 0.0, %v372
      %v374 = vpop.f32.mrf.mxu0
      %v375 = vpop.f32.mrf.mxu0
      %v376 = vadd.f32 0.0, %v375
      %v377 = vpop.f32.mrf.mxu0
      %378 = vdwg.mxu0
      %v395 = vunpack.c.l.b16 %v242
      %v396 = vunpack.c.l.b16 %v243
      %v397 = vunpack.c.l.b16 %v244
      %v398 = vunpack.c.l.b16 %v245
      %v399 = vunpack.c.l.b16 %v246
      %v400 = vunpack.c.l.b16 %v247
      %v401 = vunpack.c.l.b16 %v248
      %v402 = vunpack.c.l.b16 %v249
      %v403 = vunpack.c.l.b16 %v250
      %v404 = vunpack.c.l.b16 %v251
      %v405 = vunpack.c.l.b16 %v252
      %v406 = vunpack.c.l.b16 %v253
      %v407 = vunpack.c.l.b16 %v254
      %v408 = vunpack.c.l.b16 %v255
      %v409 = vunpack.c.l.b16 %v256
      %v410 = vunpack.c.l.b16 %v257
      %v411 = vpack.c.b16 %v396, %v395
      %v412 = vpack.c.b16 %v398, %v397
      %v413 = vpack.c.b16 %v400, %v399
      %v414 = vpack.c.b16 %v402, %v401
      %v415 = vpack.c.b16 %v404, %v403
      %v416 = vpack.c.b16 %v406, %v405
      %v417 = vpack.c.b16 %v408, %v407
      %v418 = vpack.c.b16 %v410, %v409
      %427 = vmatprep.subr.bf16.mxu0 0
      %428 = vmatpush1.bf16.msra.mxu0 %v418
      %429 = vmatprep.subr.bf16.mxu0 0
      %430 = vmatpush1.bf16.msra.mxu0 %v417
      %431 = vmatprep.subr.bf16.mxu0 0
      %432 = vmatpush1.bf16.msra.mxu0 %v416
      %433 = vmatprep.subr.bf16.mxu0 0
      %434 = vmatpush1.bf16.msra.mxu0 %v415
      %435 = vmatprep.subr.bf16.mxu0 0
      %436 = vmatpush1.bf16.msra.mxu0 %v414
      %437 = vmatprep.subr.bf16.mxu0 0
      %438 = vmatpush1.bf16.msra.mxu0 %v413
      %439 = vmatprep.subr.bf16.mxu0 0
      %440 = vmatpush1.bf16.msra.mxu0 %v412
      %441 = vmatprep.subr.bf16.mxu0 0
      %442 = vmatpush1.bf16.msra.mxu0 %v411
      %443 = vmatprep.subr.bf16.mxu0 0
      %444 = vmatpush2.bf16.msra.mxu0 0
      %445 = vmatprep.subr.bf16.mxu0 0
      %446 = vmatpush2.bf16.msra.mxu0 0
      %447 = vmatprep.subr.bf16.mxu0 0
      %448 = vmatpush2.bf16.msra.mxu0 0
      %449 = vmatprep.subr.bf16.mxu0 0
      %450 = vmatpush2.bf16.msra.mxu0 0
      %451 = vmatprep.subr.bf16.mxu0 0
      %452 = vmatpush2.bf16.msra.mxu0 0
      %453 = vmatprep.subr.bf16.mxu0 0
      %454 = vmatpush2.bf16.msra.mxu0 0
      %455 = vmatprep.subr.bf16.mxu0 0
      %456 = vmatpush2.bf16.msra.mxu0 0
      %457 = vmatprep.subr.bf16.mxu0 0
      %458 = vmatpush2.bf16.msra.mxu0 0
      %459 = vmatprep.mubr.bf16.mxu0 0
      %460 = vmatmul.mubr.bf16.gmra.mxu0 %v241
      %v461 = vpop.f32.mrf.mxu0
      %v462 = vadd.f32 %v373, %v461
      %v463 = vpop.f32.mrf.mxu0
      %v464 = vpop.f32.mrf.mxu0
      %v465 = vadd.f32 %v376, %v464
      %v466 = vpop.f32.mrf.mxu0
      %467 = vdwg.mxu0
      %s468 = scalar_lea.vmem %s1, 128
      %v469 = vld [vmem:[%s468] sm:$0xf]
      %v470 = vld [vmem:[%s468 + $0x4] sm:$0xf]
      %v471 = vld [vmem:[%s468 + $0x8] sm:$0xf]
      %v472 = vld [vmem:[%s468 + $0xc] sm:$0xf]
      %v473 = vld [vmem:[%s468 + $0x10] sm:$0xf]
      %v474 = vld [vmem:[%s468 + $0x14] sm:$0xf]
      %v475 = vld [vmem:[%s468 + $0x18] sm:$0xf]
      %v476 = vld [vmem:[%s468 + $0x1c] sm:$0xf]
      %v477 = vld [vmem:[%s468 + $0x20] sm:$0xf]
      %v478 = vld [vmem:[%s468 + $0x24] sm:$0xf]
      %v479 = vld [vmem:[%s468 + $0x28] sm:$0xf]
      %v480 = vld [vmem:[%s468 + $0x2c] sm:$0xf]
      %v481 = vld [vmem:[%s468 + $0x30] sm:$0xf]
      %v482 = vld [vmem:[%s468 + $0x34] sm:$0xf]
      %v483 = vld [vmem:[%s468 + $0x38] sm:$0xf]
      %v484 = vld [vmem:[%s468 + $0x3c] sm:$0xf]
      %vm487 = vcmask 1046528
      %v488 = vrot.slane %v241, 1
      %v489 = vrot.slane %v258, 1
      %v490 = vsel %vm487, %v488, %v489
      %v508 = vunpack.c.l.b16 %v469
      %v509 = vunpack.c.l.b16 %v470
      %v510 = vunpack.c.l.b16 %v471
      %v511 = vunpack.c.l.b16 %v472
      %v512 = vunpack.c.l.b16 %v473
      %v513 = vunpack.c.l.b16 %v474
      %v514 = vunpack.c.l.b16 %v475
      %v515 = vunpack.c.l.b16 %v476
      %v516 = vunpack.c.l.b16 %v477
      %v517 = vunpack.c.l.b16 %v478
      %v518 = vunpack.c.l.b16 %v479
      %v519 = vunpack.c.l.b16 %v480
      %v520 = vunpack.c.l.b16 %v481
      %v521 = vunpack.c.l.b16 %v482
      %v522 = vunpack.c.l.b16 %v483
      %v523 = vunpack.c.l.b16 %v484
      %v524 = vpack.c.b16 %v509, %v508
      %v525 = vpack.c.b16 %v511, %v510
      %v526 = vpack.c.b16 %v513, %v512
      %v527 = vpack.c.b16 %v515, %v514
      %v528 = vpack.c.b16 %v517, %v516
      %v529 = vpack.c.b16 %v519, %v518
      %v530 = vpack.c.b16 %v521, %v520
      %v531 = vpack.c.b16 %v523, %v522
      %540 = vmatprep.subr.bf16.mxu0 0
      %541 = vmatpush1.bf16.msra.mxu0 %v531
      %542 = vmatprep.subr.bf16.mxu0 0
      %543 = vmatpush1.bf16.msra.mxu0 %v530
      %544 = vmatprep.subr.bf16.mxu0 0
      %545 = vmatpush1.bf16.msra.mxu0 %v529
      %546 = vmatprep.subr.bf16.mxu0 0
      %547 = vmatpush1.bf16.msra.mxu0 %v528
      %548 = vmatprep.subr.bf16.mxu0 0
      %549 = vmatpush1.bf16.msra.mxu0 %v527
      %550 = vmatprep.subr.bf16.mxu0 0
      %551 = vmatpush1.bf16.msra.mxu0 %v526
      %552 = vmatprep.subr.bf16.mxu0 0
      %553 = vmatpush1.bf16.msra.mxu0 %v525
      %554 = vmatprep.subr.bf16.mxu0 0
      %555 = vmatpush1.bf16.msra.mxu0 %v524
      %556 = vmatprep.subr.bf16.mxu0 0
      %557 = vmatpush2.bf16.msra.mxu0 0
      %558 = vmatprep.subr.bf16.mxu0 0
      %559 = vmatpush2.bf16.msra.mxu0 0
      %560 = vmatprep.subr.bf16.mxu0 0
      %561 = vmatpush2.bf16.msra.mxu0 0
      %562 = vmatprep.subr.bf16.mxu0 0
      %563 = vmatpush2.bf16.msra.mxu0 0
      %564 = vmatprep.subr.bf16.mxu0 0
      %565 = vmatpush2.bf16.msra.mxu0 0
      %566 = vmatprep.subr.bf16.mxu0 0
      %567 = vmatpush2.bf16.msra.mxu0 0
      %568 = vmatprep.subr.bf16.mxu0 0
      %569 = vmatpush2.bf16.msra.mxu0 0
      %570 = vmatprep.subr.bf16.mxu0 0
      %571 = vmatpush2.bf16.msra.mxu0 0
      %572 = vmatprep.mubr.bf16.mxu0 0
      %573 = vmatmul.mubr.bf16.gmra.mxu0 %v490
      %v574 = vpop.f32.mrf.mxu0
      %v575 = vadd.f32 0.0, %v574
      %v576 = vpop.f32.mrf.mxu0
      %v577 = vpop.f32.mrf.mxu0
      %v578 = vadd.f32 0.0, %v577
      %v579 = vpop.f32.mrf.mxu0
      %580 = vdwg.mxu0
      %v581 = vadd.f32 %v462, %v575
      %v582 = vadd.f32 %v465, %v578
      %v583 = vld [vmem:[%s2] sm:$0x1]
      %v585 = vlaneseq
      %v586 = vshrl.u32 %v585, 7
      %v587 = vsub.s32 0, %v586
      %v588 = vrot.slane %v583, %v587
      %v590 = vadd.f32 %v581, %v588
      %v591 = vadd.f32 %v582, %v588
      %v592 = vmax.f32 %v590, 0.0
      %v593 = vmax.f32 %v591, 0.0
      %v596 = vrot.slane %v592, 7
      %v597 = vrot.slane %v593, 7
      %v598 = vsel %vm232, %v596, %v597
      %v602 = vsel %vm232, 0.0, %v596
      %v603 = vsel %vm232, %v597, 0.0
      %v604 = vpack.c.bf16 %v598, %v602
      %v605 = vld [vmem:[%s3] sm:$0xf]
      %v606 = vld [vmem:[%s3 + $0x4] sm:$0xf]
      %v607 = vld [vmem:[%s3 + $0x8] sm:$0xf]
      %v608 = vld [vmem:[%s3 + $0xc] sm:$0xf]
      %v609 = vld [vmem:[%s3 + $0x10] sm:$0xf]
      %v610 = vld [vmem:[%s3 + $0x14] sm:$0xf]
      %v611 = vld [vmem:[%s3 + $0x18] sm:$0xf]
      %v612 = vld [vmem:[%s3 + $0x1c] sm:$0xf]
      %v613 = vld [vmem:[%s3 + $0x20] sm:$0xf]
      %v614 = vld [vmem:[%s3 + $0x24] sm:$0xf]
      %v615 = vld [vmem:[%s3 + $0x28] sm:$0xf]
      %v616 = vld [vmem:[%s3 + $0x2c] sm:$0xf]
      %v617 = vld [vmem:[%s3 + $0x30] sm:$0xf]
      %v618 = vld [vmem:[%s3 + $0x34] sm:$0xf]
      %v619 = vld [vmem:[%s3 + $0x38] sm:$0xf]
      %v620 = vld [vmem:[%s3 + $0x3c] sm:$0xf]
      %v621 = vpack.c.bf16 %v603, %v603
      %s622 = scalar_lea.vmem %s3, 64
      %v623 = vld [vmem:[%s622] sm:$0xf]
      %v624 = vld [vmem:[%s622 + $0x4] sm:$0xf]
      %v625 = vld [vmem:[%s622 + $0x8] sm:$0xf]
      %v626 = vld [vmem:[%s622 + $0xc] sm:$0xf]
      %v627 = vld [vmem:[%s622 + $0x10] sm:$0xf]
      %v628 = vld [vmem:[%s622 + $0x14] sm:$0xf]
      %v629 = vld [vmem:[%s622 + $0x18] sm:$0xf]
      %v630 = vld [vmem:[%s622 + $0x1c] sm:$0xf]
      %v631 = vld [vmem:[%s622 + $0x20] sm:$0xf]
      %v632 = vld [vmem:[%s622 + $0x24] sm:$0xf]
      %v633 = vld [vmem:[%s622 + $0x28] sm:$0xf]
      %v634 = vld [vmem:[%s622 + $0x2c] sm:$0xf]
      %v635 = vld [vmem:[%s622 + $0x30] sm:$0xf]
      %v636 = vld [vmem:[%s622 + $0x34] sm:$0xf]
      %v637 = vld [vmem:[%s622 + $0x38] sm:$0xf]
      %v638 = vld [vmem:[%s622 + $0x3c] sm:$0xf]
      %v640 = vshrl.u32 %v604, 16
      %v642 = vshll.u32 %v604, 16
      %v644 = vrot.slane %v642, 1
      %v645 = vor.u32 %v640, %v644
      %v647 = vshll.u32 %v621, 16
      %v649 = vrot.slane %v647, 1
      %v650 = vsel %vm276, %v645, %v649
      %v668 = vunpack.c.l.b16 %v623
      %v669 = vunpack.c.l.b16 %v624
      %v670 = vunpack.c.l.b16 %v625
      %v671 = vunpack.c.l.b16 %v626
      %v672 = vunpack.c.l.b16 %v627
      %v673 = vunpack.c.l.b16 %v628
      %v674 = vunpack.c.l.b16 %v629
      %v675 = vunpack.c.l.b16 %v630
      %v676 = vunpack.c.l.b16 %v631
      %v677 = vunpack.c.l.b16 %v632
      %v678 = vunpack.c.l.b16 %v633
      %v679 = vunpack.c.l.b16 %v634
      %v680 = vunpack.c.l.b16 %v635
      %v681 = vunpack.c.l.b16 %v636
      %v682 = vunpack.c.l.b16 %v637
      %v683 = vunpack.c.l.b16 %v638
      %v684 = vpack.c.b16 %v669, %v668
      %v685 = vpack.c.b16 %v671, %v670
      %v686 = vpack.c.b16 %v673, %v672
      %v687 = vpack.c.b16 %v675, %v674
      %v688 = vpack.c.b16 %v677, %v676
      %v689 = vpack.c.b16 %v679, %v678
      %v690 = vpack.c.b16 %v681, %v680
      %v691 = vpack.c.b16 %v683, %v682
      %700 = vmatprep.subr.bf16.mxu0 0
      %701 = vmatpush1.bf16.msra.mxu0 %v691
      %702 = vmatprep.subr.bf16.mxu0 0
      %703 = vmatpush1.bf16.msra.mxu0 %v690
      %704 = vmatprep.subr.bf16.mxu0 0
      %705 = vmatpush1.bf16.msra.mxu0 %v689
      %706 = vmatprep.subr.bf16.mxu0 0
      %707 = vmatpush1.bf16.msra.mxu0 %v688
      %708 = vmatprep.subr.bf16.mxu0 0
      %709 = vmatpush1.bf16.msra.mxu0 %v687
      %710 = vmatprep.subr.bf16.mxu0 0
      %711 = vmatpush1.bf16.msra.mxu0 %v686
      %712 = vmatprep.subr.bf16.mxu0 0
      %713 = vmatpush1.bf16.msra.mxu0 %v685
      %714 = vmatprep.subr.bf16.mxu0 0
      %715 = vmatpush1.bf16.msra.mxu0 %v684
      %716 = vmatprep.subr.bf16.mxu0 0
      %717 = vmatpush2.bf16.msra.mxu0 0
      %718 = vmatprep.subr.bf16.mxu0 0
      %719 = vmatpush2.bf16.msra.mxu0 0
      %720 = vmatprep.subr.bf16.mxu0 0
      %721 = vmatpush2.bf16.msra.mxu0 0
      %722 = vmatprep.subr.bf16.mxu0 0
      %723 = vmatpush2.bf16.msra.mxu0 0
      %724 = vmatprep.subr.bf16.mxu0 0
      %725 = vmatpush2.bf16.msra.mxu0 0
      %726 = vmatprep.subr.bf16.mxu0 0
      %727 = vmatpush2.bf16.msra.mxu0 0
      %728 = vmatprep.subr.bf16.mxu0 0
      %729 = vmatpush2.bf16.msra.mxu0 0
      %730 = vmatprep.subr.bf16.mxu0 0
      %731 = vmatpush2.bf16.msra.mxu0 0
      %732 = vmatprep.mubr.bf16.mxu0 0
      %733 = vmatmul.mubr.bf16.gmra.mxu0 %v650
      %v734 = vpop.f32.mrf.mxu0
      %v735 = vadd.f32 0.0, %v734
      %v736 = vpop.f32.mrf.mxu0
      %v737 = vpop.f32.mrf.mxu0
      %v738 = vadd.f32 0.0, %v737
      %v739 = vpop.f32.mrf.mxu0
      %740 = vdwg.mxu0
      %v757 = vunpack.c.l.b16 %v605
      %v758 = vunpack.c.l.b16 %v606
      %v759 = vunpack.c.l.b16 %v607
      %v760 = vunpack.c.l.b16 %v608
      %v761 = vunpack.c.l.b16 %v609
      %v762 = vunpack.c.l.b16 %v610
      %v763 = vunpack.c.l.b16 %v611
      %v764 = vunpack.c.l.b16 %v612
      %v765 = vunpack.c.l.b16 %v613
      %v766 = vunpack.c.l.b16 %v614
      %v767 = vunpack.c.l.b16 %v615
      %v768 = vunpack.c.l.b16 %v616
      %v769 = vunpack.c.l.b16 %v617
      %v770 = vunpack.c.l.b16 %v618
      %v771 = vunpack.c.l.b16 %v619
      %v772 = vunpack.c.l.b16 %v620
      %v773 = vpack.c.b16 %v758, %v757
      %v774 = vpack.c.b16 %v760, %v759
      %v775 = vpack.c.b16 %v762, %v761
      %v776 = vpack.c.b16 %v764, %v763
      %v777 = vpack.c.b16 %v766, %v765
      %v778 = vpack.c.b16 %v768, %v767
      %v779 = vpack.c.b16 %v770, %v769
      %v780 = vpack.c.b16 %v772, %v771
      %789 = vmatprep.subr.bf16.mxu0 0
      %790 = vmatpush1.bf16.msra.mxu0 %v780
      %791 = vmatprep.subr.bf16.mxu0 0
      %792 = vmatpush1.bf16.msra.mxu0 %v779
      %793 = vmatprep.subr.bf16.mxu0 0
      %794 = vmatpush1.bf16.msra.mxu0 %v778
      %795 = vmatprep.subr.bf16.mxu0 0
      %796 = vmatpush1.bf16.msra.mxu0 %v777
      %797 = vmatprep.subr.bf16.mxu0 0
      %798 = vmatpush1.bf16.msra.mxu0 %v776
      %799 = vmatprep.subr.bf16.mxu0 0
      %800 = vmatpush1.bf16.msra.mxu0 %v775
      %801 = vmatprep.subr.bf16.mxu0 0
      %802 = vmatpush1.bf16.msra.mxu0 %v774
      %803 = vmatprep.subr.bf16.mxu0 0
      %804 = vmatpush1.bf16.msra.mxu0 %v773
      %805 = vmatprep.subr.bf16.mxu0 0
      %806 = vmatpush2.bf16.msra.mxu0 0
      %807 = vmatprep.subr.bf16.mxu0 0
      %808 = vmatpush2.bf16.msra.mxu0 0
      %809 = vmatprep.subr.bf16.mxu0 0
      %810 = vmatpush2.bf16.msra.mxu0 0
      %811 = vmatprep.subr.bf16.mxu0 0
      %812 = vmatpush2.bf16.msra.mxu0 0
      %813 = vmatprep.subr.bf16.mxu0 0
      %814 = vmatpush2.bf16.msra.mxu0 0
      %815 = vmatprep.subr.bf16.mxu0 0
      %816 = vmatpush2.bf16.msra.mxu0 0
      %817 = vmatprep.subr.bf16.mxu0 0
      %818 = vmatpush2.bf16.msra.mxu0 0
      %819 = vmatprep.subr.bf16.mxu0 0
      %820 = vmatpush2.bf16.msra.mxu0 0
      %821 = vmatprep.mubr.bf16.mxu0 0
      %822 = vmatmul.mubr.bf16.gmra.mxu0 %v604
      %v823 = vpop.f32.mrf.mxu0
      %v824 = vadd.f32 %v735, %v823
      %v825 = vpop.f32.mrf.mxu0
      %v826 = vpop.f32.mrf.mxu0
      %v827 = vadd.f32 %v738, %v826
      %v828 = vpop.f32.mrf.mxu0
      %829 = vdwg.mxu0
      %s830 = scalar_lea.vmem %s3, 128
      %v831 = vld [vmem:[%s830] sm:$0xf]
      %v832 = vld [vmem:[%s830 + $0x4] sm:$0xf]
      %v833 = vld [vmem:[%s830 + $0x8] sm:$0xf]
      %v834 = vld [vmem:[%s830 + $0xc] sm:$0xf]
      %v835 = vld [vmem:[%s830 + $0x10] sm:$0xf]
      %v836 = vld [vmem:[%s830 + $0x14] sm:$0xf]
      %v837 = vld [vmem:[%s830 + $0x18] sm:$0xf]
      %v838 = vld [vmem:[%s830 + $0x1c] sm:$0xf]
      %v839 = vld [vmem:[%s830 + $0x20] sm:$0xf]
      %v840 = vld [vmem:[%s830 + $0x24] sm:$0xf]
      %v841 = vld [vmem:[%s830 + $0x28] sm:$0xf]
      %v842 = vld [vmem:[%s830 + $0x2c] sm:$0xf]
      %v843 = vld [vmem:[%s830 + $0x30] sm:$0xf]
      %v844 = vld [vmem:[%s830 + $0x34] sm:$0xf]
      %v845 = vld [vmem:[%s830 + $0x38] sm:$0xf]
      %v846 = vld [vmem:[%s830 + $0x3c] sm:$0xf]
      %v849 = vrot.slane %v604, 1
      %v850 = vrot.slane %v621, 1
      %v851 = vsel %vm487, %v849, %v850
      %v869 = vunpack.c.l.b16 %v831
      %v870 = vunpack.c.l.b16 %v832
      %v871 = vunpack.c.l.b16 %v833
      %v872 = vunpack.c.l.b16 %v834
      %v873 = vunpack.c.l.b16 %v835
      %v874 = vunpack.c.l.b16 %v836
      %v875 = vunpack.c.l.b16 %v837
      %v876 = vunpack.c.l.b16 %v838
      %v877 = vunpack.c.l.b16 %v839
      %v878 = vunpack.c.l.b16 %v840
      %v879 = vunpack.c.l.b16 %v841
      %v880 = vunpack.c.l.b16 %v842
      %v881 = vunpack.c.l.b16 %v843
      %v882 = vunpack.c.l.b16 %v844
      %v883 = vunpack.c.l.b16 %v845
      %v884 = vunpack.c.l.b16 %v846
      %v885 = vpack.c.b16 %v870, %v869
      %v886 = vpack.c.b16 %v872, %v871
      %v887 = vpack.c.b16 %v874, %v873
      %v888 = vpack.c.b16 %v876, %v875
      %v889 = vpack.c.b16 %v878, %v877
      %v890 = vpack.c.b16 %v880, %v879
      %v891 = vpack.c.b16 %v882, %v881
      %v892 = vpack.c.b16 %v884, %v883
      %901 = vmatprep.subr.bf16.mxu0 0
      %902 = vmatpush1.bf16.msra.mxu0 %v892
      %903 = vmatprep.subr.bf16.mxu0 0
      %904 = vmatpush1.bf16.msra.mxu0 %v891
      %905 = vmatprep.subr.bf16.mxu0 0
      %906 = vmatpush1.bf16.msra.mxu0 %v890
      %907 = vmatprep.subr.bf16.mxu0 0
      %908 = vmatpush1.bf16.msra.mxu0 %v889
      %909 = vmatprep.subr.bf16.mxu0 0
      %910 = vmatpush1.bf16.msra.mxu0 %v888
      %911 = vmatprep.subr.bf16.mxu0 0
      %912 = vmatpush1.bf16.msra.mxu0 %v887
      %913 = vmatprep.subr.bf16.mxu0 0
      %914 = vmatpush1.bf16.msra.mxu0 %v886
      %915 = vmatprep.subr.bf16.mxu0 0
      %916 = vmatpush1.bf16.msra.mxu0 %v885
      %917 = vmatprep.subr.bf16.mxu0 0
      %918 = vmatpush2.bf16.msra.mxu0 0
      %919 = vmatprep.subr.bf16.mxu0 0
      %920 = vmatpush2.bf16.msra.mxu0 0
      %921 = vmatprep.subr.bf16.mxu0 0
      %922 = vmatpush2.bf16.msra.mxu0 0
      %923 = vmatprep.subr.bf16.mxu0 0
      %924 = vmatpush2.bf16.msra.mxu0 0
      %925 = vmatprep.subr.bf16.mxu0 0
      %926 = vmatpush2.bf16.msra.mxu0 0
      %927 = vmatprep.subr.bf16.mxu0 0
      %928 = vmatpush2.bf16.msra.mxu0 0
      %929 = vmatprep.subr.bf16.mxu0 0
      %930 = vmatpush2.bf16.msra.mxu0 0
      %931 = vmatprep.subr.bf16.mxu0 0
      %932 = vmatpush2.bf16.msra.mxu0 0
      %933 = vmatprep.mubr.bf16.mxu0 0
      %934 = vmatmul.mubr.bf16.gmra.mxu0 %v851
      %v935 = vpop.f32.mrf.mxu0
      %v936 = vadd.f32 0.0, %v935
      %v937 = vpop.f32.mrf.mxu0
      %v938 = vpop.f32.mrf.mxu0
      %v939 = vadd.f32 0.0, %v938
      %v940 = vpop.f32.mrf.mxu0
      %941 = vdwg.mxu0
      %v942 = vadd.f32 %v824, %v936
      %v943 = vadd.f32 %v827, %v939
      %v944 = vld [vmem:[%s4] sm:$0x1]
      %v946 = vlaneseq
      %v947 = vshrl.u32 %v946, 7
      %v948 = vsub.s32 0, %v947
      %v949 = vrot.slane %v944, %v948
      %v951 = vadd.f32 %v942, %v949
      %v952 = vadd.f32 %v943, %v949
      %v953 = vadd.f32 %v951, %v228
      %v954 = vadd.f32 %v952, %v229
      %v955 = vmax.f32 %v953, 0.0
      %v956 = vmax.f32 %v954, 0.0
      %v957 = vpack.c.bf16 %v956, %v955
      %v959 = vunpack.c.l.b16 %v957
      %v960 = vunpack.c.h.b16 %v957
      %v961 = vpack.c.b16 %v959, %v959
      %v962 = vpack.c.b16 %v960, %v960
      %965 = vst [vmem:[%s224] sm:$0xf] %v961
      %966 = vst [vmem:[%s224 + $0x4] sm:$0xf] %v962
      %p967 = scmp.lt.s32.totalorder %s16, 1
      %s968 = scalar_select %p967, %s16, 1
      %s969 = smul.addr %s968, 2
      %s970 = smul.addr %s969, 4
      %s971 = scalar_lea.vmem %s5, %s970
      // Predicated region
      $region41: #{_lambda_.6} parent=39 // pred_check
        %p972 = pneg %p144
      $region42: #{_lambda_.6} parent=39 // pred_check_branch
        %974 = sbr.rel (%p972) target = $region44
      $region43: #{_lambda_.6} parent=39 // pred_region
        _
      $region44: #{_lambda_.6} parent=39 // pred_fallthru
        _
    $region40: #{_lambda_.6} parent=5 // pred_fallthru
      _
    %p975 = scmp.le.s32.totalorder 2, %s11
    // Predicated region
    $region45: #{_lambda_.6} parent=5 // pred_check
      %p976 = pneg %p975
    $region46: #{_lambda_.6} parent=5 // pred_check_branch
      %978 = sbr.rel (%p976) target = $region48
    $region47: #{_lambda_.6} parent=5 // pred_region
      %s979 = ssub.s32 %s11, 2
      // Predicated region
      $region49: #{_lambda_.6} parent=47 // pred_check
        %p980 = pneg %p150
      $region50: #{_lambda_.6} parent=47 // pred_check_branch
        %982 = sbr.rel (%p980) target = $region52
      $region51: #{_lambda_.6} parent=47 // pred_region
        %p983 = scmp.lt.s32.totalorder %s17, 1
        %s984 = scalar_select %p983, %s17, 1
        %s985 = smul.addr %s984, 2
        %s986 = smul.addr %s985, 4
        %s987 = scalar_lea.vmem %s5, %s986
      $region52: #{_lambda_.6} parent=47 // pred_fallthru
        _
    $region48: #{_lambda_.6} parent=5 // pred_fallthru
      _
  $region6: #{_lambda_.6} parent=0 // loop_footer
    %s15 = sadd.s32 1, %s11
  $region7: #{_lambda_.6} parent=0 // loop_footer_branch
    %10 = sbr.rel target = $region3
  $region8: #{_lambda_.6} parent=0 // loop_exit
    _

// kernel: _lambda_.8
$region0: #{_lambda_.8}
  #allocation0 [shape = 'u32[]', space=smem, size = 0x4, offset = 0x4, fixed_abs, tag = 'smem constant byte address 0x4 - core index']
  #allocation1 [shape = 'u32[144,128]{1,0:T(1,128)}', space=vmem, size = 0x12000, scoped, tag = 'internal scratch']
  %s0 = inlined_call_operand.vmem [shape: bf16[2,16,128], index: 0, kind: input, shape index: {}]
  %s1 = inlined_call_operand.vmem [shape: bf16[2,8,128], index: 1, kind: input, shape index: {}]
  %s2 = inlined_call_operand.vmem [shape: bf16[1,128,128], index: 2, kind: input, shape index: {}]
  %s3 = inlined_call_operand.vmem [shape: f32[16,8], index: 3, kind: input, shape index: {}]
  %s4 = inlined_call_operand.vmem [shape: f32[1,128], index: 4, kind: input, shape index: {}]
  %s5 = inlined_call_operand.vmem [shape: bf16[2,16,128], index: 5, kind: output, shape index: {}]
  %s6 = sld [smem:[#allocation0]]
  $region53: #{_lambda_.8} parent=0
    _
  %s8 = ssub.s32 1, %s6
  %s9 = scalar_select 0, %s8, %s6
  loop: start=0, step=1, limit=4
  $region2: #{_lambda_.8} parent=0 // loop_pre_header
    _
  $region3: #{_lambda_.8} parent=0 // loop_header
    %s11 = sphi 0, %s15
    %p12 = scmp.ge.s32.totalorder %s11, 4
    %s21 = sphi 0, %s23
    %s24 = sphi 0, %s21
    %s25 = sphi 0, %s24
    %s41 = sphi 0, %s25
    %s47 = sphi 0, %s49
    %s50 = sphi 0, %s47
    %s51 = sphi 0, %s50
    %s67 = sphi 0, %s51
    %s71 = sphi 0, %s71
    %s73 = sphi 0, %s71
    %s74 = sphi 0, %s73
    %s88 = sphi 0, %s74
    %s92 = sphi 0, %s92
    %s94 = sphi 0, %s92
    %s95 = sphi 0, %s94
    %s109 = sphi 0, %s95
    %s113 = sphi 0, %s113
    %s115 = sphi 0, %s113
    %s116 = sphi 0, %s115
    %s130 = sphi 0, %s116
    %s136 = sphi 0, %s138
    %s139 = sphi 0, %s136
    %s140 = sphi 0, %s139
    %s156 = sphi 0, %s140
  $region4: #{_lambda_.8} parent=0 // loop_header_branch
    %14 = sbr.rel (%p12) target = $region8
  $region5: #{_lambda_.8} parent=0 // loop_body
    %s16 = ssub.s32 %s11, 1
    %s17 = ssub.s32 %s11, 2
    %s18 = sadd.s32 %s11, 1
    %s19 = ssub.s32 %s11, %s18
    %p20 = scmp.eq.s32.totalorder %s19, 0
    %s22 = sadd.s32 %s21, 1
    %s23 = scalar_select %p20, %s21, %s22
    %p26 = pneg %p20
    %p27 = scmp.eq.s32.totalorder %s11, 1
    %p28 = por %p26, %p27
    %p29 = scmp.ne.s32.totalorder %s21, %s24
    %p30 = scmp.eq.s32.totalorder %s11, 0
    %p31 = por %p29, %p30
    %p32 = scmp.ne.s32.totalorder %s21, %s24
    %p33 = scmp.eq.s32.totalorder %s16, 1
    %p34 = por %p32, %p33
    %p35 = scmp.ne.s32.totalorder %s24, %s25
    %p36 = scmp.eq.s32.totalorder %s16, 0
    %p37 = por %p35, %p36
    %p38 = scmp.ne.s32.totalorder %s24, %s25
    %p39 = scmp.eq.s32.totalorder %s17, 1
    %p40 = por %p38, %p39
    %p42 = scmp.ne.s32.totalorder %s25, %s41
    %p43 = scmp.eq.s32.totalorder %s17, 0
    %p44 = por %p42, %p43
    %s45 = ssub.s32 %s11, %s18
    %p46 = scmp.eq.s32.totalorder %s45, 0
    %s48 = sadd.s32 %s47, 1
    %s49 = scalar_select %p46, %s47, %s48
    %p52 = pneg %p46
    %p53 = scmp.eq.s32.totalorder %s11, 1
    %p54 = por %p52, %p53
    %p55 = scmp.ne.s32.totalorder %s47, %s50
    %p56 = scmp.eq.s32.totalorder %s11, 0
    %p57 = por %p55, %p56
    %p58 = scmp.ne.s32.totalorder %s47, %s50
    %p59 = scmp.eq.s32.totalorder %s16, 1
    %p60 = por %p58, %p59
    %p61 = scmp.ne.s32.totalorder %s50, %s51
    %p62 = scmp.eq.s32.totalorder %s16, 0
    %p63 = por %p61, %p62
    %p64 = scmp.ne.s32.totalorder %s50, %s51
    %p65 = scmp.eq.s32.totalorder %s17, 1
    %p66 = por %p64, %p65
    %p68 = scmp.ne.s32.totalorder %s51, %s67
    %p69 = scmp.eq.s32.totalorder %s17, 0
    %p70 = por %p68, %p69
    %s72 = sadd.s32 %s71, 1
    %p75 = scmp.eq.s32.totalorder %s11, 1
    %p76 = scmp.ne.s32.totalorder %s71, %s73
    %p77 = scmp.eq.s32.totalorder %s11, 0
    %p78 = por %p76, %p77
    %p79 = scmp.ne.s32.totalorder %s71, %s73
    %p80 = scmp.eq.s32.totalorder %s16, 1
    %p81 = por %p79, %p80
    %p82 = scmp.ne.s32.totalorder %s73, %s74
    %p83 = scmp.eq.s32.totalorder %s16, 0
    %p84 = por %p82, %p83
    %p85 = scmp.ne.s32.totalorder %s73, %s74
    %p86 = scmp.eq.s32.totalorder %s17, 1
    %p87 = por %p85, %p86
    %p89 = scmp.ne.s32.totalorder %s74, %s88
    %p90 = scmp.eq.s32.totalorder %s17, 0
    %p91 = por %p89, %p90
    %s93 = sadd.s32 %s92, 1
    %p96 = scmp.eq.s32.totalorder %s11, 1
    %p97 = scmp.ne.s32.totalorder %s92, %s94
    %p98 = scmp.eq.s32.totalorder %s11, 0
    %p99 = por %p97, %p98
    %p100 = scmp.ne.s32.totalorder %s92, %s94
    %p101 = scmp.eq.s32.totalorder %s16, 1
    %p102 = por %p100, %p101
    %p103 = scmp.ne.s32.totalorder %s94, %s95
    %p104 = scmp.eq.s32.totalorder %s16, 0
    %p105 = por %p103, %p104
    %p106 = scmp.ne.s32.totalorder %s94, %s95
    %p107 = scmp.eq.s32.totalorder %s17, 1
    %p108 = por %p106, %p107
    %p110 = scmp.ne.s32.totalorder %s95, %s109
    %p111 = scmp.eq.s32.totalorder %s17, 0
    %p112 = por %p110, %p111
    %s114 = sadd.s32 %s113, 1
    %p117 = scmp.eq.s32.totalorder %s11, 1
    %p118 = scmp.ne.s32.totalorder %s113, %s115
    %p119 = scmp.eq.s32.totalorder %s11, 0
    %p120 = por %p118, %p119
    %p121 = scmp.ne.s32.totalorder %s113, %s115
    %p122 = scmp.eq.s32.totalorder %s16, 1
    %p123 = por %p121, %p122
    %p124 = scmp.ne.s32.totalorder %s115, %s116
    %p125 = scmp.eq.s32.totalorder %s16, 0
    %p126 = por %p124, %p125
    %p127 = scmp.ne.s32.totalorder %s115, %s116
    %p128 = scmp.eq.s32.totalorder %s17, 1
    %p129 = por %p127, %p128
    %p131 = scmp.ne.s32.totalorder %s116, %s130
    %p132 = scmp.eq.s32.totalorder %s17, 0
    %p133 = por %p131, %p132
    %s134 = ssub.s32 %s11, %s18
    %p135 = scmp.eq.s32.totalorder %s134, 0
    %s137 = sadd.s32 %s136, 1
    %s138 = scalar_select %p135, %s136, %s137
    %p141 = pneg %p135
    %p142 = scmp.eq.s32.totalorder %s11, 1
    %p143 = por %p141, %p142
    %p144 = scmp.ne.s32.totalorder %s136, %s139
    %p145 = scmp.eq.s32.totalorder %s11, 0
    %p146 = por %p144, %p145
    %p147 = scmp.ne.s32.totalorder %s136, %s139
    %p148 = scmp.eq.s32.totalorder %s16, 1
    %p149 = por %p147, %p148
    %p150 = scmp.ne.s32.totalorder %s139, %s140
    %p151 = scmp.eq.s32.totalorder %s16, 0
    %p152 = por %p150, %p151
    %p153 = scmp.ne.s32.totalorder %s139, %s140
    %p154 = scmp.eq.s32.totalorder %s17, 1
    %p155 = por %p153, %p154
    %p157 = scmp.ne.s32.totalorder %s140, %s156
    %p158 = scmp.eq.s32.totalorder %s17, 0
    %p159 = por %p157, %p158
    %p160 = scmp.le.s32.totalorder 1, %s11
    %p161 = scmp.lt.s32.totalorder %s11, 3
    %p162 = pnand %p160, %p161
    %p163 = pneg %p162
    // Predicated region
    $region9: #{_lambda_.8} parent=5 // pred_check
      _
    $region10: #{_lambda_.8} parent=5 // pred_check_branch
      %165 = sbr.rel (%p162) target = $region12
    $region11: #{_lambda_.8} parent=5 // pred_region
      %s166 = ssub.s32 %s11, 1
      // Predicated region
      $region13: #{_lambda_.8} parent=11 // pred_check
        %p167 = pneg %p84
      $region14: #{_lambda_.8} parent=11 // pred_check_branch
        %169 = sbr.rel (%p167) target = $region16
      $region15: #{_lambda_.8} parent=11 // pred_region
        _
      $region16: #{_lambda_.8} parent=11 // pred_fallthru
        _
      // Predicated region
      $region17: #{_lambda_.8} parent=11 // pred_check
        %p170 = pneg %p105
      $region18: #{_lambda_.8} parent=11 // pred_check_branch
        %172 = sbr.rel (%p170) target = $region20
      $region19: #{_lambda_.8} parent=11 // pred_region
        _
      $region20: #{_lambda_.8} parent=11 // pred_fallthru
        _
      // Predicated region
      $region21: #{_lambda_.8} parent=11 // pred_check
        %p173 = pneg %p126
      $region22: #{_lambda_.8} parent=11 // pred_check_branch
        %175 = sbr.rel (%p173) target = $region24
      $region23: #{_lambda_.8} parent=11 // pred_region
        _
      $region24: #{_lambda_.8} parent=11 // pred_fallthru
        _
    $region12: #{_lambda_.8} parent=5 // pred_fallthru
      _
    %p176 = scmp.lt.s32.totalorder %s11, 2
    // Predicated region
    $region25: #{_lambda_.8} parent=5 // pred_check
      %p177 = pneg %p176
    $region26: #{_lambda_.8} parent=5 // pred_check_branch
      %179 = sbr.rel (%p177) target = $region28
    $region27: #{_lambda_.8} parent=5 // pred_region
      // Predicated region
      $region29: #{_lambda_.8} parent=27 // pred_check
        %p180 = pneg %p31
      $region30: #{_lambda_.8} parent=27 // pred_check_branch
        %182 = sbr.rel (%p180) target = $region32
      $region31: #{_lambda_.8} parent=27 // pred_region
        %p183 = scmp.lt.s32.totalorder %s11, 1
        %s184 = scalar_select %p183, %s11, 1
        %s185 = smul.addr %s184, 2
        %s186 = smul.addr %s185, 4
        %s187 = scalar_lea.vmem %s0, %s186
      $region32: #{_lambda_.8} parent=27 // pred_fallthru
        _
      // Predicated region
      $region33: #{_lambda_.8} parent=27 // pred_check
        %p188 = pneg %p57
      $region34: #{_lambda_.8} parent=27 // pred_check_branch
        %190 = sbr.rel (%p188) target = $region36
      $region35: #{_lambda_.8} parent=27 // pred_region
        %p191 = scmp.lt.s32.totalorder %s11, 1
        %s192 = scalar_select %p191, %s11, 1
        %s193 = smul.addr %s192, 4
        %s194 = scalar_lea.vmem %s1, %s193
      $region36: #{_lambda_.8} parent=27 // pred_fallthru
        _
    $region28: #{_lambda_.8} parent=5 // pred_fallthru
      _
    %p195 = scmp.le.s32.totalorder 1, %s11
    %p196 = scmp.lt.s32.totalorder %s11, 3
    %p197 = pnand %p195, %p196
    %p198 = pneg %p197
    // Predicated region
    $region37: #{_lambda_.8} parent=5 // pred_check
      _
    $region38: #{_lambda_.8} parent=5 // pred_check_branch
      %200 = sbr.rel (%p197) target = $region40
    $region39: #{_lambda_.8} parent=5 // pred_region
      %s201 = ssub.s32 %s11, 1
      %p202 = scmp.lt.s32.totalorder %s16, 1
      %s203 = scalar_select %p202, %s16, 1
      %s204 = smul.addr %s203, 2
      %s205 = smul.addr %s204, 4
      %s206 = scalar_lea.vmem %s0, %s205
      %p207 = pneg %p37
      %p208 = pneg %p34
      %p209 = scmp.lt.s32.totalorder %s16, 1
      %s210 = scalar_select %p209, %s16, 1
      %s211 = smul.addr %s210, 4
      %s212 = scalar_lea.vmem %s1, %s211
      %p213 = pneg %p63
      %p214 = pneg %p60
      %p215 = pneg %p84
      %p216 = pneg %p81
      %p217 = pneg %p105
      %p218 = pneg %p102
      %p219 = pneg %p126
      %p220 = pneg %p123
      %p221 = pneg %p152
      %p222 = pneg %p149
      %p223 = scmp.lt.s32.totalorder %s16, 1
      %s224 = scalar_select %p223, %s16, 1
      %s225 = smul.addr %s224, 2
      %s226 = smul.addr %s225, 4
      %s227 = scalar_lea.vmem %s5, %s226
      %p228 = scmp.lt.s32.totalorder %s16, 1
      %s229 = scalar_select %p228, %s16, 1
      %s230 = smul.addr %s229, 2
      %s231 = smul.addr %s230, 4
      %s232 = scalar_lea.vmem %s0, %s231
      %p233 = scmp.lt.s32.totalorder %s16, 1
      %s234 = scalar_select %p233, %s16, 1
      %s235 = smul.addr %s234, 4
      %s236 = scalar_lea.vmem %s1, %s235
      %p237 = scmp.lt.s32.totalorder %s16, 1
      %s238 = scalar_select %p237, %s16, 1
      %s239 = smul.addr %s238, 2
      %s240 = smul.addr %s239, 4
      %s241 = scalar_lea.vmem %s5, %s240
      %v243 = vld [vmem:[%s232] sm:$0xf]
      %v244 = vld [vmem:[%s232 + $0x4] sm:$0xf]
      %v245 = vunpack.c.l.bf16 %v243
      %v246 = vunpack.c.l.bf16 %v244
      %v247 = vld [vmem:[%s236] sm:$0xf]
      %v248 = vld [vmem:[%s2] sm:$0xf]
      %v249 = vld [vmem:[%s2 + $0x4] sm:$0xf]
      %v250 = vld [vmem:[%s2 + $0x8] sm:$0xf]
      %v251 = vld [vmem:[%s2 + $0xc] sm:$0xf]
      %v252 = vld [vmem:[%s2 + $0x10] sm:$0xf]
      %v253 = vld [vmem:[%s2 + $0x14] sm:$0xf]
      %v254 = vld [vmem:[%s2 + $0x18] sm:$0xf]
      %v255 = vld [vmem:[%s2 + $0x1c] sm:$0xf]
      %v256 = vld [vmem:[%s2 + $0x20] sm:$0xf]
      %v257 = vld [vmem:[%s2 + $0x24] sm:$0xf]
      %v258 = vld [vmem:[%s2 + $0x28] sm:$0xf]
      %v259 = vld [vmem:[%s2 + $0x2c] sm:$0xf]
      %v260 = vld [vmem:[%s2 + $0x30] sm:$0xf]
      %v261 = vld [vmem:[%s2 + $0x34] sm:$0xf]
      %v262 = vld [vmem:[%s2 + $0x38] sm:$0xf]
      %v263 = vld [vmem:[%s2 + $0x3c] sm:$0xf]
      %v280 = vunpack.c.l.b16 %v248
      %v281 = vunpack.c.l.b16 %v249
      %v282 = vunpack.c.l.b16 %v250
      %v283 = vunpack.c.l.b16 %v251
      %v284 = vunpack.c.l.b16 %v252
      %v285 = vunpack.c.l.b16 %v253
      %v286 = vunpack.c.l.b16 %v254
      %v287 = vunpack.c.l.b16 %v255
      %v288 = vunpack.c.l.b16 %v256
      %v289 = vunpack.c.l.b16 %v257
      %v290 = vunpack.c.l.b16 %v258
      %v291 = vunpack.c.l.b16 %v259
      %v292 = vunpack.c.l.b16 %v260
      %v293 = vunpack.c.l.b16 %v261
      %v294 = vunpack.c.l.b16 %v262
      %v295 = vunpack.c.l.b16 %v263
      %v296 = vpack.c.b16 %v281, %v280
      %v297 = vpack.c.b16 %v283, %v282
      %v298 = vpack.c.b16 %v285, %v284
      %v299 = vpack.c.b16 %v287, %v286
      %v300 = vpack.c.b16 %v289, %v288
      %v301 = vpack.c.b16 %v291, %v290
      %v302 = vpack.c.b16 %v293, %v292
      %v303 = vpack.c.b16 %v295, %v294
      %312 = vmatprep.subr.bf16.mxu0 0
      %313 = vmatpush1.bf16.msra.mxu0 %v303
      %314 = vmatprep.subr.bf16.mxu0 0
      %315 = vmatpush1.bf16.msra.mxu0 %v302
      %316 = vmatprep.subr.bf16.mxu0 0
      %317 = vmatpush1.bf16.msra.mxu0 %v301
      %318 = vmatprep.subr.bf16.mxu0 0
      %319 = vmatpush1.bf16.msra.mxu0 %v300
      %320 = vmatprep.subr.bf16.mxu0 0
      %321 = vmatpush1.bf16.msra.mxu0 %v299
      %322 = vmatprep.subr.bf16.mxu0 0
      %323 = vmatpush1.bf16.msra.mxu0 %v298
      %324 = vmatprep.subr.bf16.mxu0 0
      %325 = vmatpush1.bf16.msra.mxu0 %v297
      %326 = vmatprep.subr.bf16.mxu0 0
      %327 = vmatpush1.bf16.msra.mxu0 %v296
      %328 = vmatprep.subr.bf16.mxu0 0
      %329 = vmatpush2.bf16.msra.mxu0 0
      %330 = vmatprep.subr.bf16.mxu0 0
      %331 = vmatpush2.bf16.msra.mxu0 0
      %332 = vmatprep.subr.bf16.mxu0 0
      %333 = vmatpush2.bf16.msra.mxu0 0
      %334 = vmatprep.subr.bf16.mxu0 0
      %335 = vmatpush2.bf16.msra.mxu0 0
      %336 = vmatprep.subr.bf16.mxu0 0
      %337 = vmatpush2.bf16.msra.mxu0 0
      %338 = vmatprep.subr.bf16.mxu0 0
      %339 = vmatpush2.bf16.msra.mxu0 0
      %340 = vmatprep.subr.bf16.mxu0 0
      %341 = vmatpush2.bf16.msra.mxu0 0
      %342 = vmatprep.subr.bf16.mxu0 0
      %343 = vmatpush2.bf16.msra.mxu0 0
      %344 = vmatprep.mubr.bf16.mxu0 0
      %345 = vmatmul.mubr.bf16.gmra.mxu0 %v247
      %v346 = vpop.f32.mrf.mxu0
      %v347 = vadd.f32 0.0, %v346
      %v348 = vpop.f32.mrf.mxu0
      %v349 = vpop.f32.mrf.mxu0
      %v350 = vpop.f32.mrf.mxu0
      %351 = vdwg.mxu0
      %v352 = vld [vmem:[%s3] sm:$0xff]
      %v353 = vld [vmem:[%s3 + $0x8] sm:$0xff]
      %v354 = vld [vmem:[%s4] sm:$0x1]
      %v356 = vlaneseq
      %v357 = vshrl.u32 %v356, 7
      %v358 = vsub.s32 0, %v357
      %v359 = vrot.slane %v354, %v358
      %vm361 = vcmask 64512
      %v363 = vsel %vm361, %v352, 0
      %v366 = vsel %vm361, %v353, 0
      %368 = vmatprep.subr.mxu0 0.0
      %369 = vmatpush1.msra.mxu0 0.0
      %370 = vmatprep.subr.mxu0 0.0
      %371 = vmatpush1.msra.mxu0 0.0
      %372 = vmatprep.subr.mxu0 0.0
      %373 = vmatpush1.msra.mxu0 0.0
      %374 = vmatprep.subr.mxu0 0.0
      %375 = vmatpush1.msra.mxu0 0.0
      %376 = vmatprep.subr.mxu0 0.0
      %377 = vmatpush1.msra.mxu0 0.0
      %378 = vmatprep.subr.mxu0 0.0
      %379 = vmatpush1.msra.mxu0 0.0
      %380 = vmatprep.subr.mxu0 0.0
      %381 = vmatpush1.msra.mxu0 0.0
      %382 = vmatprep.subr.mxu0 0.0
      %383 = vmatpush1.msra.mxu0 0.0
      %384 = vmatprep.subr.mxu0 0.0
      %385 = vmatpush1.msra.mxu0 0.0
      %386 = vmatprep.subr.mxu0 0.0
      %387 = vmatpush1.msra.mxu0 0.0
      %388 = vmatprep.subr.mxu0 0.0
      %389 = vmatpush1.msra.mxu0 0.0
      %390 = vmatprep.subr.mxu0 0.0
      %391 = vmatpush1.msra.mxu0 0.0
      %392 = vmatprep.subr.mxu0 0.0
      %393 = vmatpush1.msra.mxu0 0.0
      %394 = vmatprep.subr.mxu0 0.0
      %395 = vmatpush1.msra.mxu0 0.0
      %396 = vmatprep.subr.mxu0 0.0
      %397 = vmatpush1.msra.mxu0 0.0
      %398 = vmatprep.subr.mxu0 0.0
      %399 = vmatpush1.msra.mxu0 %v347
      %400 = vmatprep.subr.mxu0 0.0
      %401 = vmatpush2.msra.mxu0 0.0
      %402 = vmatprep.subr.mxu0 0.0
      %403 = vmatpush2.msra.mxu0 0.0
      %404 = vmatprep.subr.mxu0 0.0
      %405 = vmatpush2.msra.mxu0 0.0
      %406 = vmatprep.subr.mxu0 0.0
      %407 = vmatpush2.msra.mxu0 0.0
      %408 = vmatprep.subr.mxu0 0.0
      %409 = vmatpush2.msra.mxu0 0.0
      %410 = vmatprep.subr.mxu0 0.0
      %411 = vmatpush2.msra.mxu0 0.0
      %412 = vmatprep.subr.mxu0 0.0
      %413 = vmatpush2.msra.mxu0 0.0
      %414 = vmatprep.subr.mxu0 0.0
      %415 = vmatpush2.msra.mxu0 0.0
      %416 = vmatprep.subr.mxu0 0.0
      %417 = vmatpush2.msra.mxu0 0.0
      %418 = vmatprep.subr.mxu0 0.0
      %419 = vmatpush2.msra.mxu0 0.0
      %420 = vmatprep.subr.mxu0 0.0
      %421 = vmatpush2.msra.mxu0 0.0
      %422 = vmatprep.subr.mxu0 0.0
      %423 = vmatpush2.msra.mxu0 0.0
      %424 = vmatprep.subr.mxu0 0.0
      %425 = vmatpush2.msra.mxu0 0.0
      %426 = vmatprep.subr.mxu0 0.0
      %427 = vmatpush2.msra.mxu0 0.0
      %428 = vmatprep.subr.mxu0 0.0
      %429 = vmatpush2.msra.mxu0 0.0
      %430 = vmatprep.subr.mxu0 0.0
      %431 = vmatpush2.msra.mxu0 0.0
      %432 = vmatprep.mubr.f32.mxu0 0.0
      %433 = vmatmul.mubr.f32.gmra.mxu0 %v363
      %v434 = vpop.f32.mrf.mxu0
      %v435 = vadd.f32 %v359, %v434
      %v436 = vpop.f32.mrf.mxu0
      %437 = vmatprep.mubr.f32.mxu0 0.0
      %438 = vmatmul.mubr.f32.gmra.mxu0 %v366
      %v439 = vpop.f32.mrf.mxu0
      %v440 = vadd.f32 %v359, %v439
      %v441 = vpop.f32.mrf.mxu0
      %442 = vdwg.mxu0
      %v443 = vadd.f32 %v245, %v435
      %v444 = vadd.f32 %v246, %v440
      %v445 = vmax.f32 %v443, 0.0
      %v446 = vmax.f32 %v444, 0.0
      %v447 = vpack.c.bf16 %v446, %v445
      %v449 = vunpack.c.l.b16 %v447
      %v450 = vunpack.c.h.b16 %v447
      %v451 = vpack.c.b16 %v449, %v449
      %v452 = vpack.c.b16 %v450, %v450
      %455 = vst [vmem:[%s241] sm:$0xf] %v451
      %456 = vst [vmem:[%s241 + $0x4] sm:$0xf] %v452
      %p457 = scmp.lt.s32.totalorder %s16, 1
      %s458 = scalar_select %p457, %s16, 1
      %s459 = smul.addr %s458, 2
      %s460 = smul.addr %s459, 4
      %s461 = scalar_lea.vmem %s5, %s460
      // Predicated region
      $region41: #{_lambda_.8} parent=39 // pred_check
        %p462 = pneg %p149
      $region42: #{_lambda_.8} parent=39 // pred_check_branch
        %464 = sbr.rel (%p462) target = $region44
      $region43: #{_lambda_.8} parent=39 // pred_region
        _
      $region44: #{_lambda_.8} parent=39 // pred_fallthru
        _
    $region40: #{_lambda_.8} parent=5 // pred_fallthru
      _
    %p465 = scmp.le.s32.totalorder 2, %s11
    // Predicated region
    $region45: #{_lambda_.8} parent=5 // pred_check
      %p466 = pneg %p465
    $region46: #{_lambda_.8} parent=5 // pred_check_branch
      %468 = sbr.rel (%p466) target = $region48
    $region47: #{_lambda_.8} parent=5 // pred_region
      %s469 = ssub.s32 %s11, 2
      // Predicated region
      $region49: #{_lambda_.8} parent=47 // pred_check
        %p470 = pneg %p155
      $region50: #{_lambda_.8} parent=47 // pred_check_branch
        %472 = sbr.rel (%p470) target = $region52
      $region51: #{_lambda_.8} parent=47 // pred_region
        %p473 = scmp.lt.s32.totalorder %s17, 1
        %s474 = scalar_select %p473, %s17, 1
        %s475 = smul.addr %s474, 2
        %s476 = smul.addr %s475, 4
        %s477 = scalar_lea.vmem %s5, %s476
      $region52: #{_lambda_.8} parent=47 // pred_fallthru
        _
    $region48: #{_lambda_.8} parent=5 // pred_fallthru
      _
  $region6: #{_lambda_.8} parent=0 // loop_footer
    %s15 = sadd.s32 1, %s11
  $region7: #{_lambda_.8} parent=0 // loop_footer_branch
    %10 = sbr.rel target = $region3
  $region8: #{_lambda_.8} parent=0 // loop_exit
    _

// kernel: _lambda_.7
$region0: #{_lambda_.7}
  #allocation0 [shape = 'u32[]', space=smem, size = 0x4, offset = 0x4, fixed_abs, tag = 'smem constant byte address 0x4 - core index']
  #allocation1 [shape = 'u32[144,128]{1,0:T(1,128)}', space=vmem, size = 0x12000, scoped, tag = 'internal scratch']
  %s0 = inlined_call_operand.vmem [shape: bf16[2,8,128], index: 0, kind: input, shape index: {}]
  %s1 = inlined_call_operand.vmem [shape: bf16[3,128,128], index: 1, kind: input, shape index: {}]
  %s2 = inlined_call_operand.vmem [shape: f32[1,128], index: 2, kind: input, shape index: {}]
  %s3 = inlined_call_operand.vmem [shape: bf16[3,128,128], index: 3, kind: input, shape index: {}]
  %s4 = inlined_call_operand.vmem [shape: f32[1,128], index: 4, kind: input, shape index: {}]
  %s5 = inlined_call_operand.vmem [shape: bf16[2,8,128], index: 5, kind: output, shape index: {}]
  %s6 = sld [smem:[#allocation0]]
  $region53: #{_lambda_.7} parent=0
    _
  %s8 = ssub.s32 1, %s6
  %s9 = scalar_select 0, %s8, %s6
  loop: start=0, step=1, limit=4
  $region2: #{_lambda_.7} parent=0 // loop_pre_header
    _
  $region3: #{_lambda_.7} parent=0 // loop_header
    %s11 = sphi 0, %s15
    %p12 = scmp.ge.s32.totalorder %s11, 4
    %s21 = sphi 0, %s23
    %s24 = sphi 0, %s21
    %s25 = sphi 0, %s24
    %s41 = sphi 0, %s25
    %s45 = sphi 0, %s45
    %s47 = sphi 0, %s45
    %s48 = sphi 0, %s47
    %s62 = sphi 0, %s48
    %s66 = sphi 0, %s66
    %s68 = sphi 0, %s66
    %s69 = sphi 0, %s68
    %s83 = sphi 0, %s69
    %s87 = sphi 0, %s87
    %s89 = sphi 0, %s87
    %s90 = sphi 0, %s89
    %s104 = sphi 0, %s90
    %s108 = sphi 0, %s108
    %s110 = sphi 0, %s108
    %s111 = sphi 0, %s110
    %s125 = sphi 0, %s111
    %s131 = sphi 0, %s133
    %s134 = sphi 0, %s131
    %s135 = sphi 0, %s134
    %s151 = sphi 0, %s135
  $region4: #{_lambda_.7} parent=0 // loop_header_branch
    %14 = sbr.rel (%p12) target = $region8
  $region5: #{_lambda_.7} parent=0 // loop_body
    %s16 = ssub.s32 %s11, 1
    %s17 = ssub.s32 %s11, 2
    %s18 = sadd.s32 %s11, 1
    %s19 = ssub.s32 %s11, %s18
    %p20 = scmp.eq.s32.totalorder %s19, 0
    %s22 = sadd.s32 %s21, 1
    %s23 = scalar_select %p20, %s21, %s22
    %p26 = pneg %p20
    %p27 = scmp.eq.s32.totalorder %s11, 1
    %p28 = por %p26, %p27
    %p29 = scmp.ne.s32.totalorder %s21, %s24
    %p30 = scmp.eq.s32.totalorder %s11, 0
    %p31 = por %p29, %p30
    %p32 = scmp.ne.s32.totalorder %s21, %s24
    %p33 = scmp.eq.s32.totalorder %s16, 1
    %p34 = por %p32, %p33
    %p35 = scmp.ne.s32.totalorder %s24, %s25
    %p36 = scmp.eq.s32.totalorder %s16, 0
    %p37 = por %p35, %p36
    %p38 = scmp.ne.s32.totalorder %s24, %s25
    %p39 = scmp.eq.s32.totalorder %s17, 1
    %p40 = por %p38, %p39
    %p42 = scmp.ne.s32.totalorder %s25, %s41
    %p43 = scmp.eq.s32.totalorder %s17, 0
    %p44 = por %p42, %p43
    %s46 = sadd.s32 %s45, 1
    %p49 = scmp.eq.s32.totalorder %s11, 1
    %p50 = scmp.ne.s32.totalorder %s45, %s47
    %p51 = scmp.eq.s32.totalorder %s11, 0
    %p52 = por %p50, %p51
    %p53 = scmp.ne.s32.totalorder %s45, %s47
    %p54 = scmp.eq.s32.totalorder %s16, 1
    %p55 = por %p53, %p54
    %p56 = scmp.ne.s32.totalorder %s47, %s48
    %p57 = scmp.eq.s32.totalorder %s16, 0
    %p58 = por %p56, %p57
    %p59 = scmp.ne.s32.totalorder %s47, %s48
    %p60 = scmp.eq.s32.totalorder %s17, 1
    %p61 = por %p59, %p60
    %p63 = scmp.ne.s32.totalorder %s48, %s62
    %p64 = scmp.eq.s32.totalorder %s17, 0
    %p65 = por %p63, %p64
    %s67 = sadd.s32 %s66, 1
    %p70 = scmp.eq.s32.totalorder %s11, 1
    %p71 = scmp.ne.s32.totalorder %s66, %s68
    %p72 = scmp.eq.s32.totalorder %s11, 0
    %p73 = por %p71, %p72
    %p74 = scmp.ne.s32.totalorder %s66, %s68
    %p75 = scmp.eq.s32.totalorder %s16, 1
    %p76 = por %p74, %p75
    %p77 = scmp.ne.s32.totalorder %s68, %s69
    %p78 = scmp.eq.s32.totalorder %s16, 0
    %p79 = por %p77, %p78
    %p80 = scmp.ne.s32.totalorder %s68, %s69
    %p81 = scmp.eq.s32.totalorder %s17, 1
    %p82 = por %p80, %p81
    %p84 = scmp.ne.s32.totalorder %s69, %s83
    %p85 = scmp.eq.s32.totalorder %s17, 0
    %p86 = por %p84, %p85
    %s88 = sadd.s32 %s87, 1
    %p91 = scmp.eq.s32.totalorder %s11, 1
    %p92 = scmp.ne.s32.totalorder %s87, %s89
    %p93 = scmp.eq.s32.totalorder %s11, 0
    %p94 = por %p92, %p93
    %p95 = scmp.ne.s32.totalorder %s87, %s89
    %p96 = scmp.eq.s32.totalorder %s16, 1
    %p97 = por %p95, %p96
    %p98 = scmp.ne.s32.totalorder %s89, %s90
    %p99 = scmp.eq.s32.totalorder %s16, 0
    %p100 = por %p98, %p99
    %p101 = scmp.ne.s32.totalorder %s89, %s90
    %p102 = scmp.eq.s32.totalorder %s17, 1
    %p103 = por %p101, %p102
    %p105 = scmp.ne.s32.totalorder %s90, %s104
    %p106 = scmp.eq.s32.totalorder %s17, 0
    %p107 = por %p105, %p106
    %s109 = sadd.s32 %s108, 1
    %p112 = scmp.eq.s32.totalorder %s11, 1
    %p113 = scmp.ne.s32.totalorder %s108, %s110
    %p114 = scmp.eq.s32.totalorder %s11, 0
    %p115 = por %p113, %p114
    %p116 = scmp.ne.s32.totalorder %s108, %s110
    %p117 = scmp.eq.s32.totalorder %s16, 1
    %p118 = por %p116, %p117
    %p119 = scmp.ne.s32.totalorder %s110, %s111
    %p120 = scmp.eq.s32.totalorder %s16, 0
    %p121 = por %p119, %p120
    %p122 = scmp.ne.s32.totalorder %s110, %s111
    %p123 = scmp.eq.s32.totalorder %s17, 1
    %p124 = por %p122, %p123
    %p126 = scmp.ne.s32.totalorder %s111, %s125
    %p127 = scmp.eq.s32.totalorder %s17, 0
    %p128 = por %p126, %p127
    %s129 = ssub.s32 %s11, %s18
    %p130 = scmp.eq.s32.totalorder %s129, 0
    %s132 = sadd.s32 %s131, 1
    %s133 = scalar_select %p130, %s131, %s132
    %p136 = pneg %p130
    %p137 = scmp.eq.s32.totalorder %s11, 1
    %p138 = por %p136, %p137
    %p139 = scmp.ne.s32.totalorder %s131, %s134
    %p140 = scmp.eq.s32.totalorder %s11, 0
    %p141 = por %p139, %p140
    %p142 = scmp.ne.s32.totalorder %s131, %s134
    %p143 = scmp.eq.s32.totalorder %s16, 1
    %p144 = por %p142, %p143
    %p145 = scmp.ne.s32.totalorder %s134, %s135
    %p146 = scmp.eq.s32.totalorder %s16, 0
    %p147 = por %p145, %p146
    %p148 = scmp.ne.s32.totalorder %s134, %s135
    %p149 = scmp.eq.s32.totalorder %s17, 1
    %p150 = por %p148, %p149
    %p152 = scmp.ne.s32.totalorder %s135, %s151
    %p153 = scmp.eq.s32.totalorder %s17, 0
    %p154 = por %p152, %p153
    %p155 = scmp.le.s32.totalorder 1, %s11
    %p156 = scmp.lt.s32.totalorder %s11, 3
    %p157 = pnand %p155, %p156
    %p158 = pneg %p157
    // Predicated region
    $region9: #{_lambda_.7} parent=5 // pred_check
      _
    $region10: #{_lambda_.7} parent=5 // pred_check_branch
      %160 = sbr.rel (%p157) target = $region12
    $region11: #{_lambda_.7} parent=5 // pred_region
      %s161 = ssub.s32 %s11, 1
      // Predicated region
      $region13: #{_lambda_.7} parent=11 // pred_check
        %p162 = pneg %p58
      $region14: #{_lambda_.7} parent=11 // pred_check_branch
        %164 = sbr.rel (%p162) target = $region16
      $region15: #{_lambda_.7} parent=11 // pred_region
        _
      $region16: #{_lambda_.7} parent=11 // pred_fallthru
        _
      // Predicated region
      $region17: #{_lambda_.7} parent=11 // pred_check
        %p165 = pneg %p79
      $region18: #{_lambda_.7} parent=11 // pred_check_branch
        %167 = sbr.rel (%p165) target = $region20
      $region19: #{_lambda_.7} parent=11 // pred_region
        _
      $region20: #{_lambda_.7} parent=11 // pred_fallthru
        _
      // Predicated region
      $region21: #{_lambda_.7} parent=11 // pred_check
        %p168 = pneg %p100
      $region22: #{_lambda_.7} parent=11 // pred_check_branch
        %170 = sbr.rel (%p168) target = $region24
      $region23: #{_lambda_.7} parent=11 // pred_region
        _
      $region24: #{_lambda_.7} parent=11 // pred_fallthru
        _
      // Predicated region
      $region25: #{_lambda_.7} parent=11 // pred_check
        %p171 = pneg %p121
      $region26: #{_lambda_.7} parent=11 // pred_check_branch
        %173 = sbr.rel (%p171) target = $region28
      $region27: #{_lambda_.7} parent=11 // pred_region
        _
      $region28: #{_lambda_.7} parent=11 // pred_fallthru
        _
    $region12: #{_lambda_.7} parent=5 // pred_fallthru
      _
    %p174 = scmp.lt.s32.totalorder %s11, 2
    // Predicated region
    $region29: #{_lambda_.7} parent=5 // pred_check
      %p175 = pneg %p174
    $region30: #{_lambda_.7} parent=5 // pred_check_branch
      %177 = sbr.rel (%p175) target = $region32
    $region31: #{_lambda_.7} parent=5 // pred_region
      // Predicated region
      $region33: #{_lambda_.7} parent=31 // pred_check
        %p178 = pneg %p31
      $region34: #{_lambda_.7} parent=31 // pred_check_branch
        %180 = sbr.rel (%p178) target = $region36
      $region35: #{_lambda_.7} parent=31 // pred_region
        %p181 = scmp.lt.s32.totalorder %s11, 1
        %s182 = scalar_select %p181, %s11, 1
        %s183 = smul.addr %s182, 4
        %s184 = scalar_lea.vmem %s0, %s183
      $region36: #{_lambda_.7} parent=31 // pred_fallthru
        _
    $region32: #{_lambda_.7} parent=5 // pred_fallthru
      _
    %p185 = scmp.le.s32.totalorder 1, %s11
    %p186 = scmp.lt.s32.totalorder %s11, 3
    %p187 = pnand %p185, %p186
    %p188 = pneg %p187
    // Predicated region
    $region37: #{_lambda_.7} parent=5 // pred_check
      _
    $region38: #{_lambda_.7} parent=5 // pred_check_branch
      %190 = sbr.rel (%p187) target = $region40
    $region39: #{_lambda_.7} parent=5 // pred_region
      %s191 = ssub.s32 %s11, 1
      %p192 = scmp.lt.s32.totalorder %s16, 1
      %s193 = scalar_select %p192, %s16, 1
      %s194 = smul.addr %s193, 4
      %s195 = scalar_lea.vmem %s0, %s194
      %p196 = pneg %p37
      %p197 = pneg %p34
      %p198 = pneg %p58
      %p199 = pneg %p55
      %p200 = pneg %p79
      %p201 = pneg %p76
      %p202 = pneg %p100
      %p203 = pneg %p97
      %p204 = pneg %p121
      %p205 = pneg %p118
      %p206 = pneg %p147
      %p207 = pneg %p144
      %p208 = scmp.lt.s32.totalorder %s16, 1
      %s209 = scalar_select %p208, %s16, 1
      %s210 = smul.addr %s209, 4
      %s211 = scalar_lea.vmem %s5, %s210
      %p212 = scmp.lt.s32.totalorder %s16, 1
      %s213 = scalar_select %p212, %s16, 1
      %s214 = smul.addr %s213, 4
      %s215 = scalar_lea.vmem %s0, %s214
      %p216 = scmp.lt.s32.totalorder %s16, 1
      %s217 = scalar_select %p216, %s16, 1
      %s218 = smul.addr %s217, 4
      %s219 = scalar_lea.vmem %s5, %s218
      %v221 = vld [vmem:[%s215] sm:$0xf]
      %v222 = vunpack.c.l.bf16 %v221
      %v224 = vrot.slane %v222, 7
      %vm226 = vcmask 1040384
      %v227 = vsel %vm226, 0.0, %v224
      %v228 = vsel %vm226, %v224, 0.0
      %v229 = vpack.c.bf16 %v227, %v227
      %v230 = vld [vmem:[%s1] sm:$0xf]
      %v231 = vld [vmem:[%s1 + $0x4] sm:$0xf]
      %v232 = vld [vmem:[%s1 + $0x8] sm:$0xf]
      %v233 = vld [vmem:[%s1 + $0xc] sm:$0xf]
      %v234 = vld [vmem:[%s1 + $0x10] sm:$0xf]
      %v235 = vld [vmem:[%s1 + $0x14] sm:$0xf]
      %v236 = vld [vmem:[%s1 + $0x18] sm:$0xf]
      %v237 = vld [vmem:[%s1 + $0x1c] sm:$0xf]
      %v238 = vld [vmem:[%s1 + $0x20] sm:$0xf]
      %v239 = vld [vmem:[%s1 + $0x24] sm:$0xf]
      %v240 = vld [vmem:[%s1 + $0x28] sm:$0xf]
      %v241 = vld [vmem:[%s1 + $0x2c] sm:$0xf]
      %v242 = vld [vmem:[%s1 + $0x30] sm:$0xf]
      %v243 = vld [vmem:[%s1 + $0x34] sm:$0xf]
      %v244 = vld [vmem:[%s1 + $0x38] sm:$0xf]
      %v245 = vld [vmem:[%s1 + $0x3c] sm:$0xf]
      %v246 = vpack.c.bf16 %v228, %v227
      %s247 = scalar_lea.vmem %s1, 64
      %v248 = vld [vmem:[%s247] sm:$0xf]
      %v249 = vld [vmem:[%s247 + $0x4] sm:$0xf]
      %v250 = vld [vmem:[%s247 + $0x8] sm:$0xf]
      %v251 = vld [vmem:[%s247 + $0xc] sm:$0xf]
      %v252 = vld [vmem:[%s247 + $0x10] sm:$0xf]
      %v253 = vld [vmem:[%s247 + $0x14] sm:$0xf]
      %v254 = vld [vmem:[%s247 + $0x18] sm:$0xf]
      %v255 = vld [vmem:[%s247 + $0x1c] sm:$0xf]
      %v256 = vld [vmem:[%s247 + $0x20] sm:$0xf]
      %v257 = vld [vmem:[%s247 + $0x24] sm:$0xf]
      %v258 = vld [vmem:[%s247 + $0x28] sm:$0xf]
      %v259 = vld [vmem:[%s247 + $0x2c] sm:$0xf]
      %v260 = vld [vmem:[%s247 + $0x30] sm:$0xf]
      %v261 = vld [vmem:[%s247 + $0x34] sm:$0xf]
      %v262 = vld [vmem:[%s247 + $0x38] sm:$0xf]
      %v263 = vld [vmem:[%s247 + $0x3c] sm:$0xf]
      %v265 = vshrl.u32 %v246, 16
      %v267 = vshll.u32 %v246, 16
      %v269 = vrot.slane %v267, 1
      %v270 = vor.u32 %v265, %v269
      %v288 = vunpack.c.l.b16 %v248
      %v289 = vunpack.c.l.b16 %v249
      %v290 = vunpack.c.l.b16 %v250
      %v291 = vunpack.c.l.b16 %v251
      %v292 = vunpack.c.l.b16 %v252
      %v293 = vunpack.c.l.b16 %v253
      %v294 = vunpack.c.l.b16 %v254
      %v295 = vunpack.c.l.b16 %v255
      %v296 = vunpack.c.l.b16 %v256
      %v297 = vunpack.c.l.b16 %v257
      %v298 = vunpack.c.l.b16 %v258
      %v299 = vunpack.c.l.b16 %v259
      %v300 = vunpack.c.l.b16 %v260
      %v301 = vunpack.c.l.b16 %v261
      %v302 = vunpack.c.l.b16 %v262
      %v303 = vunpack.c.l.b16 %v263
      %v304 = vpack.c.b16 %v289, %v288
      %v305 = vpack.c.b16 %v291, %v290
      %v306 = vpack.c.b16 %v293, %v292
      %v307 = vpack.c.b16 %v295, %v294
      %v308 = vpack.c.b16 %v297, %v296
      %v309 = vpack.c.b16 %v299, %v298
      %v310 = vpack.c.b16 %v301, %v300
      %v311 = vpack.c.b16 %v303, %v302
      %320 = vmatprep.subr.bf16.mxu0 0
      %321 = vmatpush1.bf16.msra.mxu0 %v311
      %322 = vmatprep.subr.bf16.mxu0 0
      %323 = vmatpush1.bf16.msra.mxu0 %v310
      %324 = vmatprep.subr.bf16.mxu0 0
      %325 = vmatpush1.bf16.msra.mxu0 %v309
      %326 = vmatprep.subr.bf16.mxu0 0
      %327 = vmatpush1.bf16.msra.mxu0 %v308
      %328 = vmatprep.subr.bf16.mxu0 0
      %329 = vmatpush1.bf16.msra.mxu0 %v307
      %330 = vmatprep.subr.bf16.mxu0 0
      %331 = vmatpush1.bf16.msra.mxu0 %v306
      %332 = vmatprep.subr.bf16.mxu0 0
      %333 = vmatpush1.bf16.msra.mxu0 %v305
      %334 = vmatprep.subr.bf16.mxu0 0
      %335 = vmatpush1.bf16.msra.mxu0 %v304
      %336 = vmatprep.subr.bf16.mxu0 0
      %337 = vmatpush2.bf16.msra.mxu0 0
      %338 = vmatprep.subr.bf16.mxu0 0
      %339 = vmatpush2.bf16.msra.mxu0 0
      %340 = vmatprep.subr.bf16.mxu0 0
      %341 = vmatpush2.bf16.msra.mxu0 0
      %342 = vmatprep.subr.bf16.mxu0 0
      %343 = vmatpush2.bf16.msra.mxu0 0
      %344 = vmatprep.subr.bf16.mxu0 0
      %345 = vmatpush2.bf16.msra.mxu0 0
      %346 = vmatprep.subr.bf16.mxu0 0
      %347 = vmatpush2.bf16.msra.mxu0 0
      %348 = vmatprep.subr.bf16.mxu0 0
      %349 = vmatpush2.bf16.msra.mxu0 0
      %350 = vmatprep.subr.bf16.mxu0 0
      %351 = vmatpush2.bf16.msra.mxu0 0
      %352 = vmatprep.mubr.bf16.mxu0 0
      %353 = vmatmul.mubr.bf16.gmra.mxu0 %v270
      %v354 = vpop.f32.mrf.mxu0
      %v355 = vadd.f32 0.0, %v354
      %v356 = vpop.f32.mrf.mxu0
      %v357 = vpop.f32.mrf.mxu0
      %v358 = vpop.f32.mrf.mxu0
      %359 = vdwg.mxu0
      %v376 = vunpack.c.l.b16 %v230
      %v377 = vunpack.c.l.b16 %v231
      %v378 = vunpack.c.l.b16 %v232
      %v379 = vunpack.c.l.b16 %v233
      %v380 = vunpack.c.l.b16 %v234
      %v381 = vunpack.c.l.b16 %v235
      %v382 = vunpack.c.l.b16 %v236
      %v383 = vunpack.c.l.b16 %v237
      %v384 = vunpack.c.l.b16 %v238
      %v385 = vunpack.c.l.b16 %v239
      %v386 = vunpack.c.l.b16 %v240
      %v387 = vunpack.c.l.b16 %v241
      %v388 = vunpack.c.l.b16 %v242
      %v389 = vunpack.c.l.b16 %v243
      %v390 = vunpack.c.l.b16 %v244
      %v391 = vunpack.c.l.b16 %v245
      %v392 = vpack.c.b16 %v377, %v376
      %v393 = vpack.c.b16 %v379, %v378
      %v394 = vpack.c.b16 %v381, %v380
      %v395 = vpack.c.b16 %v383, %v382
      %v396 = vpack.c.b16 %v385, %v384
      %v397 = vpack.c.b16 %v387, %v386
      %v398 = vpack.c.b16 %v389, %v388
      %v399 = vpack.c.b16 %v391, %v390
      %408 = vmatprep.subr.bf16.mxu0 0
      %409 = vmatpush1.bf16.msra.mxu0 %v399
      %410 = vmatprep.subr.bf16.mxu0 0
      %411 = vmatpush1.bf16.msra.mxu0 %v398
      %412 = vmatprep.subr.bf16.mxu0 0
      %413 = vmatpush1.bf16.msra.mxu0 %v397
      %414 = vmatprep.subr.bf16.mxu0 0
      %415 = vmatpush1.bf16.msra.mxu0 %v396
      %416 = vmatprep.subr.bf16.mxu0 0
      %417 = vmatpush1.bf16.msra.mxu0 %v395
      %418 = vmatprep.subr.bf16.mxu0 0
      %419 = vmatpush1.bf16.msra.mxu0 %v394
      %420 = vmatprep.subr.bf16.mxu0 0
      %421 = vmatpush1.bf16.msra.mxu0 %v393
      %422 = vmatprep.subr.bf16.mxu0 0
      %423 = vmatpush1.bf16.msra.mxu0 %v392
      %424 = vmatprep.subr.bf16.mxu0 0
      %425 = vmatpush2.bf16.msra.mxu0 0
      %426 = vmatprep.subr.bf16.mxu0 0
      %427 = vmatpush2.bf16.msra.mxu0 0
      %428 = vmatprep.subr.bf16.mxu0 0
      %429 = vmatpush2.bf16.msra.mxu0 0
      %430 = vmatprep.subr.bf16.mxu0 0
      %431 = vmatpush2.bf16.msra.mxu0 0
      %432 = vmatprep.subr.bf16.mxu0 0
      %433 = vmatpush2.bf16.msra.mxu0 0
      %434 = vmatprep.subr.bf16.mxu0 0
      %435 = vmatpush2.bf16.msra.mxu0 0
      %436 = vmatprep.subr.bf16.mxu0 0
      %437 = vmatpush2.bf16.msra.mxu0 0
      %438 = vmatprep.subr.bf16.mxu0 0
      %439 = vmatpush2.bf16.msra.mxu0 0
      %440 = vmatprep.mubr.bf16.mxu0 0
      %441 = vmatmul.mubr.bf16.gmra.mxu0 %v229
      %v442 = vpop.f32.mrf.mxu0
      %v443 = vadd.f32 %v355, %v442
      %v444 = vpop.f32.mrf.mxu0
      %v445 = vpop.f32.mrf.mxu0
      %v446 = vpop.f32.mrf.mxu0
      %447 = vdwg.mxu0
      %s448 = scalar_lea.vmem %s1, 128
      %v449 = vld [vmem:[%s448] sm:$0xf]
      %v450 = vld [vmem:[%s448 + $0x4] sm:$0xf]
      %v451 = vld [vmem:[%s448 + $0x8] sm:$0xf]
      %v452 = vld [vmem:[%s448 + $0xc] sm:$0xf]
      %v453 = vld [vmem:[%s448 + $0x10] sm:$0xf]
      %v454 = vld [vmem:[%s448 + $0x14] sm:$0xf]
      %v455 = vld [vmem:[%s448 + $0x18] sm:$0xf]
      %v456 = vld [vmem:[%s448 + $0x1c] sm:$0xf]
      %v457 = vld [vmem:[%s448 + $0x20] sm:$0xf]
      %v458 = vld [vmem:[%s448 + $0x24] sm:$0xf]
      %v459 = vld [vmem:[%s448 + $0x28] sm:$0xf]
      %v460 = vld [vmem:[%s448 + $0x2c] sm:$0xf]
      %v461 = vld [vmem:[%s448 + $0x30] sm:$0xf]
      %v462 = vld [vmem:[%s448 + $0x34] sm:$0xf]
      %v463 = vld [vmem:[%s448 + $0x38] sm:$0xf]
      %v464 = vld [vmem:[%s448 + $0x3c] sm:$0xf]
      %v466 = vrot.slane %v246, 1
      %v484 = vunpack.c.l.b16 %v449
      %v485 = vunpack.c.l.b16 %v450
      %v486 = vunpack.c.l.b16 %v451
      %v487 = vunpack.c.l.b16 %v452
      %v488 = vunpack.c.l.b16 %v453
      %v489 = vunpack.c.l.b16 %v454
      %v490 = vunpack.c.l.b16 %v455
      %v491 = vunpack.c.l.b16 %v456
      %v492 = vunpack.c.l.b16 %v457
      %v493 = vunpack.c.l.b16 %v458
      %v494 = vunpack.c.l.b16 %v459
      %v495 = vunpack.c.l.b16 %v460
      %v496 = vunpack.c.l.b16 %v461
      %v497 = vunpack.c.l.b16 %v462
      %v498 = vunpack.c.l.b16 %v463
      %v499 = vunpack.c.l.b16 %v464
      %v500 = vpack.c.b16 %v485, %v484
      %v501 = vpack.c.b16 %v487, %v486
      %v502 = vpack.c.b16 %v489, %v488
      %v503 = vpack.c.b16 %v491, %v490
      %v504 = vpack.c.b16 %v493, %v492
      %v505 = vpack.c.b16 %v495, %v494
      %v506 = vpack.c.b16 %v497, %v496
      %v507 = vpack.c.b16 %v499, %v498
      %516 = vmatprep.subr.bf16.mxu0 0
      %517 = vmatpush1.bf16.msra.mxu0 %v507
      %518 = vmatprep.subr.bf16.mxu0 0
      %519 = vmatpush1.bf16.msra.mxu0 %v506
      %520 = vmatprep.subr.bf16.mxu0 0
      %521 = vmatpush1.bf16.msra.mxu0 %v505
      %522 = vmatprep.subr.bf16.mxu0 0
      %523 = vmatpush1.bf16.msra.mxu0 %v504
      %524 = vmatprep.subr.bf16.mxu0 0
      %525 = vmatpush1.bf16.msra.mxu0 %v503
      %526 = vmatprep.subr.bf16.mxu0 0
      %527 = vmatpush1.bf16.msra.mxu0 %v502
      %528 = vmatprep.subr.bf16.mxu0 0
      %529 = vmatpush1.bf16.msra.mxu0 %v501
      %530 = vmatprep.subr.bf16.mxu0 0
      %531 = vmatpush1.bf16.msra.mxu0 %v500
      %532 = vmatprep.subr.bf16.mxu0 0
      %533 = vmatpush2.bf16.msra.mxu0 0
      %534 = vmatprep.subr.bf16.mxu0 0
      %535 = vmatpush2.bf16.msra.mxu0 0
      %536 = vmatprep.subr.bf16.mxu0 0
      %537 = vmatpush2.bf16.msra.mxu0 0
      %538 = vmatprep.subr.bf16.mxu0 0
      %539 = vmatpush2.bf16.msra.mxu0 0
      %540 = vmatprep.subr.bf16.mxu0 0
      %541 = vmatpush2.bf16.msra.mxu0 0
      %542 = vmatprep.subr.bf16.mxu0 0
      %543 = vmatpush2.bf16.msra.mxu0 0
      %544 = vmatprep.subr.bf16.mxu0 0
      %545 = vmatpush2.bf16.msra.mxu0 0
      %546 = vmatprep.subr.bf16.mxu0 0
      %547 = vmatpush2.bf16.msra.mxu0 0
      %548 = vmatprep.mubr.bf16.mxu0 0
      %549 = vmatmul.mubr.bf16.gmra.mxu0 %v466
      %v550 = vpop.f32.mrf.mxu0
      %v551 = vadd.f32 0.0, %v550
      %v552 = vpop.f32.mrf.mxu0
      %v553 = vpop.f32.mrf.mxu0
      %v554 = vpop.f32.mrf.mxu0
      %555 = vdwg.mxu0
      %v556 = vadd.f32 %v443, %v551
      %v557 = vld [vmem:[%s2] sm:$0x1]
      %v559 = vlaneseq
      %v560 = vshrl.u32 %v559, 7
      %v561 = vsub.s32 0, %v560
      %v562 = vrot.slane %v557, %v561
      %v564 = vadd.f32 %v556, %v562
      %v565 = vmax.f32 %v564, 0.0
      %v567 = vrot.slane %v565, 7
      %v569 = vsel %vm226, 0.0, %v567
      %v570 = vsel %vm226, %v567, 0.0
      %v571 = vpack.c.bf16 %v569, %v569
      %v572 = vld [vmem:[%s3] sm:$0xf]
      %v573 = vld [vmem:[%s3 + $0x4] sm:$0xf]
      %v574 = vld [vmem:[%s3 + $0x8] sm:$0xf]
      %v575 = vld [vmem:[%s3 + $0xc] sm:$0xf]
      %v576 = vld [vmem:[%s3 + $0x10] sm:$0xf]
      %v577 = vld [vmem:[%s3 + $0x14] sm:$0xf]
      %v578 = vld [vmem:[%s3 + $0x18] sm:$0xf]
      %v579 = vld [vmem:[%s3 + $0x1c] sm:$0xf]
      %v580 = vld [vmem:[%s3 + $0x20] sm:$0xf]
      %v581 = vld [vmem:[%s3 + $0x24] sm:$0xf]
      %v582 = vld [vmem:[%s3 + $0x28] sm:$0xf]
      %v583 = vld [vmem:[%s3 + $0x2c] sm:$0xf]
      %v584 = vld [vmem:[%s3 + $0x30] sm:$0xf]
      %v585 = vld [vmem:[%s3 + $0x34] sm:$0xf]
      %v586 = vld [vmem:[%s3 + $0x38] sm:$0xf]
      %v587 = vld [vmem:[%s3 + $0x3c] sm:$0xf]
      %v588 = vpack.c.bf16 %v570, %v569
      %s589 = scalar_lea.vmem %s3, 64
      %v590 = vld [vmem:[%s589] sm:$0xf]
      %v591 = vld [vmem:[%s589 + $0x4] sm:$0xf]
      %v592 = vld [vmem:[%s589 + $0x8] sm:$0xf]
      %v593 = vld [vmem:[%s589 + $0xc] sm:$0xf]
      %v594 = vld [vmem:[%s589 + $0x10] sm:$0xf]
      %v595 = vld [vmem:[%s589 + $0x14] sm:$0xf]
      %v596 = vld [vmem:[%s589 + $0x18] sm:$0xf]
      %v597 = vld [vmem:[%s589 + $0x1c] sm:$0xf]
      %v598 = vld [vmem:[%s589 + $0x20] sm:$0xf]
      %v599 = vld [vmem:[%s589 + $0x24] sm:$0xf]
      %v600 = vld [vmem:[%s589 + $0x28] sm:$0xf]
      %v601 = vld [vmem:[%s589 + $0x2c] sm:$0xf]
      %v602 = vld [vmem:[%s589 + $0x30] sm:$0xf]
      %v603 = vld [vmem:[%s589 + $0x34] sm:$0xf]
      %v604 = vld [vmem:[%s589 + $0x38] sm:$0xf]
      %v605 = vld [vmem:[%s589 + $0x3c] sm:$0xf]
      %v607 = vshrl.u32 %v588, 16
      %v609 = vshll.u32 %v588, 16
      %v611 = vrot.slane %v609, 1
      %v612 = vor.u32 %v607, %v611
      %v630 = vunpack.c.l.b16 %v590
      %v631 = vunpack.c.l.b16 %v591
      %v632 = vunpack.c.l.b16 %v592
      %v633 = vunpack.c.l.b16 %v593
      %v634 = vunpack.c.l.b16 %v594
      %v635 = vunpack.c.l.b16 %v595
      %v636 = vunpack.c.l.b16 %v596
      %v637 = vunpack.c.l.b16 %v597
      %v638 = vunpack.c.l.b16 %v598
      %v639 = vunpack.c.l.b16 %v599
      %v640 = vunpack.c.l.b16 %v600
      %v641 = vunpack.c.l.b16 %v601
      %v642 = vunpack.c.l.b16 %v602
      %v643 = vunpack.c.l.b16 %v603
      %v644 = vunpack.c.l.b16 %v604
      %v645 = vunpack.c.l.b16 %v605
      %v646 = vpack.c.b16 %v631, %v630
      %v647 = vpack.c.b16 %v633, %v632
      %v648 = vpack.c.b16 %v635, %v634
      %v649 = vpack.c.b16 %v637, %v636
      %v650 = vpack.c.b16 %v639, %v638
      %v651 = vpack.c.b16 %v641, %v640
      %v652 = vpack.c.b16 %v643, %v642
      %v653 = vpack.c.b16 %v645, %v644
      %662 = vmatprep.subr.bf16.mxu0 0
      %663 = vmatpush1.bf16.msra.mxu0 %v653
      %664 = vmatprep.subr.bf16.mxu0 0
      %665 = vmatpush1.bf16.msra.mxu0 %v652
      %666 = vmatprep.subr.bf16.mxu0 0
      %667 = vmatpush1.bf16.msra.mxu0 %v651
      %668 = vmatprep.subr.bf16.mxu0 0
      %669 = vmatpush1.bf16.msra.mxu0 %v650
      %670 = vmatprep.subr.bf16.mxu0 0
      %671 = vmatpush1.bf16.msra.mxu0 %v649
      %672 = vmatprep.subr.bf16.mxu0 0
      %673 = vmatpush1.bf16.msra.mxu0 %v648
      %674 = vmatprep.subr.bf16.mxu0 0
      %675 = vmatpush1.bf16.msra.mxu0 %v647
      %676 = vmatprep.subr.bf16.mxu0 0
      %677 = vmatpush1.bf16.msra.mxu0 %v646
      %678 = vmatprep.subr.bf16.mxu0 0
      %679 = vmatpush2.bf16.msra.mxu0 0
      %680 = vmatprep.subr.bf16.mxu0 0
      %681 = vmatpush2.bf16.msra.mxu0 0
      %682 = vmatprep.subr.bf16.mxu0 0
      %683 = vmatpush2.bf16.msra.mxu0 0
      %684 = vmatprep.subr.bf16.mxu0 0
      %685 = vmatpush2.bf16.msra.mxu0 0
      %686 = vmatprep.subr.bf16.mxu0 0
      %687 = vmatpush2.bf16.msra.mxu0 0
      %688 = vmatprep.subr.bf16.mxu0 0
      %689 = vmatpush2.bf16.msra.mxu0 0
      %690 = vmatprep.subr.bf16.mxu0 0
      %691 = vmatpush2.bf16.msra.mxu0 0
      %692 = vmatprep.subr.bf16.mxu0 0
      %693 = vmatpush2.bf16.msra.mxu0 0
      %694 = vmatprep.mubr.bf16.mxu0 0
      %695 = vmatmul.mubr.bf16.gmra.mxu0 %v612
      %v696 = vpop.f32.mrf.mxu0
      %v697 = vadd.f32 0.0, %v696
      %v698 = vpop.f32.mrf.mxu0
      %v699 = vpop.f32.mrf.mxu0
      %v700 = vpop.f32.mrf.mxu0
      %701 = vdwg.mxu0
      %v718 = vunpack.c.l.b16 %v572
      %v719 = vunpack.c.l.b16 %v573
      %v720 = vunpack.c.l.b16 %v574
      %v721 = vunpack.c.l.b16 %v575
      %v722 = vunpack.c.l.b16 %v576
      %v723 = vunpack.c.l.b16 %v577
      %v724 = vunpack.c.l.b16 %v578
      %v725 = vunpack.c.l.b16 %v579
      %v726 = vunpack.c.l.b16 %v580
      %v727 = vunpack.c.l.b16 %v581
      %v728 = vunpack.c.l.b16 %v582
      %v729 = vunpack.c.l.b16 %v583
      %v730 = vunpack.c.l.b16 %v584
      %v731 = vunpack.c.l.b16 %v585
      %v732 = vunpack.c.l.b16 %v586
      %v733 = vunpack.c.l.b16 %v587
      %v734 = vpack.c.b16 %v719, %v718
      %v735 = vpack.c.b16 %v721, %v720
      %v736 = vpack.c.b16 %v723, %v722
      %v737 = vpack.c.b16 %v725, %v724
      %v738 = vpack.c.b16 %v727, %v726
      %v739 = vpack.c.b16 %v729, %v728
      %v740 = vpack.c.b16 %v731, %v730
      %v741 = vpack.c.b16 %v733, %v732
      %750 = vmatprep.subr.bf16.mxu0 0
      %751 = vmatpush1.bf16.msra.mxu0 %v741
      %752 = vmatprep.subr.bf16.mxu0 0
      %753 = vmatpush1.bf16.msra.mxu0 %v740
      %754 = vmatprep.subr.bf16.mxu0 0
      %755 = vmatpush1.bf16.msra.mxu0 %v739
      %756 = vmatprep.subr.bf16.mxu0 0
      %757 = vmatpush1.bf16.msra.mxu0 %v738
      %758 = vmatprep.subr.bf16.mxu0 0
      %759 = vmatpush1.bf16.msra.mxu0 %v737
      %760 = vmatprep.subr.bf16.mxu0 0
      %761 = vmatpush1.bf16.msra.mxu0 %v736
      %762 = vmatprep.subr.bf16.mxu0 0
      %763 = vmatpush1.bf16.msra.mxu0 %v735
      %764 = vmatprep.subr.bf16.mxu0 0
      %765 = vmatpush1.bf16.msra.mxu0 %v734
      %766 = vmatprep.subr.bf16.mxu0 0
      %767 = vmatpush2.bf16.msra.mxu0 0
      %768 = vmatprep.subr.bf16.mxu0 0
      %769 = vmatpush2.bf16.msra.mxu0 0
      %770 = vmatprep.subr.bf16.mxu0 0
      %771 = vmatpush2.bf16.msra.mxu0 0
      %772 = vmatprep.subr.bf16.mxu0 0
      %773 = vmatpush2.bf16.msra.mxu0 0
      %774 = vmatprep.subr.bf16.mxu0 0
      %775 = vmatpush2.bf16.msra.mxu0 0
      %776 = vmatprep.subr.bf16.mxu0 0
      %777 = vmatpush2.bf16.msra.mxu0 0
      %778 = vmatprep.subr.bf16.mxu0 0
      %779 = vmatpush2.bf16.msra.mxu0 0
      %780 = vmatprep.subr.bf16.mxu0 0
      %781 = vmatpush2.bf16.msra.mxu0 0
      %782 = vmatprep.mubr.bf16.mxu0 0
      %783 = vmatmul.mubr.bf16.gmra.mxu0 %v571
      %v784 = vpop.f32.mrf.mxu0
      %v785 = vadd.f32 %v697, %v784
      %v786 = vpop.f32.mrf.mxu0
      %v787 = vpop.f32.mrf.mxu0
      %v788 = vpop.f32.mrf.mxu0
      %789 = vdwg.mxu0
      %s790 = scalar_lea.vmem %s3, 128
      %v791 = vld [vmem:[%s790] sm:$0xf]
      %v792 = vld [vmem:[%s790 + $0x4] sm:$0xf]
      %v793 = vld [vmem:[%s790 + $0x8] sm:$0xf]
      %v794 = vld [vmem:[%s790 + $0xc] sm:$0xf]
      %v795 = vld [vmem:[%s790 + $0x10] sm:$0xf]
      %v796 = vld [vmem:[%s790 + $0x14] sm:$0xf]
      %v797 = vld [vmem:[%s790 + $0x18] sm:$0xf]
      %v798 = vld [vmem:[%s790 + $0x1c] sm:$0xf]
      %v799 = vld [vmem:[%s790 + $0x20] sm:$0xf]
      %v800 = vld [vmem:[%s790 + $0x24] sm:$0xf]
      %v801 = vld [vmem:[%s790 + $0x28] sm:$0xf]
      %v802 = vld [vmem:[%s790 + $0x2c] sm:$0xf]
      %v803 = vld [vmem:[%s790 + $0x30] sm:$0xf]
      %v804 = vld [vmem:[%s790 + $0x34] sm:$0xf]
      %v805 = vld [vmem:[%s790 + $0x38] sm:$0xf]
      %v806 = vld [vmem:[%s790 + $0x3c] sm:$0xf]
      %v808 = vrot.slane %v588, 1
      %v826 = vunpack.c.l.b16 %v791
      %v827 = vunpack.c.l.b16 %v792
      %v828 = vunpack.c.l.b16 %v793
      %v829 = vunpack.c.l.b16 %v794
      %v830 = vunpack.c.l.b16 %v795
      %v831 = vunpack.c.l.b16 %v796
      %v832 = vunpack.c.l.b16 %v797
      %v833 = vunpack.c.l.b16 %v798
      %v834 = vunpack.c.l.b16 %v799
      %v835 = vunpack.c.l.b16 %v800
      %v836 = vunpack.c.l.b16 %v801
      %v837 = vunpack.c.l.b16 %v802
      %v838 = vunpack.c.l.b16 %v803
      %v839 = vunpack.c.l.b16 %v804
      %v840 = vunpack.c.l.b16 %v805
      %v841 = vunpack.c.l.b16 %v806
      %v842 = vpack.c.b16 %v827, %v826
      %v843 = vpack.c.b16 %v829, %v828
      %v844 = vpack.c.b16 %v831, %v830
      %v845 = vpack.c.b16 %v833, %v832
      %v846 = vpack.c.b16 %v835, %v834
      %v847 = vpack.c.b16 %v837, %v836
      %v848 = vpack.c.b16 %v839, %v838
      %v849 = vpack.c.b16 %v841, %v840
      %858 = vmatprep.subr.bf16.mxu0 0
      %859 = vmatpush1.bf16.msra.mxu0 %v849
      %860 = vmatprep.subr.bf16.mxu0 0
      %861 = vmatpush1.bf16.msra.mxu0 %v848
      %862 = vmatprep.subr.bf16.mxu0 0
      %863 = vmatpush1.bf16.msra.mxu0 %v847
      %864 = vmatprep.subr.bf16.mxu0 0
      %865 = vmatpush1.bf16.msra.mxu0 %v846
      %866 = vmatprep.subr.bf16.mxu0 0
      %867 = vmatpush1.bf16.msra.mxu0 %v845
      %868 = vmatprep.subr.bf16.mxu0 0
      %869 = vmatpush1.bf16.msra.mxu0 %v844
      %870 = vmatprep.subr.bf16.mxu0 0
      %871 = vmatpush1.bf16.msra.mxu0 %v843
      %872 = vmatprep.subr.bf16.mxu0 0
      %873 = vmatpush1.bf16.msra.mxu0 %v842
      %874 = vmatprep.subr.bf16.mxu0 0
      %875 = vmatpush2.bf16.msra.mxu0 0
      %876 = vmatprep.subr.bf16.mxu0 0
      %877 = vmatpush2.bf16.msra.mxu0 0
      %878 = vmatprep.subr.bf16.mxu0 0
      %879 = vmatpush2.bf16.msra.mxu0 0
      %880 = vmatprep.subr.bf16.mxu0 0
      %881 = vmatpush2.bf16.msra.mxu0 0
      %882 = vmatprep.subr.bf16.mxu0 0
      %883 = vmatpush2.bf16.msra.mxu0 0
      %884 = vmatprep.subr.bf16.mxu0 0
      %885 = vmatpush2.bf16.msra.mxu0 0
      %886 = vmatprep.subr.bf16.mxu0 0
      %887 = vmatpush2.bf16.msra.mxu0 0
      %888 = vmatprep.subr.bf16.mxu0 0
      %889 = vmatpush2.bf16.msra.mxu0 0
      %890 = vmatprep.mubr.bf16.mxu0 0
      %891 = vmatmul.mubr.bf16.gmra.mxu0 %v808
      %v892 = vpop.f32.mrf.mxu0
      %v893 = vadd.f32 0.0, %v892
      %v894 = vpop.f32.mrf.mxu0
      %v895 = vpop.f32.mrf.mxu0
      %v896 = vpop.f32.mrf.mxu0
      %897 = vdwg.mxu0
      %v898 = vadd.f32 %v785, %v893
      %v899 = vld [vmem:[%s4] sm:$0x1]
      %v901 = vlaneseq
      %v902 = vshrl.u32 %v901, 7
      %v903 = vsub.s32 0, %v902
      %v904 = vrot.slane %v899, %v903
      %v906 = vadd.f32 %v898, %v904
      %v907 = vadd.f32 %v906, %v222
      %v908 = vmax.f32 %v907, 0.0
      %v909 = vpack.c.bf16 %v908, %v908
      %910 = vst [vmem:[%s219] sm:$0xf] %v909
      %p911 = scmp.lt.s32.totalorder %s16, 1
      %s912 = scalar_select %p911, %s16, 1
      %s913 = smul.addr %s912, 4
      %s914 = scalar_lea.vmem %s5, %s913
      // Predicated region
      $region41: #{_lambda_.7} parent=39 // pred_check
        %p915 = pneg %p144
      $region42: #{_lambda_.7} parent=39 // pred_check_branch
        %917 = sbr.rel (%p915) target = $region44
      $region43: #{_lambda_.7} parent=39 // pred_region
        _
      $region44: #{_lambda_.7} parent=39 // pred_fallthru
        _
    $region40: #{_lambda_.7} parent=5 // pred_fallthru
      _
    %p918 = scmp.le.s32.totalorder 2, %s11
    // Predicated region
    $region45: #{_lambda_.7} parent=5 // pred_check
      %p919 = pneg %p918
    $region46: #{_lambda_.7} parent=5 // pred_check_branch
      %921 = sbr.rel (%p919) target = $region48
    $region47: #{_lambda_.7} parent=5 // pred_region
      %s922 = ssub.s32 %s11, 2
      // Predicated region
      $region49: #{_lambda_.7} parent=47 // pred_check
        %p923 = pneg %p150
      $region50: #{_lambda_.7} parent=47 // pred_check_branch
        %925 = sbr.rel (%p923) target = $region52
      $region51: #{_lambda_.7} parent=47 // pred_region
        %p926 = scmp.lt.s32.totalorder %s17, 1
        %s927 = scalar_select %p926, %s17, 1
        %s928 = smul.addr %s927, 4
        %s929 = scalar_lea.vmem %s5, %s928
      $region52: #{_lambda_.7} parent=47 // pred_fallthru
        _
    $region48: #{_lambda_.7} parent=5 // pred_fallthru
      _
  $region6: #{_lambda_.7} parent=0 // loop_footer
    %s15 = sadd.s32 1, %s11
  $region7: #{_lambda_.7} parent=0 // loop_footer_branch
    %10 = sbr.rel target = $region3
  $region8: #{_lambda_.7} parent=0 // loop_exit
    _

// kernel: _lambda_.9
$region0: #{_lambda_.9}
  #allocation0 [shape = 'u32[]', space=smem, size = 0x4, offset = 0x4, fixed_abs, tag = 'smem constant byte address 0x4 - core index']
  #allocation1 [shape = 'u32[144,128]{1,0:T(1,128)}', space=vmem, size = 0x12000, scoped, tag = 'internal scratch']
  %s0 = inlined_call_operand.vmem [shape: bf16[2,16,128], index: 0, kind: input, shape index: {}]
  %s1 = inlined_call_operand.vmem [shape: bf16[3,128,128], index: 1, kind: input, shape index: {}]
  %s2 = inlined_call_operand.vmem [shape: f32[1,128], index: 2, kind: input, shape index: {}]
  %s3 = inlined_call_operand.vmem [shape: bf16[2,8,128], index: 3, kind: input, shape index: {}]
  %s4 = inlined_call_operand.vmem [shape: bf16[2,8,128], index: 4, kind: output, shape index: {}]
  %s5 = sld [smem:[#allocation0]]
  $region49: #{_lambda_.9} parent=0
    _
  %s7 = ssub.s32 1, %s5
  %s8 = scalar_select 0, %s7, %s5
  loop: start=0, step=1, limit=4
  $region2: #{_lambda_.9} parent=0 // loop_pre_header
    _
  $region3: #{_lambda_.9} parent=0 // loop_header
    %s10 = sphi 0, %s14
    %p11 = scmp.ge.s32.totalorder %s10, 4
    %s20 = sphi 0, %s22
    %s23 = sphi 0, %s20
    %s24 = sphi 0, %s23
    %s40 = sphi 0, %s24
    %s44 = sphi 0, %s44
    %s46 = sphi 0, %s44
    %s47 = sphi 0, %s46
    %s61 = sphi 0, %s47
    %s65 = sphi 0, %s65
    %s67 = sphi 0, %s65
    %s68 = sphi 0, %s67
    %s82 = sphi 0, %s68
    %s88 = sphi 0, %s90
    %s91 = sphi 0, %s88
    %s92 = sphi 0, %s91
    %s108 = sphi 0, %s92
    %s114 = sphi 0, %s116
    %s117 = sphi 0, %s114
    %s118 = sphi 0, %s117
    %s134 = sphi 0, %s118
  $region4: #{_lambda_.9} parent=0 // loop_header_branch
    %13 = sbr.rel (%p11) target = $region8
  $region5: #{_lambda_.9} parent=0 // loop_body
    %s15 = ssub.s32 %s10, 1
    %s16 = ssub.s32 %s10, 2
    %s17 = sadd.s32 %s10, 1
    %s18 = ssub.s32 %s10, %s17
    %p19 = scmp.eq.s32.totalorder %s18, 0
    %s21 = sadd.s32 %s20, 1
    %s22 = scalar_select %p19, %s20, %s21
    %p25 = pneg %p19
    %p26 = scmp.eq.s32.totalorder %s10, 1
    %p27 = por %p25, %p26
    %p28 = scmp.ne.s32.totalorder %s20, %s23
    %p29 = scmp.eq.s32.totalorder %s10, 0
    %p30 = por %p28, %p29
    %p31 = scmp.ne.s32.totalorder %s20, %s23
    %p32 = scmp.eq.s32.totalorder %s15, 1
    %p33 = por %p31, %p32
    %p34 = scmp.ne.s32.totalorder %s23, %s24
    %p35 = scmp.eq.s32.totalorder %s15, 0
    %p36 = por %p34, %p35
    %p37 = scmp.ne.s32.totalorder %s23, %s24
    %p38 = scmp.eq.s32.totalorder %s16, 1
    %p39 = por %p37, %p38
    %p41 = scmp.ne.s32.totalorder %s24, %s40
    %p42 = scmp.eq.s32.totalorder %s16, 0
    %p43 = por %p41, %p42
    %s45 = sadd.s32 %s44, 1
    %p48 = scmp.eq.s32.totalorder %s10, 1
    %p49 = scmp.ne.s32.totalorder %s44, %s46
    %p50 = scmp.eq.s32.totalorder %s10, 0
    %p51 = por %p49, %p50
    %p52 = scmp.ne.s32.totalorder %s44, %s46
    %p53 = scmp.eq.s32.totalorder %s15, 1
    %p54 = por %p52, %p53
    %p55 = scmp.ne.s32.totalorder %s46, %s47
    %p56 = scmp.eq.s32.totalorder %s15, 0
    %p57 = por %p55, %p56
    %p58 = scmp.ne.s32.totalorder %s46, %s47
    %p59 = scmp.eq.s32.totalorder %s16, 1
    %p60 = por %p58, %p59
    %p62 = scmp.ne.s32.totalorder %s47, %s61
    %p63 = scmp.eq.s32.totalorder %s16, 0
    %p64 = por %p62, %p63
    %s66 = sadd.s32 %s65, 1
    %p69 = scmp.eq.s32.totalorder %s10, 1
    %p70 = scmp.ne.s32.totalorder %s65, %s67
    %p71 = scmp.eq.s32.totalorder %s10, 0
    %p72 = por %p70, %p71
    %p73 = scmp.ne.s32.totalorder %s65, %s67
    %p74 = scmp.eq.s32.totalorder %s15, 1
    %p75 = por %p73, %p74
    %p76 = scmp.ne.s32.totalorder %s67, %s68
    %p77 = scmp.eq.s32.totalorder %s15, 0
    %p78 = por %p76, %p77
    %p79 = scmp.ne.s32.totalorder %s67, %s68
    %p80 = scmp.eq.s32.totalorder %s16, 1
    %p81 = por %p79, %p80
    %p83 = scmp.ne.s32.totalorder %s68, %s82
    %p84 = scmp.eq.s32.totalorder %s16, 0
    %p85 = por %p83, %p84
    %s86 = ssub.s32 %s10, %s17
    %p87 = scmp.eq.s32.totalorder %s86, 0
    %s89 = sadd.s32 %s88, 1
    %s90 = scalar_select %p87, %s88, %s89
    %p93 = pneg %p87
    %p94 = scmp.eq.s32.totalorder %s10, 1
    %p95 = por %p93, %p94
    %p96 = scmp.ne.s32.totalorder %s88, %s91
    %p97 = scmp.eq.s32.totalorder %s10, 0
    %p98 = por %p96, %p97
    %p99 = scmp.ne.s32.totalorder %s88, %s91
    %p100 = scmp.eq.s32.totalorder %s15, 1
    %p101 = por %p99, %p100
    %p102 = scmp.ne.s32.totalorder %s91, %s92
    %p103 = scmp.eq.s32.totalorder %s15, 0
    %p104 = por %p102, %p103
    %p105 = scmp.ne.s32.totalorder %s91, %s92
    %p106 = scmp.eq.s32.totalorder %s16, 1
    %p107 = por %p105, %p106
    %p109 = scmp.ne.s32.totalorder %s92, %s108
    %p110 = scmp.eq.s32.totalorder %s16, 0
    %p111 = por %p109, %p110
    %s112 = ssub.s32 %s10, %s17
    %p113 = scmp.eq.s32.totalorder %s112, 0
    %s115 = sadd.s32 %s114, 1
    %s116 = scalar_select %p113, %s114, %s115
    %p119 = pneg %p113
    %p120 = scmp.eq.s32.totalorder %s10, 1
    %p121 = por %p119, %p120
    %p122 = scmp.ne.s32.totalorder %s114, %s117
    %p123 = scmp.eq.s32.totalorder %s10, 0
    %p124 = por %p122, %p123
    %p125 = scmp.ne.s32.totalorder %s114, %s117
    %p126 = scmp.eq.s32.totalorder %s15, 1
    %p127 = por %p125, %p126
    %p128 = scmp.ne.s32.totalorder %s117, %s118
    %p129 = scmp.eq.s32.totalorder %s15, 0
    %p130 = por %p128, %p129
    %p131 = scmp.ne.s32.totalorder %s117, %s118
    %p132 = scmp.eq.s32.totalorder %s16, 1
    %p133 = por %p131, %p132
    %p135 = scmp.ne.s32.totalorder %s118, %s134
    %p136 = scmp.eq.s32.totalorder %s16, 0
    %p137 = por %p135, %p136
    %p138 = scmp.le.s32.totalorder 1, %s10
    %p139 = scmp.lt.s32.totalorder %s10, 3
    %p140 = pnand %p138, %p139
    %p141 = pneg %p140
    // Predicated region
    $region9: #{_lambda_.9} parent=5 // pred_check
      _
    $region10: #{_lambda_.9} parent=5 // pred_check_branch
      %143 = sbr.rel (%p140) target = $region12
    $region11: #{_lambda_.9} parent=5 // pred_region
      %s144 = ssub.s32 %s10, 1
      // Predicated region
      $region13: #{_lambda_.9} parent=11 // pred_check
        %p145 = pneg %p57
      $region14: #{_lambda_.9} parent=11 // pred_check_branch
        %147 = sbr.rel (%p145) target = $region16
      $region15: #{_lambda_.9} parent=11 // pred_region
        _
      $region16: #{_lambda_.9} parent=11 // pred_fallthru
        _
      // Predicated region
      $region17: #{_lambda_.9} parent=11 // pred_check
        %p148 = pneg %p78
      $region18: #{_lambda_.9} parent=11 // pred_check_branch
        %150 = sbr.rel (%p148) target = $region20
      $region19: #{_lambda_.9} parent=11 // pred_region
        _
      $region20: #{_lambda_.9} parent=11 // pred_fallthru
        _
    $region12: #{_lambda_.9} parent=5 // pred_fallthru
      _
    %p151 = scmp.lt.s32.totalorder %s10, 2
    // Predicated region
    $region21: #{_lambda_.9} parent=5 // pred_check
      %p152 = pneg %p151
    $region22: #{_lambda_.9} parent=5 // pred_check_branch
      %154 = sbr.rel (%p152) target = $region24
    $region23: #{_lambda_.9} parent=5 // pred_region
      // Predicated region
      $region25: #{_lambda_.9} parent=23 // pred_check
        %p155 = pneg %p30
      $region26: #{_lambda_.9} parent=23 // pred_check_branch
        %157 = sbr.rel (%p155) target = $region28
      $region27: #{_lambda_.9} parent=23 // pred_region
        %p158 = scmp.lt.s32.totalorder %s10, 1
        %s159 = scalar_select %p158, %s10, 1
        %s160 = smul.addr %s159, 2
        %s161 = smul.addr %s160, 4
        %s162 = scalar_lea.vmem %s0, %s161
      $region28: #{_lambda_.9} parent=23 // pred_fallthru
        _
      // Predicated region
      $region29: #{_lambda_.9} parent=23 // pred_check
        %p163 = pneg %p98
      $region30: #{_lambda_.9} parent=23 // pred_check_branch
        %165 = sbr.rel (%p163) target = $region32
      $region31: #{_lambda_.9} parent=23 // pred_region
        %p166 = scmp.lt.s32.totalorder %s10, 1
        %s167 = scalar_select %p166, %s10, 1
        %s168 = smul.addr %s167, 4
        %s169 = scalar_lea.vmem %s3, %s168
      $region32: #{_lambda_.9} parent=23 // pred_fallthru
        _
    $region24: #{_lambda_.9} parent=5 // pred_fallthru
      _
    %p170 = scmp.le.s32.totalorder 1, %s10
    %p171 = scmp.lt.s32.totalorder %s10, 3
    %p172 = pnand %p170, %p171
    %p173 = pneg %p172
    // Predicated region
    $region33: #{_lambda_.9} parent=5 // pred_check
      _
    $region34: #{_lambda_.9} parent=5 // pred_check_branch
      %175 = sbr.rel (%p172) target = $region36
    $region35: #{_lambda_.9} parent=5 // pred_region
      %s176 = ssub.s32 %s10, 1
      %p177 = scmp.lt.s32.totalorder %s15, 1
      %s178 = scalar_select %p177, %s15, 1
      %s179 = smul.addr %s178, 2
      %s180 = smul.addr %s179, 4
      %s181 = scalar_lea.vmem %s0, %s180
      %p182 = pneg %p36
      %p183 = pneg %p33
      %p184 = pneg %p57
      %p185 = pneg %p54
      %p186 = pneg %p78
      %p187 = pneg %p75
      %p188 = scmp.lt.s32.totalorder %s15, 1
      %s189 = scalar_select %p188, %s15, 1
      %s190 = smul.addr %s189, 4
      %s191 = scalar_lea.vmem %s3, %s190
      %p192 = pneg %p104
      %p193 = pneg %p101
      %p194 = pneg %p130
      %p195 = pneg %p127
      %p196 = scmp.lt.s32.totalorder %s15, 1
      %s197 = scalar_select %p196, %s15, 1
      %s198 = smul.addr %s197, 4
      %s199 = scalar_lea.vmem %s4, %s198
      %p200 = scmp.lt.s32.totalorder %s15, 1
      %s201 = scalar_select %p200, %s15, 1
      %s202 = smul.addr %s201, 2
      %s203 = smul.addr %s202, 4
      %s204 = scalar_lea.vmem %s0, %s203
      %p205 = scmp.lt.s32.totalorder %s15, 1
      %s206 = scalar_select %p205, %s15, 1
      %s207 = smul.addr %s206, 4
      %s208 = scalar_lea.vmem %s3, %s207
      %p209 = scmp.lt.s32.totalorder %s15, 1
      %s210 = scalar_select %p209, %s15, 1
      %s211 = smul.addr %s210, 4
      %s212 = scalar_lea.vmem %s4, %s211
      %v214 = vld [vmem:[%s204] sm:$0xf]
      %v215 = vld [vmem:[%s204 + $0x4] sm:$0xf]
      %v216 = vunpack.c.l.bf16 %v214
      %v217 = vunpack.c.l.bf16 %v215
      %vm220 = vcmask 1040384
      %v221 = vrot.slane %v216, 7
      %v222 = vrot.slane %v217, 7
      %v223 = vsel %vm220, %v221, %v222
      %v227 = vsel %vm220, 0.0, %v221
      %v228 = vsel %vm220, %v222, 0.0
      %v229 = vlaneseq
      %v230 = vshrl.u32 %v229, 7
      %v231 = vlaneseq
      %v232 = vand.u32 %v231, 127
      %v233 = vmul.u32 %v230, 2
      %vm234 = vcmp.eq.s32.totalorder %v232, %v233
      %v235 = vsel %vm234, 1, 0
      %v236 = vcvt.s32.f32 %v235
      %vm237 = vcmask 146432
      %v239 = vsel %vm237, %v236, 0
      %vm241 = vcmask 1041408
      %v243 = vsel %vm241, %v228, 0
      %245 = vmatprep.subr.mxu0 0.0
      %246 = vmatpush1.msra.mxu0 0.0
      %247 = vmatprep.subr.mxu0 0.0
      %248 = vmatpush1.msra.mxu0 0.0
      %249 = vmatprep.subr.mxu0 0.0
      %250 = vmatpush1.msra.mxu0 0.0
      %251 = vmatprep.subr.mxu0 0.0
      %252 = vmatpush1.msra.mxu0 0.0
      %253 = vmatprep.subr.mxu0 0.0
      %254 = vmatpush1.msra.mxu0 0.0
      %255 = vmatprep.subr.mxu0 0.0
      %256 = vmatpush1.msra.mxu0 0.0
      %257 = vmatprep.subr.mxu0 0.0
      %258 = vmatpush1.msra.mxu0 0.0
      %259 = vmatprep.subr.mxu0 0.0
      %260 = vmatpush1.msra.mxu0 0.0
      %261 = vmatprep.subr.mxu0 0.0
      %262 = vmatpush1.msra.mxu0 0.0
      %263 = vmatprep.subr.mxu0 0.0
      %264 = vmatpush1.msra.mxu0 0.0
      %265 = vmatprep.subr.mxu0 0.0
      %266 = vmatpush1.msra.mxu0 0.0
      %267 = vmatprep.subr.mxu0 0.0
      %268 = vmatpush1.msra.mxu0 0.0
      %269 = vmatprep.subr.mxu0 0.0
      %270 = vmatpush1.msra.mxu0 0.0
      %271 = vmatprep.subr.mxu0 0.0
      %272 = vmatpush1.msra.mxu0 %v243
      %273 = vmatprep.subr.mxu0 0.0
      %274 = vmatpush1.msra.mxu0 %v223
      %275 = vmatprep.subr.mxu0 0.0
      %276 = vmatpush1.msra.mxu0 %v227
      %277 = vmatprep.subr.mxu0 0.0
      %278 = vmatpush2.msra.mxu0 0.0
      %279 = vmatprep.subr.mxu0 0.0
      %280 = vmatpush2.msra.mxu0 0.0
      %281 = vmatprep.subr.mxu0 0.0
      %282 = vmatpush2.msra.mxu0 0.0
      %283 = vmatprep.subr.mxu0 0.0
      %284 = vmatpush2.msra.mxu0 0.0
      %285 = vmatprep.subr.mxu0 0.0
      %286 = vmatpush2.msra.mxu0 0.0
      %287 = vmatprep.subr.mxu0 0.0
      %288 = vmatpush2.msra.mxu0 0.0
      %289 = vmatprep.subr.mxu0 0.0
      %290 = vmatpush2.msra.mxu0 0.0
      %291 = vmatprep.subr.mxu0 0.0
      %292 = vmatpush2.msra.mxu0 0.0
      %293 = vmatprep.subr.mxu0 0.0
      %294 = vmatpush2.msra.mxu0 0.0
      %295 = vmatprep.subr.mxu0 0.0
      %296 = vmatpush2.msra.mxu0 0.0
      %297 = vmatprep.subr.mxu0 0.0
      %298 = vmatpush2.msra.mxu0 0.0
      %299 = vmatprep.subr.mxu0 0.0
      %300 = vmatpush2.msra.mxu0 0.0
      %301 = vmatprep.subr.mxu0 0.0
      %302 = vmatpush2.msra.mxu0 0.0
      %303 = vmatprep.subr.mxu0 0.0
      %304 = vmatpush2.msra.mxu0 0.0
      %305 = vmatprep.subr.mxu0 0.0
      %306 = vmatpush2.msra.mxu0 0.0
      %307 = vmatprep.subr.mxu0 0.0
      %308 = vmatpush2.msra.mxu0 0.0
      %309 = vmatprep.mubr.f32.mxu0 0.0
      %310 = vmatmul.mubr.f32.gmra.mxu0 %v239
      %v311 = vpop.f32.mrf.mxu0
      %v312 = vadd.f32 0.0, %v311
      %v313 = vpop.f32.mrf.mxu0
      %314 = vdwg.mxu0
      %v315 = vpack.c.bf16 %v312, %v312
      %v316 = vld [vmem:[%s1] sm:$0xf]
      %v317 = vld [vmem:[%s1 + $0x4] sm:$0xf]
      %v318 = vld [vmem:[%s1 + $0x8] sm:$0xf]
      %v319 = vld [vmem:[%s1 + $0xc] sm:$0xf]
      %v320 = vld [vmem:[%s1 + $0x10] sm:$0xf]
      %v321 = vld [vmem:[%s1 + $0x14] sm:$0xf]
      %v322 = vld [vmem:[%s1 + $0x18] sm:$0xf]
      %v323 = vld [vmem:[%s1 + $0x1c] sm:$0xf]
      %v324 = vld [vmem:[%s1 + $0x20] sm:$0xf]
      %v325 = vld [vmem:[%s1 + $0x24] sm:$0xf]
      %v326 = vld [vmem:[%s1 + $0x28] sm:$0xf]
      %v327 = vld [vmem:[%s1 + $0x2c] sm:$0xf]
      %v328 = vld [vmem:[%s1 + $0x30] sm:$0xf]
      %v329 = vld [vmem:[%s1 + $0x34] sm:$0xf]
      %v330 = vld [vmem:[%s1 + $0x38] sm:$0xf]
      %v331 = vld [vmem:[%s1 + $0x3c] sm:$0xf]
      %v332 = vadd.s32 %v233, 1
      %vm333 = vcmp.eq.s32.totalorder %v232, %v332
      %v334 = vsel %vm333, 1, 0
      %v335 = vcvt.s32.f32 %v334
      %v337 = vsel %vm237, %v335, 0
      %339 = vmatprep.subr.mxu0 0.0
      %340 = vmatpush1.msra.mxu0 0.0
      %341 = vmatprep.subr.mxu0 0.0
      %342 = vmatpush1.msra.mxu0 0.0
      %343 = vmatprep.subr.mxu0 0.0
      %344 = vmatpush1.msra.mxu0 0.0
      %345 = vmatprep.subr.mxu0 0.0
      %346 = vmatpush1.msra.mxu0 0.0
      %347 = vmatprep.subr.mxu0 0.0
      %348 = vmatpush1.msra.mxu0 0.0
      %349 = vmatprep.subr.mxu0 0.0
      %350 = vmatpush1.msra.mxu0 0.0
      %351 = vmatprep.subr.mxu0 0.0
      %352 = vmatpush1.msra.mxu0 0.0
      %353 = vmatprep.subr.mxu0 0.0
      %354 = vmatpush1.msra.mxu0 0.0
      %355 = vmatprep.subr.mxu0 0.0
      %356 = vmatpush1.msra.mxu0 0.0
      %357 = vmatprep.subr.mxu0 0.0
      %358 = vmatpush1.msra.mxu0 0.0
      %359 = vmatprep.subr.mxu0 0.0
      %360 = vmatpush1.msra.mxu0 0.0
      %361 = vmatprep.subr.mxu0 0.0
      %362 = vmatpush1.msra.mxu0 0.0
      %363 = vmatprep.subr.mxu0 0.0
      %364 = vmatpush1.msra.mxu0 0.0
      %365 = vmatprep.subr.mxu0 0.0
      %366 = vmatpush1.msra.mxu0 %v243
      %367 = vmatprep.subr.mxu0 0.0
      %368 = vmatpush1.msra.mxu0 %v223
      %369 = vmatprep.subr.mxu0 0.0
      %370 = vmatpush1.msra.mxu0 %v227
      %371 = vmatprep.subr.mxu0 0.0
      %372 = vmatpush2.msra.mxu0 0.0
      %373 = vmatprep.subr.mxu0 0.0
      %374 = vmatpush2.msra.mxu0 0.0
      %375 = vmatprep.subr.mxu0 0.0
      %376 = vmatpush2.msra.mxu0 0.0
      %377 = vmatprep.subr.mxu0 0.0
      %378 = vmatpush2.msra.mxu0 0.0
      %379 = vmatprep.subr.mxu0 0.0
      %380 = vmatpush2.msra.mxu0 0.0
      %381 = vmatprep.subr.mxu0 0.0
      %382 = vmatpush2.msra.mxu0 0.0
      %383 = vmatprep.subr.mxu0 0.0
      %384 = vmatpush2.msra.mxu0 0.0
      %385 = vmatprep.subr.mxu0 0.0
      %386 = vmatpush2.msra.mxu0 0.0
      %387 = vmatprep.subr.mxu0 0.0
      %388 = vmatpush2.msra.mxu0 0.0
      %389 = vmatprep.subr.mxu0 0.0
      %390 = vmatpush2.msra.mxu0 0.0
      %391 = vmatprep.subr.mxu0 0.0
      %392 = vmatpush2.msra.mxu0 0.0
      %393 = vmatprep.subr.mxu0 0.0
      %394 = vmatpush2.msra.mxu0 0.0
      %395 = vmatprep.subr.mxu0 0.0
      %396 = vmatpush2.msra.mxu0 0.0
      %397 = vmatprep.subr.mxu0 0.0
      %398 = vmatpush2.msra.mxu0 0.0
      %399 = vmatprep.subr.mxu0 0.0
      %400 = vmatpush2.msra.mxu0 0.0
      %401 = vmatprep.subr.mxu0 0.0
      %402 = vmatpush2.msra.mxu0 0.0
      %403 = vmatprep.mubr.f32.mxu0 0.0
      %404 = vmatmul.mubr.f32.gmra.mxu0 %v337
      %v405 = vpop.f32.mrf.mxu0
      %v406 = vadd.f32 0.0, %v405
      %v407 = vpop.f32.mrf.mxu0
      %408 = vdwg.mxu0
      %v409 = vpack.c.bf16 %v406, %v406
      %s410 = scalar_lea.vmem %s1, 64
      %v411 = vld [vmem:[%s410] sm:$0xf]
      %v412 = vld [vmem:[%s410 + $0x4] sm:$0xf]
      %v413 = vld [vmem:[%s410 + $0x8] sm:$0xf]
      %v414 = vld [vmem:[%s410 + $0xc] sm:$0xf]
      %v415 = vld [vmem:[%s410 + $0x10] sm:$0xf]
      %v416 = vld [vmem:[%s410 + $0x14] sm:$0xf]
      %v417 = vld [vmem:[%s410 + $0x18] sm:$0xf]
      %v418 = vld [vmem:[%s410 + $0x1c] sm:$0xf]
      %v419 = vld [vmem:[%s410 + $0x20] sm:$0xf]
      %v420 = vld [vmem:[%s410 + $0x24] sm:$0xf]
      %v421 = vld [vmem:[%s410 + $0x28] sm:$0xf]
      %v422 = vld [vmem:[%s410 + $0x2c] sm:$0xf]
      %v423 = vld [vmem:[%s410 + $0x30] sm:$0xf]
      %v424 = vld [vmem:[%s410 + $0x34] sm:$0xf]
      %v425 = vld [vmem:[%s410 + $0x38] sm:$0xf]
      %v426 = vld [vmem:[%s410 + $0x3c] sm:$0xf]
      %v443 = vunpack.c.l.b16 %v411
      %v444 = vunpack.c.l.b16 %v412
      %v445 = vunpack.c.l.b16 %v413
      %v446 = vunpack.c.l.b16 %v414
      %v447 = vunpack.c.l.b16 %v415
      %v448 = vunpack.c.l.b16 %v416
      %v449 = vunpack.c.l.b16 %v417
      %v450 = vunpack.c.l.b16 %v418
      %v451 = vunpack.c.l.b16 %v419
      %v452 = vunpack.c.l.b16 %v420
      %v453 = vunpack.c.l.b16 %v421
      %v454 = vunpack.c.l.b16 %v422
      %v455 = vunpack.c.l.b16 %v423
      %v456 = vunpack.c.l.b16 %v424
      %v457 = vunpack.c.l.b16 %v425
      %v458 = vunpack.c.l.b16 %v426
      %v459 = vpack.c.b16 %v444, %v443
      %v460 = vpack.c.b16 %v446, %v445
      %v461 = vpack.c.b16 %v448, %v447
      %v462 = vpack.c.b16 %v450, %v449
      %v463 = vpack.c.b16 %v452, %v451
      %v464 = vpack.c.b16 %v454, %v453
      %v465 = vpack.c.b16 %v456, %v455
      %v466 = vpack.c.b16 %v458, %v457
      %475 = vmatprep.subr.bf16.mxu0 0
      %476 = vmatpush1.bf16.msra.mxu0 %v466
      %477 = vmatprep.subr.bf16.mxu0 0
      %478 = vmatpush1.bf16.msra.mxu0 %v465
      %479 = vmatprep.subr.bf16.mxu0 0
      %480 = vmatpush1.bf16.msra.mxu0 %v464
      %481 = vmatprep.subr.bf16.mxu0 0
      %482 = vmatpush1.bf16.msra.mxu0 %v463
      %483 = vmatprep.subr.bf16.mxu0 0
      %484 = vmatpush1.bf16.msra.mxu0 %v462
      %485 = vmatprep.subr.bf16.mxu0 0
      %486 = vmatpush1.bf16.msra.mxu0 %v461
      %487 = vmatprep.subr.bf16.mxu0 0
      %488 = vmatpush1.bf16.msra.mxu0 %v460
      %489 = vmatprep.subr.bf16.mxu0 0
      %490 = vmatpush1.bf16.msra.mxu0 %v459
      %491 = vmatprep.subr.bf16.mxu0 0
      %492 = vmatpush2.bf16.msra.mxu0 0
      %493 = vmatprep.subr.bf16.mxu0 0
      %494 = vmatpush2.bf16.msra.mxu0 0
      %495 = vmatprep.subr.bf16.mxu0 0
      %496 = vmatpush2.bf16.msra.mxu0 0
      %497 = vmatprep.subr.bf16.mxu0 0
      %498 = vmatpush2.bf16.msra.mxu0 0
      %499 = vmatprep.subr.bf16.mxu0 0
      %500 = vmatpush2.bf16.msra.mxu0 0
      %501 = vmatprep.subr.bf16.mxu0 0
      %502 = vmatpush2.bf16.msra.mxu0 0
      %503 = vmatprep.subr.bf16.mxu0 0
      %504 = vmatpush2.bf16.msra.mxu0 0
      %505 = vmatprep.subr.bf16.mxu0 0
      %506 = vmatpush2.bf16.msra.mxu0 0
      %507 = vmatprep.mubr.bf16.mxu0 0
      %508 = vmatmul.mubr.bf16.gmra.mxu0 %v409
      %v509 = vpop.f32.mrf.mxu0
      %v510 = vadd.f32 0.0, %v509
      %v511 = vpop.f32.mrf.mxu0
      %v512 = vpop.f32.mrf.mxu0
      %v513 = vpop.f32.mrf.mxu0
      %514 = vdwg.mxu0
      %v531 = vunpack.c.l.b16 %v316
      %v532 = vunpack.c.l.b16 %v317
      %v533 = vunpack.c.l.b16 %v318
      %v534 = vunpack.c.l.b16 %v319
      %v535 = vunpack.c.l.b16 %v320
      %v536 = vunpack.c.l.b16 %v321
      %v537 = vunpack.c.l.b16 %v322
      %v538 = vunpack.c.l.b16 %v323
      %v539 = vunpack.c.l.b16 %v324
      %v540 = vunpack.c.l.b16 %v325
      %v541 = vunpack.c.l.b16 %v326
      %v542 = vunpack.c.l.b16 %v327
      %v543 = vunpack.c.l.b16 %v328
      %v544 = vunpack.c.l.b16 %v329
      %v545 = vunpack.c.l.b16 %v330
      %v546 = vunpack.c.l.b16 %v331
      %v547 = vpack.c.b16 %v532, %v531
      %v548 = vpack.c.b16 %v534, %v533
      %v549 = vpack.c.b16 %v536, %v535
      %v550 = vpack.c.b16 %v538, %v537
      %v551 = vpack.c.b16 %v540, %v539
      %v552 = vpack.c.b16 %v542, %v541
      %v553 = vpack.c.b16 %v544, %v543
      %v554 = vpack.c.b16 %v546, %v545
      %563 = vmatprep.subr.bf16.mxu0 0
      %564 = vmatpush1.bf16.msra.mxu0 %v554
      %565 = vmatprep.subr.bf16.mxu0 0
      %566 = vmatpush1.bf16.msra.mxu0 %v553
      %567 = vmatprep.subr.bf16.mxu0 0
      %568 = vmatpush1.bf16.msra.mxu0 %v552
      %569 = vmatprep.subr.bf16.mxu0 0
      %570 = vmatpush1.bf16.msra.mxu0 %v551
      %571 = vmatprep.subr.bf16.mxu0 0
      %572 = vmatpush1.bf16.msra.mxu0 %v550
      %573 = vmatprep.subr.bf16.mxu0 0
      %574 = vmatpush1.bf16.msra.mxu0 %v549
      %575 = vmatprep.subr.bf16.mxu0 0
      %576 = vmatpush1.bf16.msra.mxu0 %v548
      %577 = vmatprep.subr.bf16.mxu0 0
      %578 = vmatpush1.bf16.msra.mxu0 %v547
      %579 = vmatprep.subr.bf16.mxu0 0
      %580 = vmatpush2.bf16.msra.mxu0 0
      %581 = vmatprep.subr.bf16.mxu0 0
      %582 = vmatpush2.bf16.msra.mxu0 0
      %583 = vmatprep.subr.bf16.mxu0 0
      %584 = vmatpush2.bf16.msra.mxu0 0
      %585 = vmatprep.subr.bf16.mxu0 0
      %586 = vmatpush2.bf16.msra.mxu0 0
      %587 = vmatprep.subr.bf16.mxu0 0
      %588 = vmatpush2.bf16.msra.mxu0 0
      %589 = vmatprep.subr.bf16.mxu0 0
      %590 = vmatpush2.bf16.msra.mxu0 0
      %591 = vmatprep.subr.bf16.mxu0 0
      %592 = vmatpush2.bf16.msra.mxu0 0
      %593 = vmatprep.subr.bf16.mxu0 0
      %594 = vmatpush2.bf16.msra.mxu0 0
      %595 = vmatprep.mubr.bf16.mxu0 0
      %596 = vmatmul.mubr.bf16.gmra.mxu0 %v315
      %v597 = vpop.f32.mrf.mxu0
      %v598 = vadd.f32 %v510, %v597
      %v599 = vpop.f32.mrf.mxu0
      %v600 = vpop.f32.mrf.mxu0
      %v601 = vpop.f32.mrf.mxu0
      %602 = vdwg.mxu0
      %v603 = vadd.s32 %v233, 2
      %vm604 = vcmp.eq.s32.totalorder %v232, %v603
      %v605 = vsel %vm604, 1, 0
      %v606 = vcvt.s32.f32 %v605
      %v608 = vsel %vm237, %v606, 0
      %610 = vmatprep.subr.mxu0 0.0
      %611 = vmatpush1.msra.mxu0 0.0
      %612 = vmatprep.subr.mxu0 0.0
      %613 = vmatpush1.msra.mxu0 0.0
      %614 = vmatprep.subr.mxu0 0.0
      %615 = vmatpush1.msra.mxu0 0.0
      %616 = vmatprep.subr.mxu0 0.0
      %617 = vmatpush1.msra.mxu0 0.0
      %618 = vmatprep.subr.mxu0 0.0
      %619 = vmatpush1.msra.mxu0 0.0
      %620 = vmatprep.subr.mxu0 0.0
      %621 = vmatpush1.msra.mxu0 0.0
      %622 = vmatprep.subr.mxu0 0.0
      %623 = vmatpush1.msra.mxu0 0.0
      %624 = vmatprep.subr.mxu0 0.0
      %625 = vmatpush1.msra.mxu0 0.0
      %626 = vmatprep.subr.mxu0 0.0
      %627 = vmatpush1.msra.mxu0 0.0
      %628 = vmatprep.subr.mxu0 0.0
      %629 = vmatpush1.msra.mxu0 0.0
      %630 = vmatprep.subr.mxu0 0.0
      %631 = vmatpush1.msra.mxu0 0.0
      %632 = vmatprep.subr.mxu0 0.0
      %633 = vmatpush1.msra.mxu0 0.0
      %634 = vmatprep.subr.mxu0 0.0
      %635 = vmatpush1.msra.mxu0 0.0
      %636 = vmatprep.subr.mxu0 0.0
      %637 = vmatpush1.msra.mxu0 %v243
      %638 = vmatprep.subr.mxu0 0.0
      %639 = vmatpush1.msra.mxu0 %v223
      %640 = vmatprep.subr.mxu0 0.0
      %641 = vmatpush1.msra.mxu0 %v227
      %642 = vmatprep.subr.mxu0 0.0
      %643 = vmatpush2.msra.mxu0 0.0
      %644 = vmatprep.subr.mxu0 0.0
      %645 = vmatpush2.msra.mxu0 0.0
      %646 = vmatprep.subr.mxu0 0.0
      %647 = vmatpush2.msra.mxu0 0.0
      %648 = vmatprep.subr.mxu0 0.0
      %649 = vmatpush2.msra.mxu0 0.0
      %650 = vmatprep.subr.mxu0 0.0
      %651 = vmatpush2.msra.mxu0 0.0
      %652 = vmatprep.subr.mxu0 0.0
      %653 = vmatpush2.msra.mxu0 0.0
      %654 = vmatprep.subr.mxu0 0.0
      %655 = vmatpush2.msra.mxu0 0.0
      %656 = vmatprep.subr.mxu0 0.0
      %657 = vmatpush2.msra.mxu0 0.0
      %658 = vmatprep.subr.mxu0 0.0
      %659 = vmatpush2.msra.mxu0 0.0
      %660 = vmatprep.subr.mxu0 0.0
      %661 = vmatpush2.msra.mxu0 0.0
      %662 = vmatprep.subr.mxu0 0.0
      %663 = vmatpush2.msra.mxu0 0.0
      %664 = vmatprep.subr.mxu0 0.0
      %665 = vmatpush2.msra.mxu0 0.0
      %666 = vmatprep.subr.mxu0 0.0
      %667 = vmatpush2.msra.mxu0 0.0
      %668 = vmatprep.subr.mxu0 0.0
      %669 = vmatpush2.msra.mxu0 0.0
      %670 = vmatprep.subr.mxu0 0.0
      %671 = vmatpush2.msra.mxu0 0.0
      %672 = vmatprep.subr.mxu0 0.0
      %673 = vmatpush2.msra.mxu0 0.0
      %674 = vmatprep.mubr.f32.mxu0 0.0
      %675 = vmatmul.mubr.f32.gmra.mxu0 %v608
      %v676 = vpop.f32.mrf.mxu0
      %v677 = vadd.f32 0.0, %v676
      %v678 = vpop.f32.mrf.mxu0
      %679 = vdwg.mxu0
      %v680 = vpack.c.bf16 %v677, %v677
      %s681 = scalar_lea.vmem %s1, 128
      %v682 = vld [vmem:[%s681] sm:$0xf]
      %v683 = vld [vmem:[%s681 + $0x4] sm:$0xf]
      %v684 = vld [vmem:[%s681 + $0x8] sm:$0xf]
      %v685 = vld [vmem:[%s681 + $0xc] sm:$0xf]
      %v686 = vld [vmem:[%s681 + $0x10] sm:$0xf]
      %v687 = vld [vmem:[%s681 + $0x14] sm:$0xf]
      %v688 = vld [vmem:[%s681 + $0x18] sm:$0xf]
      %v689 = vld [vmem:[%s681 + $0x1c] sm:$0xf]
      %v690 = vld [vmem:[%s681 + $0x20] sm:$0xf]
      %v691 = vld [vmem:[%s681 + $0x24] sm:$0xf]
      %v692 = vld [vmem:[%s681 + $0x28] sm:$0xf]
      %v693 = vld [vmem:[%s681 + $0x2c] sm:$0xf]
      %v694 = vld [vmem:[%s681 + $0x30] sm:$0xf]
      %v695 = vld [vmem:[%s681 + $0x34] sm:$0xf]
      %v696 = vld [vmem:[%s681 + $0x38] sm:$0xf]
      %v697 = vld [vmem:[%s681 + $0x3c] sm:$0xf]
      %v714 = vunpack.c.l.b16 %v682
      %v715 = vunpack.c.l.b16 %v683
      %v716 = vunpack.c.l.b16 %v684
      %v717 = vunpack.c.l.b16 %v685
      %v718 = vunpack.c.l.b16 %v686
      %v719 = vunpack.c.l.b16 %v687
      %v720 = vunpack.c.l.b16 %v688
      %v721 = vunpack.c.l.b16 %v689
      %v722 = vunpack.c.l.b16 %v690
      %v723 = vunpack.c.l.b16 %v691
      %v724 = vunpack.c.l.b16 %v692
      %v725 = vunpack.c.l.b16 %v693
      %v726 = vunpack.c.l.b16 %v694
      %v727 = vunpack.c.l.b16 %v695
      %v728 = vunpack.c.l.b16 %v696
      %v729 = vunpack.c.l.b16 %v697
      %v730 = vpack.c.b16 %v715, %v714
      %v731 = vpack.c.b16 %v717, %v716
      %v732 = vpack.c.b16 %v719, %v718
      %v733 = vpack.c.b16 %v721, %v720
      %v734 = vpack.c.b16 %v723, %v722
      %v735 = vpack.c.b16 %v725, %v724
      %v736 = vpack.c.b16 %v727, %v726
      %v737 = vpack.c.b16 %v729, %v728
      %746 = vmatprep.subr.bf16.mxu0 0
      %747 = vmatpush1.bf16.msra.mxu0 %v737
      %748 = vmatprep.subr.bf16.mxu0 0
      %749 = vmatpush1.bf16.msra.mxu0 %v736
      %750 = vmatprep.subr.bf16.mxu0 0
      %751 = vmatpush1.bf16.msra.mxu0 %v735
      %752 = vmatprep.subr.bf16.mxu0 0
      %753 = vmatpush1.bf16.msra.mxu0 %v734
      %754 = vmatprep.subr.bf16.mxu0 0
      %755 = vmatpush1.bf16.msra.mxu0 %v733
      %756 = vmatprep.subr.bf16.mxu0 0
      %757 = vmatpush1.bf16.msra.mxu0 %v732
      %758 = vmatprep.subr.bf16.mxu0 0
      %759 = vmatpush1.bf16.msra.mxu0 %v731
      %760 = vmatprep.subr.bf16.mxu0 0
      %761 = vmatpush1.bf16.msra.mxu0 %v730
      %762 = vmatprep.subr.bf16.mxu0 0
      %763 = vmatpush2.bf16.msra.mxu0 0
      %764 = vmatprep.subr.bf16.mxu0 0
      %765 = vmatpush2.bf16.msra.mxu0 0
      %766 = vmatprep.subr.bf16.mxu0 0
      %767 = vmatpush2.bf16.msra.mxu0 0
      %768 = vmatprep.subr.bf16.mxu0 0
      %769 = vmatpush2.bf16.msra.mxu0 0
      %770 = vmatprep.subr.bf16.mxu0 0
      %771 = vmatpush2.bf16.msra.mxu0 0
      %772 = vmatprep.subr.bf16.mxu0 0
      %773 = vmatpush2.bf16.msra.mxu0 0
      %774 = vmatprep.subr.bf16.mxu0 0
      %775 = vmatpush2.bf16.msra.mxu0 0
      %776 = vmatprep.subr.bf16.mxu0 0
      %777 = vmatpush2.bf16.msra.mxu0 0
      %778 = vmatprep.mubr.bf16.mxu0 0
      %779 = vmatmul.mubr.bf16.gmra.mxu0 %v680
      %v780 = vpop.f32.mrf.mxu0
      %v781 = vadd.f32 0.0, %v780
      %v782 = vpop.f32.mrf.mxu0
      %v783 = vpop.f32.mrf.mxu0
      %v784 = vpop.f32.mrf.mxu0
      %785 = vdwg.mxu0
      %v786 = vadd.f32 %v598, %v781
      %v787 = vld [vmem:[%s2] sm:$0x1]
      %v789 = vlaneseq
      %v790 = vshrl.u32 %v789, 7
      %v791 = vsub.s32 0, %v790
      %v792 = vrot.slane %v787, %v791
      %v794 = vadd.f32 %v786, %v792
      %v795 = vld [vmem:[%s208] sm:$0xf]
      %v796 = vunpack.c.l.bf16 %v795
      %v797 = vadd.f32 %v794, %v796
      %v798 = vmax.f32 %v797, 0.0
      %v799 = vpack.c.bf16 %v798, %v798
      %800 = vst [vmem:[%s212] sm:$0xf] %v799
      %p801 = scmp.lt.s32.totalorder %s15, 1
      %s802 = scalar_select %p801, %s15, 1
      %s803 = smul.addr %s802, 4
      %s804 = scalar_lea.vmem %s4, %s803
      // Predicated region
      $region37: #{_lambda_.9} parent=35 // pred_check
        %p805 = pneg %p127
      $region38: #{_lambda_.9} parent=35 // pred_check_branch
        %807 = sbr.rel (%p805) target = $region40
      $region39: #{_lambda_.9} parent=35 // pred_region
        _
      $region40: #{_lambda_.9} parent=35 // pred_fallthru
        _
    $region36: #{_lambda_.9} parent=5 // pred_fallthru
      _
    %p808 = scmp.le.s32.totalorder 2, %s10
    // Predicated region
    $region41: #{_lambda_.9} parent=5 // pred_check
      %p809 = pneg %p808
    $region42: #{_lambda_.9} parent=5 // pred_check_branch
      %811 = sbr.rel (%p809) target = $region44
    $region43: #{_lambda_.9} parent=5 // pred_region
      %s812 = ssub.s32 %s10, 2
      // Predicated region
      $region45: #{_lambda_.9} parent=43 // pred_check
        %p813 = pneg %p133
      $region46: #{_lambda_.9} parent=43 // pred_check_branch
        %815 = sbr.rel (%p813) target = $region48
      $region47: #{_lambda_.9} parent=43 // pred_region
        %p816 = scmp.lt.s32.totalorder %s16, 1
        %s817 = scalar_select %p816, %s16, 1
        %s818 = smul.addr %s817, 4
        %s819 = scalar_lea.vmem %s4, %s818
      $region48: #{_lambda_.9} parent=43 // pred_fallthru
        _
    $region44: #{_lambda_.9} parent=5 // pred_fallthru
      _
  $region6: #{_lambda_.9} parent=0 // loop_footer
    %s14 = sadd.s32 1, %s10
  $region7: #{_lambda_.9} parent=0 // loop_footer_branch
    %9 = sbr.rel target = $region3
  $region8: #{_lambda_.9} parent=0 // loop_exit
    _

</llo_original>
